<compile_context>
chip_gen: v7x
topology: tpu7x:2x2x1
jax: 0.10.0
libtpu: 0.0.40
codegen_flags: <defaults>
</compile_context>

<pallas_src>
import functools

import jax
import jax.numpy as jnp
from jax.experimental import pallas as pl
from jax.experimental.pallas import tpu as pltpu

# ---- synthetic ViT config ("vit-tiny"-like, lane-dense embedding) -----------
PATCH = 4
EMBED = 128                 # multiple of 128 -> full lane utilization
DEPTH = 2
HEADS = 2
HEAD_DIM = EMBED // HEADS
MLP_HIDDEN = 4 * EMBED
LN_EPS = 1e-6
NUM_PREFIX_TOKENS = 1       # class token only


# =============================== fused Pallas kernel =========================

def _vit_fwd_kernel(patches_ref, patch_w_ref, pos_ref,
                    ln1_g_ref, ln1_b_ref, qkv_w_ref, qkv_b_ref,
                    proj_w_ref, proj_b_ref, ln2_g_ref, ln2_b_ref,
                    fc1_w_ref, fc1_b_ref, fc2_w_ref, fc2_b_ref,
                    normf_g_ref, normf_b_ref, out_ref):
    """Entire ViT forward for one batch element; everything stays in VMEM."""
    scale = 1.0 / (HEAD_DIM ** 0.5)

    def ln(x, g, b):
        mu = jnp.mean(x, axis=-1, keepdims=True)
        var = jnp.mean(jnp.square(x - mu), axis=-1, keepdims=True)
        return (x - mu) * jax.lax.rsqrt(var + LN_EPS) * g + b

    def mm(x, w, b):  # bf16 MXU matmul, f32 accumulation
        return jnp.dot(x.astype(jnp.bfloat16), w,
                       preferred_element_type=jnp.float32) + b

    # --- patch embedding (+ folded cls token / pos-embed / patch bias) -------
    # patches row 0 is all zeros (cls slot); pos_ref row 0 = cls_token + pos[0],
    # rows 1.. = patch_bias + pos[1:]  -> no concat needed anywhere.
    patches = patches_ref[0]                                       # (T, KPAD) f32
    tokens = jnp.dot(patches.astype(jnp.bfloat16), patch_w_ref[...],
                     preferred_element_type=jnp.float32) + pos_ref[...]

    # --- transformer blocks (statically unrolled; DEPTH is small) ------------
    for l in range(DEPTH):
        # attention sub-block
        h = ln(tokens, ln1_g_ref[l], ln1_b_ref[l])
        qkv = mm(h, qkv_w_ref[l], qkv_b_ref[l])                    # (T, 3D) f32
        w_proj = proj_w_ref[l]                                     # (D, D) bf16
        attn_proj = jnp.zeros_like(tokens)
        for hh in range(HEADS):
            lo = hh * HEAD_DIM
            q = qkv[:, lo:lo + HEAD_DIM].astype(jnp.bfloat16)
            k = qkv[:, EMBED + lo:EMBED + lo + HEAD_DIM].astype(jnp.bfloat16)
            v = qkv[:, 2 * EMBED + lo:2 * EMBED + lo + HEAD_DIM].astype(jnp.bfloat16)
            s = jax.lax.dot_general(q, k, (((1,), (1,)), ((), ())),
                                    preferred_element_type=jnp.float32) * scale
            s = s - jnp.max(s, axis=-1, keepdims=True)
            p = jnp.exp(s)
            p = p * pl.reciprocal(jnp.sum(p, axis=-1, keepdims=True), approx=True)
            o = jnp.dot(p.astype(jnp.bfloat16), v,
                        preferred_element_type=jnp.float32)        # (T, HD)
            # per-head slice of the output projection (== concat-then-proj)
            attn_proj = attn_proj + jnp.dot(
                o.astype(jnp.bfloat16), w_proj[lo:lo + HEAD_DIM, :],
                preferred_element_type=jnp.float32)
        tokens = tokens + attn_proj + proj_b_ref[l]

        # MLP sub-block
        h = ln(tokens, ln2_g_ref[l], ln2_b_ref[l])
        h = mm(h, fc1_w_ref[l], fc1_b_ref[l])
        # TODO(synk): exact erf-GELU (PyTorch nn.GELU default) replaced by
        # tanh-approx GELU for guaranteed Mosaic lowering.
        h = jax.nn.gelu(h, approximate=True)
        tokens = tokens + mm(h, fc2_w_ref[l], fc2_b_ref[l])

    # --- final LayerNorm + TimmModel head (cls token || mean patch tokens) ---
    tokens = ln(tokens, normf_g_ref[...], normf_b_ref[...])
    cls_tok = tokens[0:NUM_PREFIX_TOKENS, :]                       # (1, D)
    patch_mean = jnp.mean(tokens[NUM_PREFIX_TOKENS:, :], axis=0, keepdims=True)
    out_ref[0, :, 0:EMBED] = cls_tok.astype(out_ref.dtype)
    out_ref[0, :, EMBED:2 * EMBED] = patch_mean.astype(out_ref.dtype)


# ================================ model glue =================================

def init_params(key, in_chans=3, img_size=16):
    if img_size % PATCH:
        raise ValueError("img_size must be divisible by PATCH")
    n_patches = (img_size // PATCH) ** 2
    num_tokens = n_patches + NUM_PREFIX_TOKENS
    pdim = in_chans * PATCH * PATCH
    kpad = ((pdim + 127) // 128) * 128          # lane-dense padded patch dim
    std = 0.02
    keys = jax.random.split(key, 4 + DEPTH)

    def normal(k, shape):
        return (std * jax.random.normal(k, shape)).astype(jnp.float32)

    patch_w = jnp.zeros((kpad, EMBED), jnp.float32)
    patch_w = patch_w.at[:pdim].set(normal(keys[0], (pdim, EMBED)))
    patch_b = jnp.zeros((EMBED,), jnp.float32)
    cls_token = normal(keys[1], (EMBED,))
    pos_embed = normal(keys[2], (num_tokens, EMBED))

    # Fold cls token, positional embedding and patch-embed bias into one
    # additive table consumed by the kernel (tokens = patches @ W + pos_comb).
    pos_comb = pos_embed + patch_b[None, :]
    pos_comb = pos_comb.at[0].set(cls_token + pos_embed[0])

    qkv_w, proj_w, fc1_w, fc2_w = [], [], [], []
    for l in range(DEPTH):
        kq, kp, k1, k2 = jax.random.split(keys[4 + l - 1] if False else keys[3 + l], 4)
        qkv_w.append(normal(kq, (EMBED, 3 * EMBED)))
        proj_w.append(normal(kp, (EMBED, EMBED)))
        fc1_w.append(normal(k1, (EMBED, MLP_HIDDEN)))
        fc2_w.append(normal(k2, (MLP_HIDDEN, EMBED)))

    return {
        "patch_w": patch_w.astype(jnp.bfloat16),
        "pos_comb": pos_comb,
        "ln1_g": jnp.ones((DEPTH, 1, EMBED), jnp.float32),
        "ln1_b": jnp.zeros((DEPTH, 1, EMBED), jnp.float32),
        "qkv_w": jnp.stack(qkv_w).astype(jnp.bfloat16),
        "qkv_b": jnp.zeros((DEPTH, 1, 3 * EMBED), jnp.float32),
        "proj_w": jnp.stack(proj_w).astype(jnp.bfloat16),
        "proj_b": jnp.zeros((DEPTH, 1, EMBED), jnp.float32),
        "ln2_g": jnp.ones((DEPTH, 1, EMBED), jnp.float32),
        "ln2_b": jnp.zeros((DEPTH, 1, EMBED), jnp.float32),
        "fc1_w": jnp.stack(fc1_w).astype(jnp.bfloat16),
        "fc1_b": jnp.zeros((DEPTH, 1, MLP_HIDDEN), jnp.float32),
        "fc2_w": jnp.stack(fc2_w).astype(jnp.bfloat16),
        "fc2_b": jnp.zeros((DEPTH, 1, EMBED), jnp.float32),
        "norm_g": jnp.ones((1, EMBED), jnp.float32),
        "norm_b": jnp.zeros((1, EMBED), jnp.float32),
    }


def forward(params, x_nchw, *, concat_mean_patch_tokens=True):
    """Equivalent of TimmModel.forward on the forward_features path."""
    B, C, H, W = x_nchw.shape
    if H % PATCH or W % PATCH:
        raise ValueError(f"H={H}, W={W} must be divisible by PATCH={PATCH}")
    hP, wP = H // PATCH, W // PATCH
    N = hP * wP
    T = N + NUM_PREFIX_TOKENS
    if T != params["pos_comb"].shape[0]:
        raise ValueError("input spatial size does not match positional embedding")
    kpad = params["patch_w"].shape[0]
    pdim = C * PATCH * PATCH
    if pdim > kpad:
        raise ValueError("in_chans does not match patch embedding")

    # Non-overlapping PATCHxPATCH extraction (conv-as-matmul layout), prepend an
    # all-zero cls row and zero-pad K to the lane-dense width (host-side layout
    # plumbing only; all compute happens inside the fused kernel).
    patches = (x_nchw.reshape(B, C, hP, PATCH, wP, PATCH)
               .transpose(0, 2, 4, 1, 3, 5)
               .reshape(B, N, pdim))
    patches = jnp.pad(patches, ((0, 0), (NUM_PREFIX_TOKENS, 0), (0, kpad - pdim)))

    c2 = lambda b: (0, 0)
    c3 = lambda b: (0, 0, 0)
    D = EMBED

    out = pl.pallas_call(
        _vit_fwd_kernel,
        out_shape=jax.ShapeDtypeStruct((B, 1, 2 * D), jnp.float32),
        grid=(B,),
        in_specs=[
            pl.BlockSpec((1, T, kpad), lambda b: (b, 0, 0)),    # patches
            pl.BlockSpec((kpad, D), c2),                        # patch_w (bf16)
            pl.BlockSpec((T, D), c2),                           # pos_comb
            pl.BlockSpec((DEPTH, 1, D), c3),                    # ln1_g
            pl.BlockSpec((DEPTH, 1, D), c3),                    # ln1_b
            pl.BlockSpec((DEPTH, D, 3 * D), c3),                # qkv_w (bf16)
            pl.BlockSpec((DEPTH, 1, 3 * D), c3),                # qkv_b
            pl.BlockSpec((DEPTH, D, D), c3),                    # proj_w (bf16)
            pl.BlockSpec((DEPTH, 1, D), c3),                    # proj_b
            pl.BlockSpec((DEPTH, 1, D), c3),                    # ln2_g
            pl.BlockSpec((DEPTH, 1, D), c3),                    # ln2_b
            pl.BlockSpec((DEPTH, D, MLP_HIDDEN), c3),           # fc1_w (bf16)
            pl.BlockSpec((DEPTH, 1, MLP_HIDDEN), c3),           # fc1_b
            pl.BlockSpec((DEPTH, MLP_HIDDEN, D), c3),           # fc2_w (bf16)
            pl.BlockSpec((DEPTH, 1, D), c3),                    # fc2_b
            pl.BlockSpec((1, D), c2),                           # norm_g
            pl.BlockSpec((1, D), c2),                           # norm_b
        ],
        out_specs=pl.BlockSpec((1, 1, 2 * D), lambda b: (b, 0, 0)),
        compiler_params=pltpu.CompilerParams(
            dimension_semantics=("parallel",)),                 # megacore on v7x
    )(patches,
      params["patch_w"], params["pos_comb"],
      params["ln1_g"], params["ln1_b"],
      params["qkv_w"], params["qkv_b"],
      params["proj_w"], params["proj_b"],
      params["ln2_g"], params["ln2_b"],
      params["fc1_w"], params["fc1_b"],
      params["fc2_w"], params["fc2_b"],
      params["norm_g"], params["norm_b"])

    emb = out.reshape(B, 2 * D)
    if concat_mean_patch_tokens:
        return emb                     # [B, 2*EMBED] = [cls || mean(patch)]
    return emb[:, :D]                  # class token only


# ================================== driver ==================================

if __name__ == "__main__":
    B, C, H, W = 2, 3, 16, 16
    x = jax.random.normal(jax.random.PRNGKey(0), (B, C, H, W), dtype=jnp.float32)
    params = init_params(jax.random.PRNGKey(1), in_chans=C, img_size=H)

    fwd = jax.jit(functools.partial(forward, concat_mean_patch_tokens=True))
    emb = jax.block_until_ready(fwd(params, x))

    assert emb.shape == (B, 2 * EMBED), emb.shape
    assert bool(jnp.all(jnp.isfinite(emb)))
    print("KERNEL_OK")
</pallas_src>

<mosaic_0001>
module attributes {stable_mosaic.version = 11 : i64} {
  func.func @_vit_fwd_kernel(%arg0: i32, %arg1: memref<1x17x128xf32, #tpu.memory_space<vmem>>, %arg2: memref<128x128xbf16, #tpu.memory_space<vmem>>, %arg3: memref<17x128xf32, #tpu.memory_space<vmem>>, %arg4: memref<2x1x128xf32, #tpu.memory_space<vmem>>, %arg5: memref<2x1x128xf32, #tpu.memory_space<vmem>>, %arg6: memref<2x128x384xbf16, #tpu.memory_space<vmem>>, %arg7: memref<2x1x384xf32, #tpu.memory_space<vmem>>, %arg8: memref<2x128x128xbf16, #tpu.memory_space<vmem>>, %arg9: memref<2x1x128xf32, #tpu.memory_space<vmem>>, %arg10: memref<2x1x128xf32, #tpu.memory_space<vmem>>, %arg11: memref<2x1x128xf32, #tpu.memory_space<vmem>>, %arg12: memref<2x128x512xbf16, #tpu.memory_space<vmem>>, %arg13: memref<2x1x512xf32, #tpu.memory_space<vmem>>, %arg14: memref<2x512x128xbf16, #tpu.memory_space<vmem>>, %arg15: memref<2x1x128xf32, #tpu.memory_space<vmem>>, %arg16: memref<1x128xf32, #tpu.memory_space<vmem>>, %arg17: memref<1x128xf32, #tpu.memory_space<vmem>>, %arg18: memref<1x1x256xf32, #tpu.memory_space<vmem>>) attributes {dimension_semantics = [#tpu.dimension_semantics<parallel>], iteration_bounds = array<i64: 2>, scalar_prefetch = 0 : i64, scratch_operands = 0 : i64, tpu.core_type = #tpu.core_type<tc>, window_params = [{transform_indices = @transform_0, window_bounds = array<i64: 1, 17, 128>}, {pipeline_mode = #tpu.pipeline_mode<synchronous>, transform_indices = @transform_1, window_bounds = array<i64: 128, 128>}, {pipeline_mode = #tpu.pipeline_mode<synchronous>, transform_indices = @transform_2, window_bounds = array<i64: 17, 128>}, {pipeline_mode = #tpu.pipeline_mode<synchronous>, transform_indices = @transform_3, window_bounds = array<i64: 2, 1, 128>}, {pipeline_mode = #tpu.pipeline_mode<synchronous>, transform_indices = @transform_4, window_bounds = array<i64: 2, 1, 128>}, {pipeline_mode = #tpu.pipeline_mode<synchronous>, transform_indices = @transform_5, window_bounds = array<i64: 2, 128, 384>}, {pipeline_mode = #tpu.pipeline_mode<synchronous>, transform_indices = @transform_6, window_bounds = array<i64: 2, 1, 384>}, {pipeline_mode = #tpu.pipeline_mode<synchronous>, transform_indices = @transform_7, window_bounds = array<i64: 2, 128, 128>}, {pipeline_mode = #tpu.pipeline_mode<synchronous>, transform_indices = @transform_8, window_bounds = array<i64: 2, 1, 128>}, {pipeline_mode = #tpu.pipeline_mode<synchronous>, transform_indices = @transform_9, window_bounds = array<i64: 2, 1, 128>}, {pipeline_mode = #tpu.pipeline_mode<synchronous>, transform_indices = @transform_10, window_bounds = array<i64: 2, 1, 128>}, {pipeline_mode = #tpu.pipeline_mode<synchronous>, transform_indices = @transform_11, window_bounds = array<i64: 2, 128, 512>}, {pipeline_mode = #tpu.pipeline_mode<synchronous>, transform_indices = @transform_12, window_bounds = array<i64: 2, 1, 512>}, {pipeline_mode = #tpu.pipeline_mode<synchronous>, transform_indices = @transform_13, window_bounds = array<i64: 2, 512, 128>}, {pipeline_mode = #tpu.pipeline_mode<synchronous>, transform_indices = @transform_14, window_bounds = array<i64: 2, 1, 128>}, {pipeline_mode = #tpu.pipeline_mode<synchronous>, transform_indices = @transform_15, window_bounds = array<i64: 1, 128>}, {pipeline_mode = #tpu.pipeline_mode<synchronous>, transform_indices = @transform_16, window_bounds = array<i64: 1, 128>}, {transform_indices = @transform_17, window_bounds = array<i64: 1, 1, 256>}]} {
    %c0 = arith.constant 0 : index
    %c0_0 = arith.constant 0 : index
    %c0_1 = arith.constant 0 : index
    %0 = vector.load %arg1[%c0, %c0_0, %c0_1] : memref<1x17x128xf32, #tpu.memory_space<vmem>>, vector<1x17x128xf32>
    %1 = vector.shape_cast %0 : vector<1x17x128xf32> to vector<17x128xf32>
    %2 = arith.truncf %1 : vector<17x128xf32> to vector<17x128xbf16>
    %c0_2 = arith.constant 0 : index
    %c0_3 = arith.constant 0 : index
    %3 = vector.load %arg2[%c0_2, %c0_3] : memref<128x128xbf16, #tpu.memory_space<vmem>>, vector<128x128xbf16>
    %cst = arith.constant dense<0.000000e+00> : vector<17x128xf32>
    %4 = tpu.matmul %2, %3, %cst {dimension_numbers = #tpu.dot_dimension_numbers<[1], [0], [0], [1], [0, 0, 1, 1], [], []>} : vector<17x128xbf16>, vector<128x128xbf16>, vector<17x128xf32> -> vector<17x128xf32>
    %c0_4 = arith.constant 0 : index
    %c0_5 = arith.constant 0 : index
    %5 = vector.load %arg3[%c0_4, %c0_5] : memref<17x128xf32, #tpu.memory_space<vmem>>, vector<17x128xf32>
    %6 = arith.addf %4, %5 : vector<17x128xf32>
    %c0_6 = arith.constant 0 : index
    %c0_7 = arith.constant 0 : index
    %c0_8 = arith.constant 0 : index
    %7 = vector.load %arg4[%c0_6, %c0_7, %c0_8] : memref<2x1x128xf32, #tpu.memory_space<vmem>>, vector<1x1x128xf32>
    %8 = vector.shape_cast %7 : vector<1x1x128xf32> to vector<1x128xf32>
    %c0_9 = arith.constant 0 : index
    %c0_10 = arith.constant 0 : index
    %c0_11 = arith.constant 0 : index
    %9 = vector.load %arg5[%c0_9, %c0_10, %c0_11] : memref<2x1x128xf32, #tpu.memory_space<vmem>>, vector<1x1x128xf32>
    %10 = vector.shape_cast %9 : vector<1x1x128xf32> to vector<1x128xf32>
    %cst_12 = arith.constant dense<0.000000e+00> : vector<17xf32>
    %11 = vector.multi_reduction <add>, %6, %cst_12 [1] : vector<17x128xf32> to vector<17xf32>
    %12 = vector.shape_cast %11 : vector<17xf32> to vector<17x1xf32>
    %cst_13 = arith.constant 1.280000e+02 : f32
    %13 = vector.broadcast %cst_13 : f32 to vector<17x1xf32>
    %14 = arith.divf %12, %13 : vector<17x1xf32>
    %15 = vector.broadcast %14 : vector<17x1xf32> to vector<17x128xf32>
    %16 = arith.subf %6, %15 : vector<17x128xf32>
    %17 = arith.mulf %16, %16 : vector<17x128xf32>
    %cst_14 = arith.constant dense<0.000000e+00> : vector<17xf32>
    %18 = vector.multi_reduction <add>, %17, %cst_14 [1] : vector<17x128xf32> to vector<17xf32>
    %19 = vector.shape_cast %18 : vector<17xf32> to vector<17x1xf32>
    %cst_15 = arith.constant 1.280000e+02 : f32
    %20 = vector.broadcast %cst_15 : f32 to vector<17x1xf32>
    %21 = arith.divf %19, %20 : vector<17x1xf32>
    %22 = vector.broadcast %14 : vector<17x1xf32> to vector<17x128xf32>
    %23 = arith.subf %6, %22 : vector<17x128xf32>
    %cst_16 = arith.constant 9.99999997E-7 : f32
    %24 = vector.broadcast %cst_16 : f32 to vector<17x1xf32>
    %25 = arith.addf %21, %24 : vector<17x1xf32>
    %26 = math.rsqrt %25 : vector<17x1xf32>
    %27 = vector.broadcast %26 : vector<17x1xf32> to vector<17x128xf32>
    %28 = arith.mulf %23, %27 : vector<17x128xf32>
    %29 = vector.broadcast %8 : vector<1x128xf32> to vector<17x128xf32>
    %30 = arith.mulf %28, %29 : vector<17x128xf32>
    %31 = vector.broadcast %10 : vector<1x128xf32> to vector<17x128xf32>
    %32 = arith.addf %30, %31 : vector<17x128xf32>
    %c0_17 = arith.constant 0 : index
    %c0_18 = arith.constant 0 : index
    %c0_19 = arith.constant 0 : index
    %33 = vector.load %arg6[%c0_17, %c0_18, %c0_19] : memref<2x128x384xbf16, #tpu.memory_space<vmem>>, vector<1x128x384xbf16>
    %34 = vector.shape_cast %33 : vector<1x128x384xbf16> to vector<128x384xbf16>
    %c0_20 = arith.constant 0 : index
    %c0_21 = arith.constant 0 : index
    %c0_22 = arith.constant 0 : index
    %35 = vector.load %arg7[%c0_20, %c0_21, %c0_22] : memref<2x1x384xf32, #tpu.memory_space<vmem>>, vector<1x1x384xf32>
    %36 = vector.shape_cast %35 : vector<1x1x384xf32> to vector<1x384xf32>
    %37 = arith.truncf %32 : vector<17x128xf32> to vector<17x128xbf16>
    %cst_23 = arith.constant dense<0.000000e+00> : vector<17x384xf32>
    %38 = tpu.matmul %37, %34, %cst_23 {dimension_numbers = #tpu.dot_dimension_numbers<[1], [0], [0], [1], [0, 0, 1, 1], [], []>} : vector<17x128xbf16>, vector<128x384xbf16>, vector<17x384xf32> -> vector<17x384xf32>
    %39 = vector.broadcast %36 : vector<1x384xf32> to vector<17x384xf32>
    %40 = arith.addf %38, %39 : vector<17x384xf32>
    %c0_24 = arith.constant 0 : index
    %c0_25 = arith.constant 0 : index
    %c0_26 = arith.constant 0 : index
    %41 = vector.load %arg8[%c0_24, %c0_25, %c0_26] : memref<2x128x128xbf16, #tpu.memory_space<vmem>>, vector<1x128x128xbf16>
    %42 = vector.shape_cast %41 : vector<1x128x128xbf16> to vector<128x128xbf16>
    %cst_27 = arith.constant 0.000000e+00 : f32
    %43 = vector.broadcast %cst_27 : f32 to vector<17x128xf32>
    %44 = vector.extract_strided_slice %40 {offsets = [0, 0], sizes = [17, 64], strides = [1, 1]} : vector<17x384xf32> to vector<17x64xf32>
    %45 = arith.truncf %44 : vector<17x64xf32> to vector<17x64xbf16>
    %46 = vector.extract_strided_slice %40 {offsets = [0, 128], sizes = [17, 64], strides = [1, 1]} : vector<17x384xf32> to vector<17x64xf32>
    %47 = arith.truncf %46 : vector<17x64xf32> to vector<17x64xbf16>
    %48 = vector.extract_strided_slice %40 {offsets = [0, 256], sizes = [17, 64], strides = [1, 1]} : vector<17x384xf32> to vector<17x64xf32>
    %49 = arith.truncf %48 : vector<17x64xf32> to vector<17x64xbf16>
    %cst_28 = arith.constant dense<0.000000e+00> : vector<17x17xf32>
    %50 = tpu.matmul %45, %47, %cst_28 {dimension_numbers = #tpu.dot_dimension_numbers<[1], [1], [0], [0], [0, 0, 1, 0], [], []>} : vector<17x64xbf16>, vector<17x64xbf16>, vector<17x17xf32> -> vector<17x17xf32>
    %cst_29 = arith.constant 1.250000e-01 : f32
    %51 = vector.broadcast %cst_29 : f32 to vector<17x17xf32>
    %52 = arith.mulf %50, %51 : vector<17x17xf32>
    %cst_30 = arith.constant dense<0xFF800000> : vector<17xf32>
    %53 = vector.multi_reduction <maximumf>, %52, %cst_30 [1] : vector<17x17xf32> to vector<17xf32>
    %54 = vector.shape_cast %53 : vector<17xf32> to vector<17x1xf32>
    %55 = vector.broadcast %54 : vector<17x1xf32> to vector<17x17xf32>
    %56 = arith.subf %52, %55 : vector<17x17xf32>
    %57 = math.exp %56 : vector<17x17xf32>
    %cst_31 = arith.constant dense<0.000000e+00> : vector<17xf32>
    %58 = vector.multi_reduction <add>, %57, %cst_31 [1] : vector<17x17xf32> to vector<17xf32>
    %59 = vector.shape_cast %58 : vector<17xf32> to vector<17x1xf32>
    %60 = tpu.reciprocal %59 {approx = true} : vector<17x1xf32> -> vector<17x1xf32>
    %61 = vector.broadcast %60 : vector<17x1xf32> to vector<17x17xf32>
    %62 = arith.mulf %57, %61 : vector<17x17xf32>
    %63 = arith.truncf %62 : vector<17x17xf32> to vector<17x17xbf16>
    %cst_32 = arith.constant dense<0.000000e+00> : vector<17x64xf32>
    %64 = tpu.matmul %63, %49, %cst_32 {dimension_numbers = #tpu.dot_dimension_numbers<[1], [0], [0], [1], [0, 0, 1, 1], [], []>} : vector<17x17xbf16>, vector<17x64xbf16>, vector<17x64xf32> -> vector<17x64xf32>
    %65 = arith.truncf %64 : vector<17x64xf32> to vector<17x64xbf16>
    %66 = vector.extract_strided_slice %42 {offsets = [0, 0], sizes = [64, 128], strides = [1, 1]} : vector<128x128xbf16> to vector<64x128xbf16>
    %cst_33 = arith.constant dense<0.000000e+00> : vector<17x128xf32>
    %67 = tpu.matmul %65, %66, %cst_33 {dimension_numbers = #tpu.dot_dimension_numbers<[1], [0], [0], [1], [0, 0, 1, 1], [], []>} : vector<17x64xbf16>, vector<64x128xbf16>, vector<17x128xf32> -> vector<17x128xf32>
    %68 = arith.addf %43, %67 : vector<17x128xf32>
    %69 = vector.extract_strided_slice %40 {offsets = [0, 64], sizes = [17, 64], strides = [1, 1]} : vector<17x384xf32> to vector<17x64xf32>
    %70 = arith.truncf %69 : vector<17x64xf32> to vector<17x64xbf16>
    %71 = vector.extract_strided_slice %40 {offsets = [0, 192], sizes = [17, 64], strides = [1, 1]} : vector<17x384xf32> to vector<17x64xf32>
    %72 = arith.truncf %71 : vector<17x64xf32> to vector<17x64xbf16>
    %73 = vector.extract_strided_slice %40 {offsets = [0, 320], sizes = [17, 64], strides = [1, 1]} : vector<17x384xf32> to vector<17x64xf32>
    %74 = arith.truncf %73 : vector<17x64xf32> to vector<17x64xbf16>
    %cst_34 = arith.constant dense<0.000000e+00> : vector<17x17xf32>
    %75 = tpu.matmul %70, %72, %cst_34 {dimension_numbers = #tpu.dot_dimension_numbers<[1], [1], [0], [0], [0, 0, 1, 0], [], []>} : vector<17x64xbf16>, vector<17x64xbf16>, vector<17x17xf32> -> vector<17x17xf32>
    %cst_35 = arith.constant 1.250000e-01 : f32
    %76 = vector.broadcast %cst_35 : f32 to vector<17x17xf32>
    %77 = arith.mulf %75, %76 : vector<17x17xf32>
    %cst_36 = arith.constant dense<0xFF800000> : vector<17xf32>
    %78 = vector.multi_reduction <maximumf>, %77, %cst_36 [1] : vector<17x17xf32> to vector<17xf32>
    %79 = vector.shape_cast %78 : vector<17xf32> to vector<17x1xf32>
    %80 = vector.broadcast %79 : vector<17x1xf32> to vector<17x17xf32>
    %81 = arith.subf %77, %80 : vector<17x17xf32>
    %82 = math.exp %81 : vector<17x17xf32>
    %cst_37 = arith.constant dense<0.000000e+00> : vector<17xf32>
    %83 = vector.multi_reduction <add>, %82, %cst_37 [1] : vector<17x17xf32> to vector<17xf32>
    %84 = vector.shape_cast %83 : vector<17xf32> to vector<17x1xf32>
    %85 = tpu.reciprocal %84 {approx = true} : vector<17x1xf32> -> vector<17x1xf32>
    %86 = vector.broadcast %85 : vector<17x1xf32> to vector<17x17xf32>
    %87 = arith.mulf %82, %86 : vector<17x17xf32>
    %88 = arith.truncf %87 : vector<17x17xf32> to vector<17x17xbf16>
    %cst_38 = arith.constant dense<0.000000e+00> : vector<17x64xf32>
    %89 = tpu.matmul %88, %74, %cst_38 {dimension_numbers = #tpu.dot_dimension_numbers<[1], [0], [0], [1], [0, 0, 1, 1], [], []>} : vector<17x17xbf16>, vector<17x64xbf16>, vector<17x64xf32> -> vector<17x64xf32>
    %90 = arith.truncf %89 : vector<17x64xf32> to vector<17x64xbf16>
    %91 = vector.extract_strided_slice %42 {offsets = [64, 0], sizes = [64, 128], strides = [1, 1]} : vector<128x128xbf16> to vector<64x128xbf16>
    %cst_39 = arith.constant dense<0.000000e+00> : vector<17x128xf32>
    %92 = tpu.matmul %90, %91, %cst_39 {dimension_numbers = #tpu.dot_dimension_numbers<[1], [0], [0], [1], [0, 0, 1, 1], [], []>} : vector<17x64xbf16>, vector<64x128xbf16>, vector<17x128xf32> -> vector<17x128xf32>
    %93 = arith.addf %68, %92 : vector<17x128xf32>
    %94 = arith.addf %6, %93 : vector<17x128xf32>
    %c0_40 = arith.constant 0 : index
    %c0_41 = arith.constant 0 : index
    %c0_42 = arith.constant 0 : index
    %95 = vector.load %arg9[%c0_40, %c0_41, %c0_42] : memref<2x1x128xf32, #tpu.memory_space<vmem>>, vector<1x1x128xf32>
    %96 = vector.shape_cast %95 : vector<1x1x128xf32> to vector<1x128xf32>
    %97 = vector.broadcast %96 : vector<1x128xf32> to vector<17x128xf32>
    %98 = arith.addf %94, %97 : vector<17x128xf32>
    %c0_43 = arith.constant 0 : index
    %c0_44 = arith.constant 0 : index
    %c0_45 = arith.constant 0 : index
    %99 = vector.load %arg10[%c0_43, %c0_44, %c0_45] : memref<2x1x128xf32, #tpu.memory_space<vmem>>, vector<1x1x128xf32>
    %100 = vector.shape_cast %99 : vector<1x1x128xf32> to vector<1x128xf32>
    %c0_46 = arith.constant 0 : index
    %c0_47 = arith.constant 0 : index
    %c0_48 = arith.constant 0 : index
    %101 = vector.load %arg11[%c0_46, %c0_47, %c0_48] : memref<2x1x128xf32, #tpu.memory_space<vmem>>, vector<1x1x128xf32>
    %102 = vector.shape_cast %101 : vector<1x1x128xf32> to vector<1x128xf32>
    %cst_49 = arith.constant dense<0.000000e+00> : vector<17xf32>
    %103 = vector.multi_reduction <add>, %98, %cst_49 [1] : vector<17x128xf32> to vector<17xf32>
    %104 = vector.shape_cast %103 : vector<17xf32> to vector<17x1xf32>
    %cst_50 = arith.constant 1.280000e+02 : f32
    %105 = vector.broadcast %cst_50 : f32 to vector<17x1xf32>
    %106 = arith.divf %104, %105 : vector<17x1xf32>
    %107 = vector.broadcast %106 : vector<17x1xf32> to vector<17x128xf32>
    %108 = arith.subf %98, %107 : vector<17x128xf32>
    %109 = arith.mulf %108, %108 : vector<17x128xf32>
    %cst_51 = arith.constant dense<0.000000e+00> : vector<17xf32>
    %110 = vector.multi_reduction <add>, %109, %cst_51 [1] : vector<17x128xf32> to vector<17xf32>
    %111 = vector.shape_cast %110 : vector<17xf32> to vector<17x1xf32>
    %cst_52 = arith.constant 1.280000e+02 : f32
    %112 = vector.broadcast %cst_52 : f32 to vector<17x1xf32>
    %113 = arith.divf %111, %112 : vector<17x1xf32>
    %114 = vector.broadcast %106 : vector<17x1xf32> to vector<17x128xf32>
    %115 = arith.subf %98, %114 : vector<17x128xf32>
    %cst_53 = arith.constant 9.99999997E-7 : f32
    %116 = vector.broadcast %cst_53 : f32 to vector<17x1xf32>
    %117 = arith.addf %113, %116 : vector<17x1xf32>
    %118 = math.rsqrt %117 : vector<17x1xf32>
    %119 = vector.broadcast %118 : vector<17x1xf32> to vector<17x128xf32>
    %120 = arith.mulf %115, %119 : vector<17x128xf32>
    %121 = vector.broadcast %100 : vector<1x128xf32> to vector<17x128xf32>
    %122 = arith.mulf %120, %121 : vector<17x128xf32>
    %123 = vector.broadcast %102 : vector<1x128xf32> to vector<17x128xf32>
    %124 = arith.addf %122, %123 : vector<17x128xf32>
    %c0_54 = arith.constant 0 : index
    %c0_55 = arith.constant 0 : index
    %c0_56 = arith.constant 0 : index
    %125 = vector.load %arg12[%c0_54, %c0_55, %c0_56] : memref<2x128x512xbf16, #tpu.memory_space<vmem>>, vector<1x128x512xbf16>
    %126 = vector.shape_cast %125 : vector<1x128x512xbf16> to vector<128x512xbf16>
    %c0_57 = arith.constant 0 : index
    %c0_58 = arith.constant 0 : index
    %c0_59 = arith.constant 0 : index
    %127 = vector.load %arg13[%c0_57, %c0_58, %c0_59] : memref<2x1x512xf32, #tpu.memory_space<vmem>>, vector<1x1x512xf32>
    %128 = vector.shape_cast %127 : vector<1x1x512xf32> to vector<1x512xf32>
    %129 = arith.truncf %124 : vector<17x128xf32> to vector<17x128xbf16>
    %cst_60 = arith.constant dense<0.000000e+00> : vector<17x512xf32>
    %130 = tpu.matmul %129, %126, %cst_60 {dimension_numbers = #tpu.dot_dimension_numbers<[1], [0], [0], [1], [0, 0, 1, 1], [], []>} : vector<17x128xbf16>, vector<128x512xbf16>, vector<17x512xf32> -> vector<17x512xf32>
    %131 = vector.broadcast %128 : vector<1x512xf32> to vector<17x512xf32>
    %132 = arith.addf %130, %131 : vector<17x512xf32>
    %133 = arith.mulf %132, %132 : vector<17x512xf32>
    %134 = arith.mulf %132, %133 : vector<17x512xf32>
    %cst_61 = arith.constant 4.471500e-02 : f32
    %135 = vector.broadcast %cst_61 : f32 to vector<17x512xf32>
    %136 = arith.mulf %135, %134 : vector<17x512xf32>
    %137 = arith.addf %132, %136 : vector<17x512xf32>
    %cst_62 = arith.constant 0.797884583 : f32
    %138 = vector.broadcast %cst_62 : f32 to vector<17x512xf32>
    %139 = arith.mulf %138, %137 : vector<17x512xf32>
    %140 = math.tanh %139 : vector<17x512xf32>
    %cst_63 = arith.constant 1.000000e+00 : f32
    %141 = vector.broadcast %cst_63 : f32 to vector<17x512xf32>
    %142 = arith.addf %141, %140 : vector<17x512xf32>
    %cst_64 = arith.constant 5.000000e-01 : f32
    %143 = vector.broadcast %cst_64 : f32 to vector<17x512xf32>
    %144 = arith.mulf %143, %142 : vector<17x512xf32>
    %145 = arith.mulf %132, %144 : vector<17x512xf32>
    %c0_65 = arith.constant 0 : index
    %c0_66 = arith.constant 0 : index
    %c0_67 = arith.constant 0 : index
    %146 = vector.load %arg14[%c0_65, %c0_66, %c0_67] : memref<2x512x128xbf16, #tpu.memory_space<vmem>>, vector<1x512x128xbf16>
    %147 = vector.shape_cast %146 : vector<1x512x128xbf16> to vector<512x128xbf16>
    %c0_68 = arith.constant 0 : index
    %c0_69 = arith.constant 0 : index
    %c0_70 = arith.constant 0 : index
    %148 = vector.load %arg15[%c0_68, %c0_69, %c0_70] : memref<2x1x128xf32, #tpu.memory_space<vmem>>, vector<1x1x128xf32>
    %149 = vector.shape_cast %148 : vector<1x1x128xf32> to vector<1x128xf32>
    %150 = arith.truncf %145 : vector<17x512xf32> to vector<17x512xbf16>
    %cst_71 = arith.constant dense<0.000000e+00> : vector<17x128xf32>
    %151 = tpu.matmul %150, %147, %cst_71 {dimension_numbers = #tpu.dot_dimension_numbers<[1], [0], [0], [1], [0, 0, 1, 1], [], []>} : vector<17x512xbf16>, vector<512x128xbf16>, vector<17x128xf32> -> vector<17x128xf32>
    %152 = vector.broadcast %149 : vector<1x128xf32> to vector<17x128xf32>
    %153 = arith.addf %151, %152 : vector<17x128xf32>
    %154 = arith.addf %98, %153 : vector<17x128xf32>
    %c1 = arith.constant 1 : index
    %c0_72 = arith.constant 0 : index
    %c0_73 = arith.constant 0 : index
    %155 = vector.load %arg4[%c1, %c0_72, %c0_73] : memref<2x1x128xf32, #tpu.memory_space<vmem>>, vector<1x1x128xf32>
    %156 = vector.shape_cast %155 : vector<1x1x128xf32> to vector<1x128xf32>
    %c1_74 = arith.constant 1 : index
    %c0_75 = arith.constant 0 : index
    %c0_76 = arith.constant 0 : index
    %157 = vector.load %arg5[%c1_74, %c0_75, %c0_76] : memref<2x1x128xf32, #tpu.memory_space<vmem>>, vector<1x1x128xf32>
    %158 = vector.shape_cast %157 : vector<1x1x128xf32> to vector<1x128xf32>
    %cst_77 = arith.constant dense<0.000000e+00> : vector<17xf32>
    %159 = vector.multi_reduction <add>, %154, %cst_77 [1] : vector<17x128xf32> to vector<17xf32>
    %160 = vector.shape_cast %159 : vector<17xf32> to vector<17x1xf32>
    %cst_78 = arith.constant 1.280000e+02 : f32
    %161 = vector.broadcast %cst_78 : f32 to vector<17x1xf32>
    %162 = arith.divf %160, %161 : vector<17x1xf32>
    %163 = vector.broadcast %162 : vector<17x1xf32> to vector<17x128xf32>
    %164 = arith.subf %154, %163 : vector<17x128xf32>
    %165 = arith.mulf %164, %164 : vector<17x128xf32>
    %cst_79 = arith.constant dense<0.000000e+00> : vector<17xf32>
    %166 = vector.multi_reduction <add>, %165, %cst_79 [1] : vector<17x128xf32> to vector<17xf32>
    %167 = vector.shape_cast %166 : vector<17xf32> to vector<17x1xf32>
    %cst_80 = arith.constant 1.280000e+02 : f32
    %168 = vector.broadcast %cst_80 : f32 to vector<17x1xf32>
    %169 = arith.divf %167, %168 : vector<17x1xf32>
    %170 = vector.broadcast %162 : vector<17x1xf32> to vector<17x128xf32>
    %171 = arith.subf %154, %170 : vector<17x128xf32>
    %cst_81 = arith.constant 9.99999997E-7 : f32
    %172 = vector.broadcast %cst_81 : f32 to vector<17x1xf32>
    %173 = arith.addf %169, %172 : vector<17x1xf32>
    %174 = math.rsqrt %173 : vector<17x1xf32>
    %175 = vector.broadcast %174 : vector<17x1xf32> to vector<17x128xf32>
    %176 = arith.mulf %171, %175 : vector<17x128xf32>
    %177 = vector.broadcast %156 : vector<1x128xf32> to vector<17x128xf32>
    %178 = arith.mulf %176, %177 : vector<17x128xf32>
    %179 = vector.broadcast %158 : vector<1x128xf32> to vector<17x128xf32>
    %180 = arith.addf %178, %179 : vector<17x128xf32>
    %c1_82 = arith.constant 1 : index
    %c0_83 = arith.constant 0 : index
    %c0_84 = arith.constant 0 : index
    %181 = vector.load %arg6[%c1_82, %c0_83, %c0_84] : memref<2x128x384xbf16, #tpu.memory_space<vmem>>, vector<1x128x384xbf16>
    %182 = vector.shape_cast %181 : vector<1x128x384xbf16> to vector<128x384xbf16>
    %c1_85 = arith.constant 1 : index
    %c0_86 = arith.constant 0 : index
    %c0_87 = arith.constant 0 : index
    %183 = vector.load %arg7[%c1_85, %c0_86, %c0_87] : memref<2x1x384xf32, #tpu.memory_space<vmem>>, vector<1x1x384xf32>
    %184 = vector.shape_cast %183 : vector<1x1x384xf32> to vector<1x384xf32>
    %185 = arith.truncf %180 : vector<17x128xf32> to vector<17x128xbf16>
    %cst_88 = arith.constant dense<0.000000e+00> : vector<17x384xf32>
    %186 = tpu.matmul %185, %182, %cst_88 {dimension_numbers = #tpu.dot_dimension_numbers<[1], [0], [0], [1], [0, 0, 1, 1], [], []>} : vector<17x128xbf16>, vector<128x384xbf16>, vector<17x384xf32> -> vector<17x384xf32>
    %187 = vector.broadcast %184 : vector<1x384xf32> to vector<17x384xf32>
    %188 = arith.addf %186, %187 : vector<17x384xf32>
    %c1_89 = arith.constant 1 : index
    %c0_90 = arith.constant 0 : index
    %c0_91 = arith.constant 0 : index
    %189 = vector.load %arg8[%c1_89, %c0_90, %c0_91] : memref<2x128x128xbf16, #tpu.memory_space<vmem>>, vector<1x128x128xbf16>
    %190 = vector.shape_cast %189 : vector<1x128x128xbf16> to vector<128x128xbf16>
    %cst_92 = arith.constant 0.000000e+00 : f32
    %191 = vector.broadcast %cst_92 : f32 to vector<17x128xf32>
    %192 = vector.extract_strided_slice %188 {offsets = [0, 0], sizes = [17, 64], strides = [1, 1]} : vector<17x384xf32> to vector<17x64xf32>
    %193 = arith.truncf %192 : vector<17x64xf32> to vector<17x64xbf16>
    %194 = vector.extract_strided_slice %188 {offsets = [0, 128], sizes = [17, 64], strides = [1, 1]} : vector<17x384xf32> to vector<17x64xf32>
    %195 = arith.truncf %194 : vector<17x64xf32> to vector<17x64xbf16>
    %196 = vector.extract_strided_slice %188 {offsets = [0, 256], sizes = [17, 64], strides = [1, 1]} : vector<17x384xf32> to vector<17x64xf32>
    %197 = arith.truncf %196 : vector<17x64xf32> to vector<17x64xbf16>
    %cst_93 = arith.constant dense<0.000000e+00> : vector<17x17xf32>
    %198 = tpu.matmul %193, %195, %cst_93 {dimension_numbers = #tpu.dot_dimension_numbers<[1], [1], [0], [0], [0, 0, 1, 0], [], []>} : vector<17x64xbf16>, vector<17x64xbf16>, vector<17x17xf32> -> vector<17x17xf32>
    %cst_94 = arith.constant 1.250000e-01 : f32
    %199 = vector.broadcast %cst_94 : f32 to vector<17x17xf32>
    %200 = arith.mulf %198, %199 : vector<17x17xf32>
    %cst_95 = arith.constant dense<0xFF800000> : vector<17xf32>
    %201 = vector.multi_reduction <maximumf>, %200, %cst_95 [1] : vector<17x17xf32> to vector<17xf32>
    %202 = vector.shape_cast %201 : vector<17xf32> to vector<17x1xf32>
    %203 = vector.broadcast %202 : vector<17x1xf32> to vector<17x17xf32>
    %204 = arith.subf %200, %203 : vector<17x17xf32>
    %205 = math.exp %204 : vector<17x17xf32>
    %cst_96 = arith.constant dense<0.000000e+00> : vector<17xf32>
    %206 = vector.multi_reduction <add>, %205, %cst_96 [1] : vector<17x17xf32> to vector<17xf32>
    %207 = vector.shape_cast %206 : vector<17xf32> to vector<17x1xf32>
    %208 = tpu.reciprocal %207 {approx = true} : vector<17x1xf32> -> vector<17x1xf32>
    %209 = vector.broadcast %208 : vector<17x1xf32> to vector<17x17xf32>
    %210 = arith.mulf %205, %209 : vector<17x17xf32>
    %211 = arith.truncf %210 : vector<17x17xf32> to vector<17x17xbf16>
    %cst_97 = arith.constant dense<0.000000e+00> : vector<17x64xf32>
    %212 = tpu.matmul %211, %197, %cst_97 {dimension_numbers = #tpu.dot_dimension_numbers<[1], [0], [0], [1], [0, 0, 1, 1], [], []>} : vector<17x17xbf16>, vector<17x64xbf16>, vector<17x64xf32> -> vector<17x64xf32>
    %213 = arith.truncf %212 : vector<17x64xf32> to vector<17x64xbf16>
    %214 = vector.extract_strided_slice %190 {offsets = [0, 0], sizes = [64, 128], strides = [1, 1]} : vector<128x128xbf16> to vector<64x128xbf16>
    %cst_98 = arith.constant dense<0.000000e+00> : vector<17x128xf32>
    %215 = tpu.matmul %213, %214, %cst_98 {dimension_numbers = #tpu.dot_dimension_numbers<[1], [0], [0], [1], [0, 0, 1, 1], [], []>} : vector<17x64xbf16>, vector<64x128xbf16>, vector<17x128xf32> -> vector<17x128xf32>
    %216 = arith.addf %191, %215 : vector<17x128xf32>
    %217 = vector.extract_strided_slice %188 {offsets = [0, 64], sizes = [17, 64], strides = [1, 1]} : vector<17x384xf32> to vector<17x64xf32>
    %218 = arith.truncf %217 : vector<17x64xf32> to vector<17x64xbf16>
    %219 = vector.extract_strided_slice %188 {offsets = [0, 192], sizes = [17, 64], strides = [1, 1]} : vector<17x384xf32> to vector<17x64xf32>
    %220 = arith.truncf %219 : vector<17x64xf32> to vector<17x64xbf16>
    %221 = vector.extract_strided_slice %188 {offsets = [0, 320], sizes = [17, 64], strides = [1, 1]} : vector<17x384xf32> to vector<17x64xf32>
    %222 = arith.truncf %221 : vector<17x64xf32> to vector<17x64xbf16>
    %cst_99 = arith.constant dense<0.000000e+00> : vector<17x17xf32>
    %223 = tpu.matmul %218, %220, %cst_99 {dimension_numbers = #tpu.dot_dimension_numbers<[1], [1], [0], [0], [0, 0, 1, 0], [], []>} : vector<17x64xbf16>, vector<17x64xbf16>, vector<17x17xf32> -> vector<17x17xf32>
    %cst_100 = arith.constant 1.250000e-01 : f32
    %224 = vector.broadcast %cst_100 : f32 to vector<17x17xf32>
    %225 = arith.mulf %223, %224 : vector<17x17xf32>
    %cst_101 = arith.constant dense<0xFF800000> : vector<17xf32>
    %226 = vector.multi_reduction <maximumf>, %225, %cst_101 [1] : vector<17x17xf32> to vector<17xf32>
    %227 = vector.shape_cast %226 : vector<17xf32> to vector<17x1xf32>
    %228 = vector.broadcast %227 : vector<17x1xf32> to vector<17x17xf32>
    %229 = arith.subf %225, %228 : vector<17x17xf32>
    %230 = math.exp %229 : vector<17x17xf32>
    %cst_102 = arith.constant dense<0.000000e+00> : vector<17xf32>
    %231 = vector.multi_reduction <add>, %230, %cst_102 [1] : vector<17x17xf32> to vector<17xf32>
    %232 = vector.shape_cast %231 : vector<17xf32> to vector<17x1xf32>
    %233 = tpu.reciprocal %232 {approx = true} : vector<17x1xf32> -> vector<17x1xf32>
    %234 = vector.broadcast %233 : vector<17x1xf32> to vector<17x17xf32>
    %235 = arith.mulf %230, %234 : vector<17x17xf32>
    %236 = arith.truncf %235 : vector<17x17xf32> to vector<17x17xbf16>
    %cst_103 = arith.constant dense<0.000000e+00> : vector<17x64xf32>
    %237 = tpu.matmul %236, %222, %cst_103 {dimension_numbers = #tpu.dot_dimension_numbers<[1], [0], [0], [1], [0, 0, 1, 1], [], []>} : vector<17x17xbf16>, vector<17x64xbf16>, vector<17x64xf32> -> vector<17x64xf32>
    %238 = arith.truncf %237 : vector<17x64xf32> to vector<17x64xbf16>
    %239 = vector.extract_strided_slice %190 {offsets = [64, 0], sizes = [64, 128], strides = [1, 1]} : vector<128x128xbf16> to vector<64x128xbf16>
    %cst_104 = arith.constant dense<0.000000e+00> : vector<17x128xf32>
    %240 = tpu.matmul %238, %239, %cst_104 {dimension_numbers = #tpu.dot_dimension_numbers<[1], [0], [0], [1], [0, 0, 1, 1], [], []>} : vector<17x64xbf16>, vector<64x128xbf16>, vector<17x128xf32> -> vector<17x128xf32>
    %241 = arith.addf %216, %240 : vector<17x128xf32>
    %242 = arith.addf %154, %241 : vector<17x128xf32>
    %c1_105 = arith.constant 1 : index
    %c0_106 = arith.constant 0 : index
    %c0_107 = arith.constant 0 : index
    %243 = vector.load %arg9[%c1_105, %c0_106, %c0_107] : memref<2x1x128xf32, #tpu.memory_space<vmem>>, vector<1x1x128xf32>
    %244 = vector.shape_cast %243 : vector<1x1x128xf32> to vector<1x128xf32>
    %245 = vector.broadcast %244 : vector<1x128xf32> to vector<17x128xf32>
    %246 = arith.addf %242, %245 : vector<17x128xf32>
    %c1_108 = arith.constant 1 : index
    %c0_109 = arith.constant 0 : index
    %c0_110 = arith.constant 0 : index
    %247 = vector.load %arg10[%c1_108, %c0_109, %c0_110] : memref<2x1x128xf32, #tpu.memory_space<vmem>>, vector<1x1x128xf32>
    %248 = vector.shape_cast %247 : vector<1x1x128xf32> to vector<1x128xf32>
    %c1_111 = arith.constant 1 : index
    %c0_112 = arith.constant 0 : index
    %c0_113 = arith.constant 0 : index
    %249 = vector.load %arg11[%c1_111, %c0_112, %c0_113] : memref<2x1x128xf32, #tpu.memory_space<vmem>>, vector<1x1x128xf32>
    %250 = vector.shape_cast %249 : vector<1x1x128xf32> to vector<1x128xf32>
    %cst_114 = arith.constant dense<0.000000e+00> : vector<17xf32>
    %251 = vector.multi_reduction <add>, %246, %cst_114 [1] : vector<17x128xf32> to vector<17xf32>
    %252 = vector.shape_cast %251 : vector<17xf32> to vector<17x1xf32>
    %cst_115 = arith.constant 1.280000e+02 : f32
    %253 = vector.broadcast %cst_115 : f32 to vector<17x1xf32>
    %254 = arith.divf %252, %253 : vector<17x1xf32>
    %255 = vector.broadcast %254 : vector<17x1xf32> to vector<17x128xf32>
    %256 = arith.subf %246, %255 : vector<17x128xf32>
    %257 = arith.mulf %256, %256 : vector<17x128xf32>
    %cst_116 = arith.constant dense<0.000000e+00> : vector<17xf32>
    %258 = vector.multi_reduction <add>, %257, %cst_116 [1] : vector<17x128xf32> to vector<17xf32>
    %259 = vector.shape_cast %258 : vector<17xf32> to vector<17x1xf32>
    %cst_117 = arith.constant 1.280000e+02 : f32
    %260 = vector.broadcast %cst_117 : f32 to vector<17x1xf32>
    %261 = arith.divf %259, %260 : vector<17x1xf32>
    %262 = vector.broadcast %254 : vector<17x1xf32> to vector<17x128xf32>
    %263 = arith.subf %246, %262 : vector<17x128xf32>
    %cst_118 = arith.constant 9.99999997E-7 : f32
    %264 = vector.broadcast %cst_118 : f32 to vector<17x1xf32>
    %265 = arith.addf %261, %264 : vector<17x1xf32>
    %266 = math.rsqrt %265 : vector<17x1xf32>
    %267 = vector.broadcast %266 : vector<17x1xf32> to vector<17x128xf32>
    %268 = arith.mulf %263, %267 : vector<17x128xf32>
    %269 = vector.broadcast %248 : vector<1x128xf32> to vector<17x128xf32>
    %270 = arith.mulf %268, %269 : vector<17x128xf32>
    %271 = vector.broadcast %250 : vector<1x128xf32> to vector<17x128xf32>
    %272 = arith.addf %270, %271 : vector<17x128xf32>
    %c1_119 = arith.constant 1 : index
    %c0_120 = arith.constant 0 : index
    %c0_121 = arith.constant 0 : index
    %273 = vector.load %arg12[%c1_119, %c0_120, %c0_121] : memref<2x128x512xbf16, #tpu.memory_space<vmem>>, vector<1x128x512xbf16>
    %274 = vector.shape_cast %273 : vector<1x128x512xbf16> to vector<128x512xbf16>
    %c1_122 = arith.constant 1 : index
    %c0_123 = arith.constant 0 : index
    %c0_124 = arith.constant 0 : index
    %275 = vector.load %arg13[%c1_122, %c0_123, %c0_124] : memref<2x1x512xf32, #tpu.memory_space<vmem>>, vector<1x1x512xf32>
    %276 = vector.shape_cast %275 : vector<1x1x512xf32> to vector<1x512xf32>
    %277 = arith.truncf %272 : vector<17x128xf32> to vector<17x128xbf16>
    %cst_125 = arith.constant dense<0.000000e+00> : vector<17x512xf32>
    %278 = tpu.matmul %277, %274, %cst_125 {dimension_numbers = #tpu.dot_dimension_numbers<[1], [0], [0], [1], [0, 0, 1, 1], [], []>} : vector<17x128xbf16>, vector<128x512xbf16>, vector<17x512xf32> -> vector<17x512xf32>
    %279 = vector.broadcast %276 : vector<1x512xf32> to vector<17x512xf32>
    %280 = arith.addf %278, %279 : vector<17x512xf32>
    %281 = arith.mulf %280, %280 : vector<17x512xf32>
    %282 = arith.mulf %280, %281 : vector<17x512xf32>
    %cst_126 = arith.constant 4.471500e-02 : f32
    %283 = vector.broadcast %cst_126 : f32 to vector<17x512xf32>
    %284 = arith.mulf %283, %282 : vector<17x512xf32>
    %285 = arith.addf %280, %284 : vector<17x512xf32>
    %cst_127 = arith.constant 0.797884583 : f32
    %286 = vector.broadcast %cst_127 : f32 to vector<17x512xf32>
    %287 = arith.mulf %286, %285 : vector<17x512xf32>
    %288 = math.tanh %287 : vector<17x512xf32>
    %cst_128 = arith.constant 1.000000e+00 : f32
    %289 = vector.broadcast %cst_128 : f32 to vector<17x512xf32>
    %290 = arith.addf %289, %288 : vector<17x512xf32>
    %cst_129 = arith.constant 5.000000e-01 : f32
    %291 = vector.broadcast %cst_129 : f32 to vector<17x512xf32>
    %292 = arith.mulf %291, %290 : vector<17x512xf32>
    %293 = arith.mulf %280, %292 : vector<17x512xf32>
    %c1_130 = arith.constant 1 : index
    %c0_131 = arith.constant 0 : index
    %c0_132 = arith.constant 0 : index
    %294 = vector.load %arg14[%c1_130, %c0_131, %c0_132] : memref<2x512x128xbf16, #tpu.memory_space<vmem>>, vector<1x512x128xbf16>
    %295 = vector.shape_cast %294 : vector<1x512x128xbf16> to vector<512x128xbf16>
    %c1_133 = arith.constant 1 : index
    %c0_134 = arith.constant 0 : index
    %c0_135 = arith.constant 0 : index
    %296 = vector.load %arg15[%c1_133, %c0_134, %c0_135] : memref<2x1x128xf32, #tpu.memory_space<vmem>>, vector<1x1x128xf32>
    %297 = vector.shape_cast %296 : vector<1x1x128xf32> to vector<1x128xf32>
    %298 = arith.truncf %293 : vector<17x512xf32> to vector<17x512xbf16>
    %cst_136 = arith.constant dense<0.000000e+00> : vector<17x128xf32>
    %299 = tpu.matmul %298, %295, %cst_136 {dimension_numbers = #tpu.dot_dimension_numbers<[1], [0], [0], [1], [0, 0, 1, 1], [], []>} : vector<17x512xbf16>, vector<512x128xbf16>, vector<17x128xf32> -> vector<17x128xf32>
    %300 = vector.broadcast %297 : vector<1x128xf32> to vector<17x128xf32>
    %301 = arith.addf %299, %300 : vector<17x128xf32>
    %302 = arith.addf %246, %301 : vector<17x128xf32>
    %c0_137 = arith.constant 0 : index
    %c0_138 = arith.constant 0 : index
    %303 = vector.load %arg16[%c0_137, %c0_138] : memref<1x128xf32, #tpu.memory_space<vmem>>, vector<1x128xf32>
    %c0_139 = arith.constant 0 : index
    %c0_140 = arith.constant 0 : index
    %304 = vector.load %arg17[%c0_139, %c0_140] : memref<1x128xf32, #tpu.memory_space<vmem>>, vector<1x128xf32>
    %cst_141 = arith.constant dense<0.000000e+00> : vector<17xf32>
    %305 = vector.multi_reduction <add>, %302, %cst_141 [1] : vector<17x128xf32> to vector<17xf32>
    %306 = vector.shape_cast %305 : vector<17xf32> to vector<17x1xf32>
    %cst_142 = arith.constant 1.280000e+02 : f32
    %307 = vector.broadcast %cst_142 : f32 to vector<17x1xf32>
    %308 = arith.divf %306, %307 : vector<17x1xf32>
    %309 = vector.broadcast %308 : vector<17x1xf32> to vector<17x128xf32>
    %310 = arith.subf %302, %309 : vector<17x128xf32>
    %311 = arith.mulf %310, %310 : vector<17x128xf32>
    %cst_143 = arith.constant dense<0.000000e+00> : vector<17xf32>
    %312 = vector.multi_reduction <add>, %311, %cst_143 [1] : vector<17x128xf32> to vector<17xf32>
    %313 = vector.shape_cast %312 : vector<17xf32> to vector<17x1xf32>
    %cst_144 = arith.constant 1.280000e+02 : f32
    %314 = vector.broadcast %cst_144 : f32 to vector<17x1xf32>
    %315 = arith.divf %313, %314 : vector<17x1xf32>
    %316 = vector.broadcast %308 : vector<17x1xf32> to vector<17x128xf32>
    %317 = arith.subf %302, %316 : vector<17x128xf32>
    %cst_145 = arith.constant 9.99999997E-7 : f32
    %318 = vector.broadcast %cst_145 : f32 to vector<17x1xf32>
    %319 = arith.addf %315, %318 : vector<17x1xf32>
    %320 = math.rsqrt %319 : vector<17x1xf32>
    %321 = vector.broadcast %320 : vector<17x1xf32> to vector<17x128xf32>
    %322 = arith.mulf %317, %321 : vector<17x128xf32>
    %323 = vector.broadcast %303 : vector<1x128xf32> to vector<17x128xf32>
    %324 = arith.mulf %322, %323 : vector<17x128xf32>
    %325 = vector.broadcast %304 : vector<1x128xf32> to vector<17x128xf32>
    %326 = arith.addf %324, %325 : vector<17x128xf32>
    %327 = vector.extract_strided_slice %326 {offsets = [0, 0], sizes = [1, 128], strides = [1, 1]} : vector<17x128xf32> to vector<1x128xf32>
    %328 = vector.extract_strided_slice %326 {offsets = [1, 0], sizes = [16, 128], strides = [1, 1]} : vector<17x128xf32> to vector<16x128xf32>
    %cst_146 = arith.constant dense<0.000000e+00> : vector<128xf32>
    %329 = vector.multi_reduction <add>, %328, %cst_146 [0] : vector<16x128xf32> to vector<128xf32>
    %330 = vector.shape_cast %329 : vector<128xf32> to vector<1x128xf32>
    %cst_147 = arith.constant 1.600000e+01 : f32
    %331 = vector.broadcast %cst_147 : f32 to vector<1x128xf32>
    %332 = arith.divf %330, %331 : vector<1x128xf32>
    %c0_148 = arith.constant 0 : index
    %c0_149 = arith.constant 0 : index
    %c0_150 = arith.constant 0 : index
    %333 = vector.load %arg18[%c0_148, %c0_149, %c0_150] : memref<1x1x256xf32, #tpu.memory_space<vmem>>, vector<1x1x128xf32>
    %334 = vector.shape_cast %333 : vector<1x1x128xf32> to vector<1x128xf32>
    %335 = vector.shape_cast %327 : vector<1x128xf32> to vector<1x1x128xf32>
    tpu.vector_store %arg18[%c0_148, %c0_149, %c0_150], %335 {strides = array<i32>} : memref<1x1x256xf32, #tpu.memory_space<vmem>>, vector<1x1x128xf32>,
    %c0_151 = arith.constant 0 : index
    %c0_152 = arith.constant 0 : index
    %c128 = arith.constant 128 : index
    %336 = vector.load %arg18[%c0_151, %c0_152, %c128] : memref<1x1x256xf32, #tpu.memory_space<vmem>>, vector<1x1x128xf32>
    %337 = vector.shape_cast %336 : vector<1x1x128xf32> to vector<1x128xf32>
    %338 = vector.shape_cast %332 : vector<1x128xf32> to vector<1x1x128xf32>
    tpu.vector_store %arg18[%c0_151, %c0_152, %c128], %338 {strides = array<i32>} : memref<1x1x256xf32, #tpu.memory_space<vmem>>, vector<1x1x128xf32>,
    return
  }
  func.func @transform_0(%arg0: i32) -> (i32, i32, i32) {
    %c0_i32 = arith.constant 0 : i32
    %c0_i32_0 = arith.constant 0 : i32
    %c0_i32_1 = arith.constant 0 : i32
    return %arg0, %c0_i32, %c0_i32_0 : i32, i32, i32
  }
  func.func @transform_1(%arg0: i32) -> (i32, i32) {
    %c0_i32 = arith.constant 0 : i32
    %c0_i32_0 = arith.constant 0 : i32
    %c0_i32_1 = arith.constant 0 : i32
    return %c0_i32, %c0_i32_0 : i32, i32
  }
  func.func @transform_2(%arg0: i32) -> (i32, i32) {
    %c0_i32 = arith.constant 0 : i32
    %c0_i32_0 = arith.constant 0 : i32
    %c0_i32_1 = arith.constant 0 : i32
    return %c0_i32, %c0_i32_0 : i32, i32
  }
  func.func @transform_3(%arg0: i32) -> (i32, i32, i32) {
    %c0_i32 = arith.constant 0 : i32
    %c0_i32_0 = arith.constant 0 : i32
    %c0_i32_1 = arith.constant 0 : i32
    %c0_i32_2 = arith.constant 0 : i32
    return %c0_i32, %c0_i32_0, %c0_i32_1 : i32, i32, i32
  }
  func.func @transform_4(%arg0: i32) -> (i32, i32, i32) {
    %c0_i32 = arith.constant 0 : i32
    %c0_i32_0 = arith.constant 0 : i32
    %c0_i32_1 = arith.constant 0 : i32
    %c0_i32_2 = arith.constant 0 : i32
    return %c0_i32, %c0_i32_0, %c0_i32_1 : i32, i32, i32
  }
  func.func @transform_5(%arg0: i32) -> (i32, i32, i32) {
    %c0_i32 = arith.constant 0 : i32
    %c0_i32_0 = arith.constant 0 : i32
    %c0_i32_1 = arith.constant 0 : i32
    %c0_i32_2 = arith.constant 0 : i32
    return %c0_i32, %c0_i32_0, %c0_i32_1 : i32, i32, i32
  }
  func.func @transform_6(%arg0: i32) -> (i32, i32, i32) {
    %c0_i32 = arith.constant 0 : i32
    %c0_i32_0 = arith.constant 0 : i32
    %c0_i32_1 = arith.constant 0 : i32
    %c0_i32_2 = arith.constant 0 : i32
    return %c0_i32, %c0_i32_0, %c0_i32_1 : i32, i32, i32
  }
  func.func @transform_7(%arg0: i32) -> (i32, i32, i32) {
    %c0_i32 = arith.constant 0 : i32
    %c0_i32_0 = arith.constant 0 : i32
    %c0_i32_1 = arith.constant 0 : i32
    %c0_i32_2 = arith.constant 0 : i32
    return %c0_i32, %c0_i32_0, %c0_i32_1 : i32, i32, i32
  }
  func.func @transform_8(%arg0: i32) -> (i32, i32, i32) {
    %c0_i32 = arith.constant 0 : i32
    %c0_i32_0 = arith.constant 0 : i32
    %c0_i32_1 = arith.constant 0 : i32
    %c0_i32_2 = arith.constant 0 : i32
    return %c0_i32, %c0_i32_0, %c0_i32_1 : i32, i32, i32
  }
  func.func @transform_9(%arg0: i32) -> (i32, i32, i32) {
    %c0_i32 = arith.constant 0 : i32
    %c0_i32_0 = arith.constant 0 : i32
    %c0_i32_1 = arith.constant 0 : i32
    %c0_i32_2 = arith.constant 0 : i32
    return %c0_i32, %c0_i32_0, %c0_i32_1 : i32, i32, i32
  }
  func.func @transform_10(%arg0: i32) -> (i32, i32, i32) {
    %c0_i32 = arith.constant 0 : i32
    %c0_i32_0 = arith.constant 0 : i32
    %c0_i32_1 = arith.constant 0 : i32
    %c0_i32_2 = arith.constant 0 : i32
    return %c0_i32, %c0_i32_0, %c0_i32_1 : i32, i32, i32
  }
  func.func @transform_11(%arg0: i32) -> (i32, i32, i32) {
    %c0_i32 = arith.constant 0 : i32
    %c0_i32_0 = arith.constant 0 : i32
    %c0_i32_1 = arith.constant 0 : i32
    %c0_i32_2 = arith.constant 0 : i32
    return %c0_i32, %c0_i32_0, %c0_i32_1 : i32, i32, i32
  }
  func.func @transform_12(%arg0: i32) -> (i32, i32, i32) {
    %c0_i32 = arith.constant 0 : i32
    %c0_i32_0 = arith.constant 0 : i32
    %c0_i32_1 = arith.constant 0 : i32
    %c0_i32_2 = arith.constant 0 : i32
    return %c0_i32, %c0_i32_0, %c0_i32_1 : i32, i32, i32
  }
  func.func @transform_13(%arg0: i32) -> (i32, i32, i32) {
    %c0_i32 = arith.constant 0 : i32
    %c0_i32_0 = arith.constant 0 : i32
    %c0_i32_1 = arith.constant 0 : i32
    %c0_i32_2 = arith.constant 0 : i32
    return %c0_i32, %c0_i32_0, %c0_i32_1 : i32, i32, i32
  }
  func.func @transform_14(%arg0: i32) -> (i32, i32, i32) {
    %c0_i32 = arith.constant 0 : i32
    %c0_i32_0 = arith.constant 0 : i32
    %c0_i32_1 = arith.constant 0 : i32
    %c0_i32_2 = arith.constant 0 : i32
    return %c0_i32, %c0_i32_0, %c0_i32_1 : i32, i32, i32
  }
  func.func @transform_15(%arg0: i32) -> (i32, i32) {
    %c0_i32 = arith.constant 0 : i32
    %c0_i32_0 = arith.constant 0 : i32
    %c0_i32_1 = arith.constant 0 : i32
    return %c0_i32, %c0_i32_0 : i32, i32
  }
  func.func @transform_16(%arg0: i32) -> (i32, i32) {
    %c0_i32 = arith.constant 0 : i32
    %c0_i32_0 = arith.constant 0 : i32
    %c0_i32_1 = arith.constant 0 : i32
    return %c0_i32, %c0_i32_0 : i32, i32
  }
  func.func @transform_17(%arg0: i32) -> (i32, i32, i32) {
    %c0_i32 = arith.constant 0 : i32
    %c0_i32_0 = arith.constant 0 : i32
    %c0_i32_1 = arith.constant 0 : i32
    return %arg0, %c0_i32, %c0_i32_0 : i32, i32, i32
  }
}

</mosaic_0001>

<llo_original>
// kernel: forward.1
$region0: #{forward.1}
  #allocation0 [shape = 'u32[]', space=smem, size = 0x4, offset = 0x4, fixed_abs, tag = 'smem constant byte address 0x4 - core index']
  #allocation1 [shape = 'u32[144,128]{1,0:T(1,128)}', space=vmem, size = 0x12000, scoped, tag = 'internal scratch']
  %s0 = inlined_call_operand.vmem [shape: f32[2,17,128], index: 0, kind: input, shape index: {}]
  %s1 = inlined_call_operand.vmem [shape: bf16[128,128], index: 1, kind: input, shape index: {}]
  %s2 = inlined_call_operand.vmem [shape: f32[17,128], index: 2, kind: input, shape index: {}]
  %s3 = inlined_call_operand.vmem [shape: f32[2,1,128], index: 3, kind: input, shape index: {}]
  %s4 = inlined_call_operand.vmem [shape: f32[2,1,128], index: 4, kind: input, shape index: {}]
  %s5 = inlined_call_operand.vmem [shape: bf16[2,128,384], index: 5, kind: input, shape index: {}]
  %s6 = inlined_call_operand.vmem [shape: f32[2,1,384], index: 6, kind: input, shape index: {}]
  %s7 = inlined_call_operand.vmem [shape: bf16[2,128,128], index: 7, kind: input, shape index: {}]
  %s8 = inlined_call_operand.vmem [shape: f32[2,1,128], index: 8, kind: input, shape index: {}]
  %s9 = inlined_call_operand.vmem [shape: f32[2,1,128], index: 9, kind: input, shape index: {}]
  %s10 = inlined_call_operand.vmem [shape: f32[2,1,128], index: 10, kind: input, shape index: {}]
  %s11 = inlined_call_operand.vmem [shape: bf16[2,128,512], index: 11, kind: input, shape index: {}]
  %s12 = inlined_call_operand.vmem [shape: f32[2,1,512], index: 12, kind: input, shape index: {}]
  %s13 = inlined_call_operand.vmem [shape: bf16[2,512,128], index: 13, kind: input, shape index: {}]
  %s14 = inlined_call_operand.vmem [shape: f32[2,1,128], index: 14, kind: input, shape index: {}]
  %s15 = inlined_call_operand.vmem [shape: f32[1,128], index: 15, kind: input, shape index: {}]
  %s16 = inlined_call_operand.vmem [shape: f32[1,128], index: 16, kind: input, shape index: {}]
  %s17 = inlined_call_operand.vmem [shape: f32[2,1,256], index: 17, kind: output, shape index: {}]
  %s18 = sld [smem:[#allocation0]]
  $region101: #{forward.1} parent=0
    _
  %s20 = ssub.s32 1, %s18
  %s21 = scalar_select 0, %s20, %s18
  loop: start=0, step=1, limit=4
  $region2: #{forward.1} parent=0 // loop_pre_header
    _
  $region3: #{forward.1} parent=0 // loop_header
    %s23 = sphi 0, %s27
    %p24 = scmp.ge.s32.totalorder %s23, 4
    %s33 = sphi 0, %s35
    %s36 = sphi 0, %s33
    %s37 = sphi 0, %s36
    %s53 = sphi 0, %s37
    %s57 = sphi 0, %s57
    %s59 = sphi 0, %s57
    %s60 = sphi 0, %s59
    %s74 = sphi 0, %s60
    %s78 = sphi 0, %s78
    %s80 = sphi 0, %s78
    %s81 = sphi 0, %s80
    %s95 = sphi 0, %s81
    %s99 = sphi 0, %s99
    %s101 = sphi 0, %s99
    %s102 = sphi 0, %s101
    %s116 = sphi 0, %s102
    %s120 = sphi 0, %s120
    %s122 = sphi 0, %s120
    %s123 = sphi 0, %s122
    %s137 = sphi 0, %s123
    %s141 = sphi 0, %s141
    %s143 = sphi 0, %s141
    %s144 = sphi 0, %s143
    %s158 = sphi 0, %s144
    %s162 = sphi 0, %s162
    %s164 = sphi 0, %s162
    %s165 = sphi 0, %s164
    %s179 = sphi 0, %s165
    %s183 = sphi 0, %s183
    %s185 = sphi 0, %s183
    %s186 = sphi 0, %s185
    %s200 = sphi 0, %s186
    %s204 = sphi 0, %s204
    %s206 = sphi 0, %s204
    %s207 = sphi 0, %s206
    %s221 = sphi 0, %s207
    %s225 = sphi 0, %s225
    %s227 = sphi 0, %s225
    %s228 = sphi 0, %s227
    %s242 = sphi 0, %s228
    %s246 = sphi 0, %s246
    %s248 = sphi 0, %s246
    %s249 = sphi 0, %s248
    %s263 = sphi 0, %s249
    %s267 = sphi 0, %s267
    %s269 = sphi 0, %s267
    %s270 = sphi 0, %s269
    %s284 = sphi 0, %s270
    %s288 = sphi 0, %s288
    %s290 = sphi 0, %s288
    %s291 = sphi 0, %s290
    %s305 = sphi 0, %s291
    %s309 = sphi 0, %s309
    %s311 = sphi 0, %s309
    %s312 = sphi 0, %s311
    %s326 = sphi 0, %s312
    %s330 = sphi 0, %s330
    %s332 = sphi 0, %s330
    %s333 = sphi 0, %s332
    %s347 = sphi 0, %s333
    %s351 = sphi 0, %s351
    %s353 = sphi 0, %s351
    %s354 = sphi 0, %s353
    %s368 = sphi 0, %s354
    %s372 = sphi 0, %s372
    %s374 = sphi 0, %s372
    %s375 = sphi 0, %s374
    %s389 = sphi 0, %s375
    %s395 = sphi 0, %s397
    %s398 = sphi 0, %s395
    %s399 = sphi 0, %s398
    %s415 = sphi 0, %s399
  $region4: #{forward.1} parent=0 // loop_header_branch
    %26 = sbr.rel (%p24) target = $region8
  $region5: #{forward.1} parent=0 // loop_body
    %s28 = ssub.s32 %s23, 1
    %s29 = ssub.s32 %s23, 2
    %s30 = sadd.s32 %s23, 1
    %s31 = ssub.s32 %s23, %s30
    %p32 = scmp.eq.s32.totalorder %s31, 0
    %s34 = sadd.s32 %s33, 1
    %s35 = scalar_select %p32, %s33, %s34
    %p38 = pneg %p32
    %p39 = scmp.eq.s32.totalorder %s23, 1
    %p40 = por %p38, %p39
    %p41 = scmp.ne.s32.totalorder %s33, %s36
    %p42 = scmp.eq.s32.totalorder %s23, 0
    %p43 = por %p41, %p42
    %p44 = scmp.ne.s32.totalorder %s33, %s36
    %p45 = scmp.eq.s32.totalorder %s28, 1
    %p46 = por %p44, %p45
    %p47 = scmp.ne.s32.totalorder %s36, %s37
    %p48 = scmp.eq.s32.totalorder %s28, 0
    %p49 = por %p47, %p48
    %p50 = scmp.ne.s32.totalorder %s36, %s37
    %p51 = scmp.eq.s32.totalorder %s29, 1
    %p52 = por %p50, %p51
    %p54 = scmp.ne.s32.totalorder %s37, %s53
    %p55 = scmp.eq.s32.totalorder %s29, 0
    %p56 = por %p54, %p55
    %s58 = sadd.s32 %s57, 1
    %p61 = scmp.eq.s32.totalorder %s23, 1
    %p62 = scmp.ne.s32.totalorder %s57, %s59
    %p63 = scmp.eq.s32.totalorder %s23, 0
    %p64 = por %p62, %p63
    %p65 = scmp.ne.s32.totalorder %s57, %s59
    %p66 = scmp.eq.s32.totalorder %s28, 1
    %p67 = por %p65, %p66
    %p68 = scmp.ne.s32.totalorder %s59, %s60
    %p69 = scmp.eq.s32.totalorder %s28, 0
    %p70 = por %p68, %p69
    %p71 = scmp.ne.s32.totalorder %s59, %s60
    %p72 = scmp.eq.s32.totalorder %s29, 1
    %p73 = por %p71, %p72
    %p75 = scmp.ne.s32.totalorder %s60, %s74
    %p76 = scmp.eq.s32.totalorder %s29, 0
    %p77 = por %p75, %p76
    %s79 = sadd.s32 %s78, 1
    %p82 = scmp.eq.s32.totalorder %s23, 1
    %p83 = scmp.ne.s32.totalorder %s78, %s80
    %p84 = scmp.eq.s32.totalorder %s23, 0
    %p85 = por %p83, %p84
    %p86 = scmp.ne.s32.totalorder %s78, %s80
    %p87 = scmp.eq.s32.totalorder %s28, 1
    %p88 = por %p86, %p87
    %p89 = scmp.ne.s32.totalorder %s80, %s81
    %p90 = scmp.eq.s32.totalorder %s28, 0
    %p91 = por %p89, %p90
    %p92 = scmp.ne.s32.totalorder %s80, %s81
    %p93 = scmp.eq.s32.totalorder %s29, 1
    %p94 = por %p92, %p93
    %p96 = scmp.ne.s32.totalorder %s81, %s95
    %p97 = scmp.eq.s32.totalorder %s29, 0
    %p98 = por %p96, %p97
    %s100 = sadd.s32 %s99, 1
    %p103 = scmp.eq.s32.totalorder %s23, 1
    %p104 = scmp.ne.s32.totalorder %s99, %s101
    %p105 = scmp.eq.s32.totalorder %s23, 0
    %p106 = por %p104, %p105
    %p107 = scmp.ne.s32.totalorder %s99, %s101
    %p108 = scmp.eq.s32.totalorder %s28, 1
    %p109 = por %p107, %p108
    %p110 = scmp.ne.s32.totalorder %s101, %s102
    %p111 = scmp.eq.s32.totalorder %s28, 0
    %p112 = por %p110, %p111
    %p113 = scmp.ne.s32.totalorder %s101, %s102
    %p114 = scmp.eq.s32.totalorder %s29, 1
    %p115 = por %p113, %p114
    %p117 = scmp.ne.s32.totalorder %s102, %s116
    %p118 = scmp.eq.s32.totalorder %s29, 0
    %p119 = por %p117, %p118
    %s121 = sadd.s32 %s120, 1
    %p124 = scmp.eq.s32.totalorder %s23, 1
    %p125 = scmp.ne.s32.totalorder %s120, %s122
    %p126 = scmp.eq.s32.totalorder %s23, 0
    %p127 = por %p125, %p126
    %p128 = scmp.ne.s32.totalorder %s120, %s122
    %p129 = scmp.eq.s32.totalorder %s28, 1
    %p130 = por %p128, %p129
    %p131 = scmp.ne.s32.totalorder %s122, %s123
    %p132 = scmp.eq.s32.totalorder %s28, 0
    %p133 = por %p131, %p132
    %p134 = scmp.ne.s32.totalorder %s122, %s123
    %p135 = scmp.eq.s32.totalorder %s29, 1
    %p136 = por %p134, %p135
    %p138 = scmp.ne.s32.totalorder %s123, %s137
    %p139 = scmp.eq.s32.totalorder %s29, 0
    %p140 = por %p138, %p139
    %s142 = sadd.s32 %s141, 1
    %p145 = scmp.eq.s32.totalorder %s23, 1
    %p146 = scmp.ne.s32.totalorder %s141, %s143
    %p147 = scmp.eq.s32.totalorder %s23, 0
    %p148 = por %p146, %p147
    %p149 = scmp.ne.s32.totalorder %s141, %s143
    %p150 = scmp.eq.s32.totalorder %s28, 1
    %p151 = por %p149, %p150
    %p152 = scmp.ne.s32.totalorder %s143, %s144
    %p153 = scmp.eq.s32.totalorder %s28, 0
    %p154 = por %p152, %p153
    %p155 = scmp.ne.s32.totalorder %s143, %s144
    %p156 = scmp.eq.s32.totalorder %s29, 1
    %p157 = por %p155, %p156
    %p159 = scmp.ne.s32.totalorder %s144, %s158
    %p160 = scmp.eq.s32.totalorder %s29, 0
    %p161 = por %p159, %p160
    %s163 = sadd.s32 %s162, 1
    %p166 = scmp.eq.s32.totalorder %s23, 1
    %p167 = scmp.ne.s32.totalorder %s162, %s164
    %p168 = scmp.eq.s32.totalorder %s23, 0
    %p169 = por %p167, %p168
    %p170 = scmp.ne.s32.totalorder %s162, %s164
    %p171 = scmp.eq.s32.totalorder %s28, 1
    %p172 = por %p170, %p171
    %p173 = scmp.ne.s32.totalorder %s164, %s165
    %p174 = scmp.eq.s32.totalorder %s28, 0
    %p175 = por %p173, %p174
    %p176 = scmp.ne.s32.totalorder %s164, %s165
    %p177 = scmp.eq.s32.totalorder %s29, 1
    %p178 = por %p176, %p177
    %p180 = scmp.ne.s32.totalorder %s165, %s179
    %p181 = scmp.eq.s32.totalorder %s29, 0
    %p182 = por %p180, %p181
    %s184 = sadd.s32 %s183, 1
    %p187 = scmp.eq.s32.totalorder %s23, 1
    %p188 = scmp.ne.s32.totalorder %s183, %s185
    %p189 = scmp.eq.s32.totalorder %s23, 0
    %p190 = por %p188, %p189
    %p191 = scmp.ne.s32.totalorder %s183, %s185
    %p192 = scmp.eq.s32.totalorder %s28, 1
    %p193 = por %p191, %p192
    %p194 = scmp.ne.s32.totalorder %s185, %s186
    %p195 = scmp.eq.s32.totalorder %s28, 0
    %p196 = por %p194, %p195
    %p197 = scmp.ne.s32.totalorder %s185, %s186
    %p198 = scmp.eq.s32.totalorder %s29, 1
    %p199 = por %p197, %p198
    %p201 = scmp.ne.s32.totalorder %s186, %s200
    %p202 = scmp.eq.s32.totalorder %s29, 0
    %p203 = por %p201, %p202
    %s205 = sadd.s32 %s204, 1
    %p208 = scmp.eq.s32.totalorder %s23, 1
    %p209 = scmp.ne.s32.totalorder %s204, %s206
    %p210 = scmp.eq.s32.totalorder %s23, 0
    %p211 = por %p209, %p210
    %p212 = scmp.ne.s32.totalorder %s204, %s206
    %p213 = scmp.eq.s32.totalorder %s28, 1
    %p214 = por %p212, %p213
    %p215 = scmp.ne.s32.totalorder %s206, %s207
    %p216 = scmp.eq.s32.totalorder %s28, 0
    %p217 = por %p215, %p216
    %p218 = scmp.ne.s32.totalorder %s206, %s207
    %p219 = scmp.eq.s32.totalorder %s29, 1
    %p220 = por %p218, %p219
    %p222 = scmp.ne.s32.totalorder %s207, %s221
    %p223 = scmp.eq.s32.totalorder %s29, 0
    %p224 = por %p222, %p223
    %s226 = sadd.s32 %s225, 1
    %p229 = scmp.eq.s32.totalorder %s23, 1
    %p230 = scmp.ne.s32.totalorder %s225, %s227
    %p231 = scmp.eq.s32.totalorder %s23, 0
    %p232 = por %p230, %p231
    %p233 = scmp.ne.s32.totalorder %s225, %s227
    %p234 = scmp.eq.s32.totalorder %s28, 1
    %p235 = por %p233, %p234
    %p236 = scmp.ne.s32.totalorder %s227, %s228
    %p237 = scmp.eq.s32.totalorder %s28, 0
    %p238 = por %p236, %p237
    %p239 = scmp.ne.s32.totalorder %s227, %s228
    %p240 = scmp.eq.s32.totalorder %s29, 1
    %p241 = por %p239, %p240
    %p243 = scmp.ne.s32.totalorder %s228, %s242
    %p244 = scmp.eq.s32.totalorder %s29, 0
    %p245 = por %p243, %p244
    %s247 = sadd.s32 %s246, 1
    %p250 = scmp.eq.s32.totalorder %s23, 1
    %p251 = scmp.ne.s32.totalorder %s246, %s248
    %p252 = scmp.eq.s32.totalorder %s23, 0
    %p253 = por %p251, %p252
    %p254 = scmp.ne.s32.totalorder %s246, %s248
    %p255 = scmp.eq.s32.totalorder %s28, 1
    %p256 = por %p254, %p255
    %p257 = scmp.ne.s32.totalorder %s248, %s249
    %p258 = scmp.eq.s32.totalorder %s28, 0
    %p259 = por %p257, %p258
    %p260 = scmp.ne.s32.totalorder %s248, %s249
    %p261 = scmp.eq.s32.totalorder %s29, 1
    %p262 = por %p260, %p261
    %p264 = scmp.ne.s32.totalorder %s249, %s263
    %p265 = scmp.eq.s32.totalorder %s29, 0
    %p266 = por %p264, %p265
    %s268 = sadd.s32 %s267, 1
    %p271 = scmp.eq.s32.totalorder %s23, 1
    %p272 = scmp.ne.s32.totalorder %s267, %s269
    %p273 = scmp.eq.s32.totalorder %s23, 0
    %p274 = por %p272, %p273
    %p275 = scmp.ne.s32.totalorder %s267, %s269
    %p276 = scmp.eq.s32.totalorder %s28, 1
    %p277 = por %p275, %p276
    %p278 = scmp.ne.s32.totalorder %s269, %s270
    %p279 = scmp.eq.s32.totalorder %s28, 0
    %p280 = por %p278, %p279
    %p281 = scmp.ne.s32.totalorder %s269, %s270
    %p282 = scmp.eq.s32.totalorder %s29, 1
    %p283 = por %p281, %p282
    %p285 = scmp.ne.s32.totalorder %s270, %s284
    %p286 = scmp.eq.s32.totalorder %s29, 0
    %p287 = por %p285, %p286
    %s289 = sadd.s32 %s288, 1
    %p292 = scmp.eq.s32.totalorder %s23, 1
    %p293 = scmp.ne.s32.totalorder %s288, %s290
    %p294 = scmp.eq.s32.totalorder %s23, 0
    %p295 = por %p293, %p294
    %p296 = scmp.ne.s32.totalorder %s288, %s290
    %p297 = scmp.eq.s32.totalorder %s28, 1
    %p298 = por %p296, %p297
    %p299 = scmp.ne.s32.totalorder %s290, %s291
    %p300 = scmp.eq.s32.totalorder %s28, 0
    %p301 = por %p299, %p300
    %p302 = scmp.ne.s32.totalorder %s290, %s291
    %p303 = scmp.eq.s32.totalorder %s29, 1
    %p304 = por %p302, %p303
    %p306 = scmp.ne.s32.totalorder %s291, %s305
    %p307 = scmp.eq.s32.totalorder %s29, 0
    %p308 = por %p306, %p307
    %s310 = sadd.s32 %s309, 1
    %p313 = scmp.eq.s32.totalorder %s23, 1
    %p314 = scmp.ne.s32.totalorder %s309, %s311
    %p315 = scmp.eq.s32.totalorder %s23, 0
    %p316 = por %p314, %p315
    %p317 = scmp.ne.s32.totalorder %s309, %s311
    %p318 = scmp.eq.s32.totalorder %s28, 1
    %p319 = por %p317, %p318
    %p320 = scmp.ne.s32.totalorder %s311, %s312
    %p321 = scmp.eq.s32.totalorder %s28, 0
    %p322 = por %p320, %p321
    %p323 = scmp.ne.s32.totalorder %s311, %s312
    %p324 = scmp.eq.s32.totalorder %s29, 1
    %p325 = por %p323, %p324
    %p327 = scmp.ne.s32.totalorder %s312, %s326
    %p328 = scmp.eq.s32.totalorder %s29, 0
    %p329 = por %p327, %p328
    %s331 = sadd.s32 %s330, 1
    %p334 = scmp.eq.s32.totalorder %s23, 1
    %p335 = scmp.ne.s32.totalorder %s330, %s332
    %p336 = scmp.eq.s32.totalorder %s23, 0
    %p337 = por %p335, %p336
    %p338 = scmp.ne.s32.totalorder %s330, %s332
    %p339 = scmp.eq.s32.totalorder %s28, 1
    %p340 = por %p338, %p339
    %p341 = scmp.ne.s32.totalorder %s332, %s333
    %p342 = scmp.eq.s32.totalorder %s28, 0
    %p343 = por %p341, %p342
    %p344 = scmp.ne.s32.totalorder %s332, %s333
    %p345 = scmp.eq.s32.totalorder %s29, 1
    %p346 = por %p344, %p345
    %p348 = scmp.ne.s32.totalorder %s333, %s347
    %p349 = scmp.eq.s32.totalorder %s29, 0
    %p350 = por %p348, %p349
    %s352 = sadd.s32 %s351, 1
    %p355 = scmp.eq.s32.totalorder %s23, 1
    %p356 = scmp.ne.s32.totalorder %s351, %s353
    %p357 = scmp.eq.s32.totalorder %s23, 0
    %p358 = por %p356, %p357
    %p359 = scmp.ne.s32.totalorder %s351, %s353
    %p360 = scmp.eq.s32.totalorder %s28, 1
    %p361 = por %p359, %p360
    %p362 = scmp.ne.s32.totalorder %s353, %s354
    %p363 = scmp.eq.s32.totalorder %s28, 0
    %p364 = por %p362, %p363
    %p365 = scmp.ne.s32.totalorder %s353, %s354
    %p366 = scmp.eq.s32.totalorder %s29, 1
    %p367 = por %p365, %p366
    %p369 = scmp.ne.s32.totalorder %s354, %s368
    %p370 = scmp.eq.s32.totalorder %s29, 0
    %p371 = por %p369, %p370
    %s373 = sadd.s32 %s372, 1
    %p376 = scmp.eq.s32.totalorder %s23, 1
    %p377 = scmp.ne.s32.totalorder %s372, %s374
    %p378 = scmp.eq.s32.totalorder %s23, 0
    %p379 = por %p377, %p378
    %p380 = scmp.ne.s32.totalorder %s372, %s374
    %p381 = scmp.eq.s32.totalorder %s28, 1
    %p382 = por %p380, %p381
    %p383 = scmp.ne.s32.totalorder %s374, %s375
    %p384 = scmp.eq.s32.totalorder %s28, 0
    %p385 = por %p383, %p384
    %p386 = scmp.ne.s32.totalorder %s374, %s375
    %p387 = scmp.eq.s32.totalorder %s29, 1
    %p388 = por %p386, %p387
    %p390 = scmp.ne.s32.totalorder %s375, %s389
    %p391 = scmp.eq.s32.totalorder %s29, 0
    %p392 = por %p390, %p391
    %s393 = ssub.s32 %s23, %s30
    %p394 = scmp.eq.s32.totalorder %s393, 0
    %s396 = sadd.s32 %s395, 1
    %s397 = scalar_select %p394, %s395, %s396
    %p400 = pneg %p394
    %p401 = scmp.eq.s32.totalorder %s23, 1
    %p402 = por %p400, %p401
    %p403 = scmp.ne.s32.totalorder %s395, %s398
    %p404 = scmp.eq.s32.totalorder %s23, 0
    %p405 = por %p403, %p404
    %p406 = scmp.ne.s32.totalorder %s395, %s398
    %p407 = scmp.eq.s32.totalorder %s28, 1
    %p408 = por %p406, %p407
    %p409 = scmp.ne.s32.totalorder %s398, %s399
    %p410 = scmp.eq.s32.totalorder %s28, 0
    %p411 = por %p409, %p410
    %p412 = scmp.ne.s32.totalorder %s398, %s399
    %p413 = scmp.eq.s32.totalorder %s29, 1
    %p414 = por %p412, %p413
    %p416 = scmp.ne.s32.totalorder %s399, %s415
    %p417 = scmp.eq.s32.totalorder %s29, 0
    %p418 = por %p416, %p417
    %p419 = scmp.le.s32.totalorder 1, %s23
    %p420 = scmp.lt.s32.totalorder %s23, 3
    %p421 = pnand %p419, %p420
    %p422 = pneg %p421
    // Predicated region
    $region9: #{forward.1} parent=5 // pred_check
      _
    $region10: #{forward.1} parent=5 // pred_check_branch
      %424 = sbr.rel (%p421) target = $region12
    $region11: #{forward.1} parent=5 // pred_region
      %s425 = ssub.s32 %s23, 1
      // Predicated region
      $region13: #{forward.1} parent=11 // pred_check
        %p426 = pneg %p70
      $region14: #{forward.1} parent=11 // pred_check_branch
        %428 = sbr.rel (%p426) target = $region16
      $region15: #{forward.1} parent=11 // pred_region
        _
      $region16: #{forward.1} parent=11 // pred_fallthru
        _
      // Predicated region
      $region17: #{forward.1} parent=11 // pred_check
        %p429 = pneg %p91
      $region18: #{forward.1} parent=11 // pred_check_branch
        %431 = sbr.rel (%p429) target = $region20
      $region19: #{forward.1} parent=11 // pred_region
        _
      $region20: #{forward.1} parent=11 // pred_fallthru
        _
      // Predicated region
      $region21: #{forward.1} parent=11 // pred_check
        %p432 = pneg %p112
      $region22: #{forward.1} parent=11 // pred_check_branch
        %434 = sbr.rel (%p432) target = $region24
      $region23: #{forward.1} parent=11 // pred_region
        _
      $region24: #{forward.1} parent=11 // pred_fallthru
        _
      // Predicated region
      $region25: #{forward.1} parent=11 // pred_check
        %p435 = pneg %p133
      $region26: #{forward.1} parent=11 // pred_check_branch
        %437 = sbr.rel (%p435) target = $region28
      $region27: #{forward.1} parent=11 // pred_region
        _
      $region28: #{forward.1} parent=11 // pred_fallthru
        _
      // Predicated region
      $region29: #{forward.1} parent=11 // pred_check
        %p438 = pneg %p154
      $region30: #{forward.1} parent=11 // pred_check_branch
        %440 = sbr.rel (%p438) target = $region32
      $region31: #{forward.1} parent=11 // pred_region
        _
      $region32: #{forward.1} parent=11 // pred_fallthru
        _
      // Predicated region
      $region33: #{forward.1} parent=11 // pred_check
        %p441 = pneg %p175
      $region34: #{forward.1} parent=11 // pred_check_branch
        %443 = sbr.rel (%p441) target = $region36
      $region35: #{forward.1} parent=11 // pred_region
        _
      $region36: #{forward.1} parent=11 // pred_fallthru
        _
      // Predicated region
      $region37: #{forward.1} parent=11 // pred_check
        %p444 = pneg %p196
      $region38: #{forward.1} parent=11 // pred_check_branch
        %446 = sbr.rel (%p444) target = $region40
      $region39: #{forward.1} parent=11 // pred_region
        _
      $region40: #{forward.1} parent=11 // pred_fallthru
        _
      // Predicated region
      $region41: #{forward.1} parent=11 // pred_check
        %p447 = pneg %p217
      $region42: #{forward.1} parent=11 // pred_check_branch
        %449 = sbr.rel (%p447) target = $region44
      $region43: #{forward.1} parent=11 // pred_region
        _
      $region44: #{forward.1} parent=11 // pred_fallthru
        _
      // Predicated region
      $region45: #{forward.1} parent=11 // pred_check
        %p450 = pneg %p238
      $region46: #{forward.1} parent=11 // pred_check_branch
        %452 = sbr.rel (%p450) target = $region48
      $region47: #{forward.1} parent=11 // pred_region
        _
      $region48: #{forward.1} parent=11 // pred_fallthru
        _
      // Predicated region
      $region49: #{forward.1} parent=11 // pred_check
        %p453 = pneg %p259
      $region50: #{forward.1} parent=11 // pred_check_branch
        %455 = sbr.rel (%p453) target = $region52
      $region51: #{forward.1} parent=11 // pred_region
        _
      $region52: #{forward.1} parent=11 // pred_fallthru
        _
      // Predicated region
      $region53: #{forward.1} parent=11 // pred_check
        %p456 = pneg %p280
      $region54: #{forward.1} parent=11 // pred_check_branch
        %458 = sbr.rel (%p456) target = $region56
      $region55: #{forward.1} parent=11 // pred_region
        _
      $region56: #{forward.1} parent=11 // pred_fallthru
        _
      // Predicated region
      $region57: #{forward.1} parent=11 // pred_check
        %p459 = pneg %p301
      $region58: #{forward.1} parent=11 // pred_check_branch
        %461 = sbr.rel (%p459) target = $region60
      $region59: #{forward.1} parent=11 // pred_region
        _
      $region60: #{forward.1} parent=11 // pred_fallthru
        _
      // Predicated region
      $region61: #{forward.1} parent=11 // pred_check
        %p462 = pneg %p322
      $region62: #{forward.1} parent=11 // pred_check_branch
        %464 = sbr.rel (%p462) target = $region64
      $region63: #{forward.1} parent=11 // pred_region
        _
      $region64: #{forward.1} parent=11 // pred_fallthru
        _
      // Predicated region
      $region65: #{forward.1} parent=11 // pred_check
        %p465 = pneg %p343
      $region66: #{forward.1} parent=11 // pred_check_branch
        %467 = sbr.rel (%p465) target = $region68
      $region67: #{forward.1} parent=11 // pred_region
        _
      $region68: #{forward.1} parent=11 // pred_fallthru
        _
      // Predicated region
      $region69: #{forward.1} parent=11 // pred_check
        %p468 = pneg %p364
      $region70: #{forward.1} parent=11 // pred_check_branch
        %470 = sbr.rel (%p468) target = $region72
      $region71: #{forward.1} parent=11 // pred_region
        _
      $region72: #{forward.1} parent=11 // pred_fallthru
        _
      // Predicated region
      $region73: #{forward.1} parent=11 // pred_check
        %p471 = pneg %p385
      $region74: #{forward.1} parent=11 // pred_check_branch
        %473 = sbr.rel (%p471) target = $region76
      $region75: #{forward.1} parent=11 // pred_region
        _
      $region76: #{forward.1} parent=11 // pred_fallthru
        _
    $region12: #{forward.1} parent=5 // pred_fallthru
      _
    %p474 = scmp.lt.s32.totalorder %s23, 2
    // Predicated region
    $region77: #{forward.1} parent=5 // pred_check
      %p475 = pneg %p474
    $region78: #{forward.1} parent=5 // pred_check_branch
      %477 = sbr.rel (%p475) target = $region80
    $region79: #{forward.1} parent=5 // pred_region
      // Predicated region
      $region81: #{forward.1} parent=79 // pred_check
        %p478 = pneg %p43
      $region82: #{forward.1} parent=79 // pred_check_branch
        %480 = sbr.rel (%p478) target = $region84
      $region83: #{forward.1} parent=79 // pred_region
        %p481 = scmp.lt.s32.totalorder %s23, 1
        %s482 = scalar_select %p481, %s23, 1
        %s483 = smul.addr %s482, 3
        %s484 = smul.addr %s483, 8
        %s485 = scalar_lea.vmem %s0, %s484
      $region84: #{forward.1} parent=79 // pred_fallthru
        _
    $region80: #{forward.1} parent=5 // pred_fallthru
      _
    %p486 = scmp.le.s32.totalorder 1, %s23
    %p487 = scmp.lt.s32.totalorder %s23, 3
    %p488 = pnand %p486, %p487
    %p489 = pneg %p488
    // Predicated region
    $region85: #{forward.1} parent=5 // pred_check
      _
    $region86: #{forward.1} parent=5 // pred_check_branch
      %491 = sbr.rel (%p488) target = $region88
    $region87: #{forward.1} parent=5 // pred_region
      %s492 = ssub.s32 %s23, 1
      %p493 = scmp.lt.s32.totalorder %s28, 1
      %s494 = scalar_select %p493, %s28, 1
      %s495 = smul.addr %s494, 3
      %s496 = smul.addr %s495, 8
      %s497 = scalar_lea.vmem %s0, %s496
      %p498 = pneg %p49
      %p499 = pneg %p46
      %p500 = pneg %p70
      %p501 = pneg %p67
      %p502 = pneg %p91
      %p503 = pneg %p88
      %p504 = pneg %p112
      %p505 = pneg %p109
      %p506 = pneg %p133
      %p507 = pneg %p130
      %p508 = pneg %p154
      %p509 = pneg %p151
      %p510 = pneg %p175
      %p511 = pneg %p172
      %p512 = pneg %p196
      %p513 = pneg %p193
      %p514 = pneg %p217
      %p515 = pneg %p214
      %p516 = pneg %p238
      %p517 = pneg %p235
      %p518 = pneg %p259
      %p519 = pneg %p256
      %p520 = pneg %p280
      %p521 = pneg %p277
      %p522 = pneg %p301
      %p523 = pneg %p298
      %p524 = pneg %p322
      %p525 = pneg %p319
      %p526 = pneg %p343
      %p527 = pneg %p340
      %p528 = pneg %p364
      %p529 = pneg %p361
      %p530 = pneg %p385
      %p531 = pneg %p382
      %p532 = pneg %p411
      %p533 = pneg %p408
      %p534 = scmp.lt.s32.totalorder %s28, 1
      %s535 = scalar_select %p534, %s28, 1
      %s536 = smul.addr %s535, 2
      %s537 = scalar_lea.vmem %s17, %s536
      %p538 = scmp.lt.s32.totalorder %s28, 1
      %s539 = scalar_select %p538, %s28, 1
      %s540 = smul.addr %s539, 3
      %s541 = smul.addr %s540, 8
      %s542 = scalar_lea.vmem %s0, %s541
      %p543 = scmp.lt.s32.totalorder %s28, 1
      %s544 = scalar_select %p543, %s28, 1
      %s545 = smul.addr %s544, 2
      %s546 = scalar_lea.vmem %s17, %s545
      %v548 = vld [vmem:[%s542] sm:$0xff]
      %v549 = vld [vmem:[%s542 + $0x8] sm:$0xff]
      %v550 = vld [vmem:[%s542 + $0x10] sm:$0x1]
      %v551 = vpack.c.bf16 %v549, %v548
      %v552 = vpack.c.bf16 %v550, %v550
      %v553 = vld [vmem:[%s1] sm:$0xf]
      %v554 = vld [vmem:[%s1 + $0x4] sm:$0xf]
      %v555 = vld [vmem:[%s1 + $0x8] sm:$0xf]
      %v556 = vld [vmem:[%s1 + $0xc] sm:$0xf]
      %v557 = vld [vmem:[%s1 + $0x10] sm:$0xf]
      %v558 = vld [vmem:[%s1 + $0x14] sm:$0xf]
      %v559 = vld [vmem:[%s1 + $0x18] sm:$0xf]
      %v560 = vld [vmem:[%s1 + $0x1c] sm:$0xf]
      %v561 = vld [vmem:[%s1 + $0x20] sm:$0xf]
      %v562 = vld [vmem:[%s1 + $0x24] sm:$0xf]
      %v563 = vld [vmem:[%s1 + $0x28] sm:$0xf]
      %v564 = vld [vmem:[%s1 + $0x2c] sm:$0xf]
      %v565 = vld [vmem:[%s1 + $0x30] sm:$0xf]
      %v566 = vld [vmem:[%s1 + $0x34] sm:$0xf]
      %v567 = vld [vmem:[%s1 + $0x38] sm:$0xf]
      %v568 = vld [vmem:[%s1 + $0x3c] sm:$0xf]
      %v569 = vld [vmem:[%s2] sm:$0xff]
      %v570 = vld [vmem:[%s2 + $0x8] sm:$0xff]
      %v571 = vld [vmem:[%s2 + $0x10] sm:$0x1]
      %v588 = vunpack.c.l.b16 %v553
      %v589 = vunpack.c.l.b16 %v554
      %v590 = vunpack.c.l.b16 %v555
      %v591 = vunpack.c.l.b16 %v556
      %v592 = vunpack.c.l.b16 %v557
      %v593 = vunpack.c.l.b16 %v558
      %v594 = vunpack.c.l.b16 %v559
      %v595 = vunpack.c.l.b16 %v560
      %v596 = vunpack.c.l.b16 %v561
      %v597 = vunpack.c.l.b16 %v562
      %v598 = vunpack.c.l.b16 %v563
      %v599 = vunpack.c.l.b16 %v564
      %v600 = vunpack.c.l.b16 %v565
      %v601 = vunpack.c.l.b16 %v566
      %v602 = vunpack.c.l.b16 %v567
      %v603 = vunpack.c.l.b16 %v568
      %v604 = vpack.c.b16 %v589, %v588
      %v605 = vpack.c.b16 %v591, %v590
      %v606 = vpack.c.b16 %v593, %v592
      %v607 = vpack.c.b16 %v595, %v594
      %v608 = vpack.c.b16 %v597, %v596
      %v609 = vpack.c.b16 %v599, %v598
      %v610 = vpack.c.b16 %v601, %v600
      %v611 = vpack.c.b16 %v603, %v602
      %620 = vmatprep.subr.bf16.mxu0 0
      %621 = vmatpush1.bf16.msra.mxu0 %v604
      %622 = vmatprep.subr.bf16.mxu0 0
      %623 = vmatpush1.bf16.msra.mxu0 %v605
      %624 = vmatprep.subr.bf16.mxu0 0
      %625 = vmatpush1.bf16.msra.mxu0 %v606
      %626 = vmatprep.subr.bf16.mxu0 0
      %627 = vmatpush1.bf16.msra.mxu0 %v607
      %628 = vmatprep.subr.bf16.mxu0 0
      %629 = vmatpush1.bf16.msra.mxu0 %v608
      %630 = vmatprep.subr.bf16.mxu0 0
      %631 = vmatpush1.bf16.msra.mxu0 %v609
      %632 = vmatprep.subr.bf16.mxu0 0
      %633 = vmatpush1.bf16.msra.mxu0 %v610
      %634 = vmatprep.subr.bf16.mxu0 0
      %635 = vmatpush1.bf16.msra.mxu0 %v611
      %636 = vmatprep.subr.bf16.mxu0 0
      %637 = vmatpush1.bf16.msra.mxu0 0
      %638 = vmatprep.subr.bf16.mxu0 0
      %639 = vmatpush1.bf16.msra.mxu0 0
      %640 = vmatprep.subr.bf16.mxu0 0
      %641 = vmatpush1.bf16.msra.mxu0 0
      %642 = vmatprep.subr.bf16.mxu0 0
      %643 = vmatpush1.bf16.msra.mxu0 0
      %644 = vmatprep.subr.bf16.mxu0 0
      %645 = vmatpush1.bf16.msra.mxu0 0
      %646 = vmatprep.subr.bf16.mxu0 0
      %647 = vmatpush1.bf16.msra.mxu0 0
      %648 = vmatprep.subr.bf16.mxu0 0
      %649 = vmatpush1.bf16.msra.mxu0 0
      %650 = vmatprep.subr.bf16.mxu0 0
      %651 = vmatpush1.bf16.msra.mxu0 0
      %652 = vmatprep.mubr.bf16.mxu0 0
      %653 = vmatmul.mubr.bf16.gmra.mrb[0].mxu0 %v551
      %v654 = vpop.f32.mrb[0].mxu0
      %v655 = vadd.f32 %v569, %v654
      %v656 = vpop.f32.mrb[0].mxu0
      %v657 = vpop.f32.mrb[0].mxu0
      %v658 = vadd.f32 %v570, %v657
      %v659 = vpop.f32.mrb[0].mxu0
      %660 = vmatprep.mubr.bf16.mxu0 0
      %661 = vmatmul.mubr.bf16.gmra.mrb[0].mxu0 %v552
      %v662 = vpop.f32.mrb[0].mxu0
      %v663 = vadd.f32 %v571, %v662
      %v664 = vpop.f32.mrb[0].mxu0
      %v665 = vpop.f32.mrb[0].mxu0
      %v666 = vpop.f32.mrb[0].mxu0
      %667 = vdwg.mxu0
      %v668 = vld [vmem:[%s3] sm:$0x1]
      %v669 = vld [vmem:[%s4] sm:$0x1]
      %670 = vadd.xlane.f32.xlu0 %v655
      %v671 = vpop.xlane.xlu0 %670
      %672 = vadd.xlane.f32.xlu0 %v658
      %v673 = vpop.xlane.xlu0 %672
      %vm674 = vcmask 1040384
      %v675 = vsel %vm674, %v663, 0.0
      %676 = vadd.xlane.f32.xlu0 %v675
      %v677 = vpop.xlane.xlu0 %676
      %v678 = vrcp.pop 128.0
      %v679 = vmul.f32 %v671, %v678
      %v680 = vmul.f32 %v673, %v678
      %v681 = vmul.f32 %v677, %v678
      %v682 = vsub.f32 %v655, %v679
      %v683 = vsub.f32 %v658, %v680
      %v684 = vsub.f32 %v663, %v681
      %v685 = vmul.f32 %v682, %v682
      %v686 = vmul.f32 %v683, %v683
      %v687 = vmul.f32 %v684, %v684
      %688 = vadd.xlane.f32.xlu0 %v685
      %v689 = vpop.xlane.xlu0 %688
      %690 = vadd.xlane.f32.xlu0 %v686
      %v691 = vpop.xlane.xlu0 %690
      %v692 = vsel %vm674, %v687, 0.0
      %693 = vadd.xlane.f32.xlu0 %v692
      %v694 = vpop.xlane.xlu0 %693
      %v695 = vmul.f32 %v689, %v678
      %v696 = vmul.f32 %v691, %v678
      %v697 = vmul.f32 %v694, %v678
      %v698 = vadd.f32 %v695, 1e-06
      %v699 = vadd.f32 %v696, 1e-06
      %v700 = vadd.f32 %v697, 1e-06
      %v701 = vrsqrt.pop %v698
      %v702 = vrsqrt.pop %v699
      %v703 = vrsqrt.pop %v700
      %v704 = vmul.f32 %v682, %v701
      %v705 = vmul.f32 %v683, %v702
      %v706 = vmul.f32 %v684, %v703
      %v708 = vlaneseq
      %v709 = vshrl.u32 %v708, 7
      %v710 = vsub.s32 0, %v709
      %v711 = vrot.slane %v668, %v710
      %v713 = vmul.f32 %v704, %v711
      %v714 = vmul.f32 %v705, %v711
      %v715 = vmul.f32 %v706, %v711
      %v717 = vlaneseq
      %v718 = vshrl.u32 %v717, 7
      %v719 = vsub.s32 0, %v718
      %v720 = vrot.slane %v669, %v719
      %v722 = vadd.f32 %v713, %v720
      %v723 = vadd.f32 %v714, %v720
      %v724 = vadd.f32 %v715, %v720
      %v725 = vld [vmem:[%s5] sm:$0xff]
      %v726 = vld [vmem:[%s5 + $0x8] sm:$0xf]
      %v727 = vld [vmem:[%s5 + $0xc] sm:$0xff]
      %v728 = vld [vmem:[%s5 + $0x14] sm:$0xf]
      %v729 = vld [vmem:[%s5 + $0x18] sm:$0xff]
      %v730 = vld [vmem:[%s5 + $0x20] sm:$0xf]
      %v731 = vld [vmem:[%s5 + $0x24] sm:$0xff]
      %v732 = vld [vmem:[%s5 + $0x2c] sm:$0xf]
      %v733 = vld [vmem:[%s5 + $0x30] sm:$0xff]
      %v734 = vld [vmem:[%s5 + $0x38] sm:$0xf]
      %v735 = vld [vmem:[%s5 + $0x3c] sm:$0xff]
      %v736 = vld [vmem:[%s5 + $0x44] sm:$0xf]
      %v737 = vld [vmem:[%s5 + $0x48] sm:$0xff]
      %v738 = vld [vmem:[%s5 + $0x50] sm:$0xf]
      %v739 = vld [vmem:[%s5 + $0x54] sm:$0xff]
      %v740 = vld [vmem:[%s5 + $0x5c] sm:$0xf]
      %v741 = vld [vmem:[%s5 + $0x60] sm:$0xff]
      %v742 = vld [vmem:[%s5 + $0x68] sm:$0xf]
      %v743 = vld [vmem:[%s5 + $0x6c] sm:$0xff]
      %v744 = vld [vmem:[%s5 + $0x74] sm:$0xf]
      %v745 = vld [vmem:[%s5 + $0x78] sm:$0xff]
      %v746 = vld [vmem:[%s5 + $0x80] sm:$0xf]
      %v747 = vld [vmem:[%s5 + $0x84] sm:$0xff]
      %v748 = vld [vmem:[%s5 + $0x8c] sm:$0xf]
      %v749 = vld [vmem:[%s5 + $0x90] sm:$0xff]
      %v750 = vld [vmem:[%s5 + $0x98] sm:$0xf]
      %v751 = vld [vmem:[%s5 + $0x9c] sm:$0xff]
      %v752 = vld [vmem:[%s5 + $0xa4] sm:$0xf]
      %v753 = vld [vmem:[%s5 + $0xa8] sm:$0xff]
      %v754 = vld [vmem:[%s5 + $0xb0] sm:$0xf]
      %v755 = vld [vmem:[%s5 + $0xb4] sm:$0xff]
      %v756 = vld [vmem:[%s5 + $0xbc] sm:$0xf]
      %v757 = vld [vmem:[%s6] sm:$0x7]
      %v758 = vpack.c.bf16 %v723, %v722
      %v759 = vpack.c.bf16 %v724, %v724
      %v761 = vlaneseq
      %v762 = vshrl.u32 %v761, 7
      %v763 = vsub.s32 0, %v762
      %v764 = vrot.slane %v757, %v763
      %v765 = vlaneseq
      %v766 = vshrl.u32 %v765, 7
      %v767 = vsub.s32 1, %v766
      %v768 = vrot.slane %v757, %v767
      %v769 = vlaneseq
      %v770 = vshrl.u32 %v769, 7
      %v771 = vsub.s32 2, %v770
      %v772 = vrot.slane %v757, %v771
      %v808 = vunpack.c.l.b16 %v725
      %v809 = vunpack.c.h.b16 %v725
      %v810 = vunpack.c.l.b16 %v726
      %v811 = vunpack.c.l.b16 %v727
      %v812 = vunpack.c.h.b16 %v727
      %v813 = vunpack.c.l.b16 %v728
      %v814 = vunpack.c.l.b16 %v729
      %v815 = vunpack.c.h.b16 %v729
      %v816 = vunpack.c.l.b16 %v730
      %v817 = vunpack.c.l.b16 %v731
      %v818 = vunpack.c.h.b16 %v731
      %v819 = vunpack.c.l.b16 %v732
      %v820 = vunpack.c.l.b16 %v733
      %v821 = vunpack.c.h.b16 %v733
      %v822 = vunpack.c.l.b16 %v734
      %v823 = vunpack.c.l.b16 %v735
      %v824 = vunpack.c.h.b16 %v735
      %v825 = vunpack.c.l.b16 %v736
      %v826 = vunpack.c.l.b16 %v737
      %v827 = vunpack.c.h.b16 %v737
      %v828 = vunpack.c.l.b16 %v738
      %v829 = vunpack.c.l.b16 %v739
      %v830 = vunpack.c.h.b16 %v739
      %v831 = vunpack.c.l.b16 %v740
      %v832 = vunpack.c.l.b16 %v741
      %v833 = vunpack.c.h.b16 %v741
      %v834 = vunpack.c.l.b16 %v742
      %v835 = vunpack.c.l.b16 %v743
      %v836 = vunpack.c.h.b16 %v743
      %v837 = vunpack.c.l.b16 %v744
      %v838 = vunpack.c.l.b16 %v745
      %v839 = vunpack.c.h.b16 %v745
      %v840 = vunpack.c.l.b16 %v746
      %v841 = vunpack.c.l.b16 %v747
      %v842 = vunpack.c.h.b16 %v747
      %v843 = vunpack.c.l.b16 %v748
      %v844 = vunpack.c.l.b16 %v749
      %v845 = vunpack.c.h.b16 %v749
      %v846 = vunpack.c.l.b16 %v750
      %v847 = vunpack.c.l.b16 %v751
      %v848 = vunpack.c.h.b16 %v751
      %v849 = vunpack.c.l.b16 %v752
      %v850 = vunpack.c.l.b16 %v753
      %v851 = vunpack.c.h.b16 %v753
      %v852 = vunpack.c.l.b16 %v754
      %v853 = vunpack.c.l.b16 %v755
      %v854 = vunpack.c.h.b16 %v755
      %v855 = vunpack.c.l.b16 %v756
      %v856 = vpack.c.b16 %v811, %v808
      %v857 = vpack.c.b16 %v812, %v809
      %v858 = vpack.c.b16 %v813, %v810
      %v859 = vpack.c.b16 %v817, %v814
      %v860 = vpack.c.b16 %v818, %v815
      %v861 = vpack.c.b16 %v819, %v816
      %v862 = vpack.c.b16 %v823, %v820
      %v863 = vpack.c.b16 %v824, %v821
      %v864 = vpack.c.b16 %v825, %v822
      %v865 = vpack.c.b16 %v829, %v826
      %v866 = vpack.c.b16 %v830, %v827
      %v867 = vpack.c.b16 %v831, %v828
      %v868 = vpack.c.b16 %v835, %v832
      %v869 = vpack.c.b16 %v836, %v833
      %v870 = vpack.c.b16 %v837, %v834
      %v871 = vpack.c.b16 %v841, %v838
      %v872 = vpack.c.b16 %v842, %v839
      %v873 = vpack.c.b16 %v843, %v840
      %v874 = vpack.c.b16 %v847, %v844
      %v875 = vpack.c.b16 %v848, %v845
      %v876 = vpack.c.b16 %v849, %v846
      %v877 = vpack.c.b16 %v853, %v850
      %v878 = vpack.c.b16 %v854, %v851
      %v879 = vpack.c.b16 %v855, %v852
      %904 = vmatprep.subr.bf16.mxu0 %v857
      %905 = vmatpush1.bf16.msra.mxu0 %v856
      %906 = vmatprep.subr.bf16.mxu0 %v860
      %907 = vmatpush1.bf16.msra.mxu0 %v859
      %908 = vmatprep.subr.bf16.mxu0 %v863
      %909 = vmatpush1.bf16.msra.mxu0 %v862
      %910 = vmatprep.subr.bf16.mxu0 %v866
      %911 = vmatpush1.bf16.msra.mxu0 %v865
      %912 = vmatprep.subr.bf16.mxu0 %v869
      %913 = vmatpush1.bf16.msra.mxu0 %v868
      %914 = vmatprep.subr.bf16.mxu0 %v872
      %915 = vmatpush1.bf16.msra.mxu0 %v871
      %916 = vmatprep.subr.bf16.mxu0 %v875
      %917 = vmatpush1.bf16.msra.mxu0 %v874
      %918 = vmatprep.subr.bf16.mxu0 %v878
      %919 = vmatpush1.bf16.msra.mxu0 %v877
      %920 = vmatprep.subr.bf16.mxu0 0
      %921 = vmatpush1.bf16.msra.mxu0 0
      %922 = vmatprep.subr.bf16.mxu0 0
      %923 = vmatpush1.bf16.msra.mxu0 0
      %924 = vmatprep.subr.bf16.mxu0 0
      %925 = vmatpush1.bf16.msra.mxu0 0
      %926 = vmatprep.subr.bf16.mxu0 0
      %927 = vmatpush1.bf16.msra.mxu0 0
      %928 = vmatprep.subr.bf16.mxu0 0
      %929 = vmatpush1.bf16.msra.mxu0 0
      %930 = vmatprep.subr.bf16.mxu0 0
      %931 = vmatpush1.bf16.msra.mxu0 0
      %932 = vmatprep.subr.bf16.mxu0 0
      %933 = vmatpush1.bf16.msra.mxu0 0
      %934 = vmatprep.subr.bf16.mxu0 0
      %935 = vmatpush1.bf16.msra.mxu0 0
      %936 = vmatprep.mubr.bf16.mxu0 0
      %937 = vmatmul.mubr.bf16.gmra.mrb[0].mxu0 %v758
      %v938 = vpop.f32.mrb[0].mxu0
      %v939 = vadd.f32 %v764, %v938
      %v940 = vpop.f32.mrb[0].mxu0
      %v941 = vadd.f32 %v768, %v940
      %v942 = vpop.f32.mrb[0].mxu0
      %v943 = vadd.f32 %v764, %v942
      %v944 = vpop.f32.mrb[0].mxu0
      %v945 = vadd.f32 %v768, %v944
      %946 = vmatprep.mubr.bf16.mxu0 0
      %947 = vmatmul.mubr.bf16.gmra.mrb[0].mxu0 %v759
      %v948 = vpop.f32.mrb[0].mxu0
      %v949 = vadd.f32 %v764, %v948
      %v950 = vpop.f32.mrb[0].mxu0
      %v951 = vadd.f32 %v768, %v950
      %v952 = vpop.f32.mrb[0].mxu0
      %v953 = vpop.f32.mrb[0].mxu0
      %954 = vdwg.mxu0
      %955 = vmatprep.subr.bf16.mxu0 0
      %956 = vmatpush1.bf16.msra.mxu0 %v858
      %957 = vmatprep.subr.bf16.mxu0 0
      %958 = vmatpush1.bf16.msra.mxu0 %v861
      %959 = vmatprep.subr.bf16.mxu0 0
      %960 = vmatpush1.bf16.msra.mxu0 %v864
      %961 = vmatprep.subr.bf16.mxu0 0
      %962 = vmatpush1.bf16.msra.mxu0 %v867
      %963 = vmatprep.subr.bf16.mxu0 0
      %964 = vmatpush1.bf16.msra.mxu0 %v870
      %965 = vmatprep.subr.bf16.mxu0 0
      %966 = vmatpush1.bf16.msra.mxu0 %v873
      %967 = vmatprep.subr.bf16.mxu0 0
      %968 = vmatpush1.bf16.msra.mxu0 %v876
      %969 = vmatprep.subr.bf16.mxu0 0
      %970 = vmatpush1.bf16.msra.mxu0 %v879
      %971 = vmatprep.subr.bf16.mxu0 0
      %972 = vmatpush1.bf16.msra.mxu0 0
      %973 = vmatprep.subr.bf16.mxu0 0
      %974 = vmatpush1.bf16.msra.mxu0 0
      %975 = vmatprep.subr.bf16.mxu0 0
      %976 = vmatpush1.bf16.msra.mxu0 0
      %977 = vmatprep.subr.bf16.mxu0 0
      %978 = vmatpush1.bf16.msra.mxu0 0
      %979 = vmatprep.subr.bf16.mxu0 0
      %980 = vmatpush1.bf16.msra.mxu0 0
      %981 = vmatprep.subr.bf16.mxu0 0
      %982 = vmatpush1.bf16.msra.mxu0 0
      %983 = vmatprep.subr.bf16.mxu0 0
      %984 = vmatpush1.bf16.msra.mxu0 0
      %985 = vmatprep.subr.bf16.mxu0 0
      %986 = vmatpush1.bf16.msra.mxu0 0
      %987 = vmatprep.mubr.bf16.mxu0 0
      %988 = vmatmul.mubr.bf16.gmra.mrb[0].mxu0 %v758
      %v989 = vpop.f32.mrb[0].mxu0
      %v990 = vadd.f32 %v772, %v989
      %v991 = vpop.f32.mrb[0].mxu0
      %v992 = vpop.f32.mrb[0].mxu0
      %v993 = vadd.f32 %v772, %v992
      %v994 = vpop.f32.mrb[0].mxu0
      %995 = vmatprep.mubr.bf16.mxu0 0
      %996 = vmatmul.mubr.bf16.gmra.mrb[0].mxu0 %v759
      %v997 = vpop.f32.mrb[0].mxu0
      %v998 = vadd.f32 %v772, %v997
      %v999 = vpop.f32.mrb[0].mxu0
      %v1000 = vpop.f32.mrb[0].mxu0
      %v1001 = vpop.f32.mrb[0].mxu0
      %1002 = vdwg.mxu0
      %v1003 = vld [vmem:[%s7] sm:$0xf]
      %v1004 = vld [vmem:[%s7 + $0x4] sm:$0xf]
      %v1005 = vld [vmem:[%s7 + $0x8] sm:$0xf]
      %v1006 = vld [vmem:[%s7 + $0xc] sm:$0xf]
      %v1007 = vld [vmem:[%s7 + $0x10] sm:$0xf]
      %v1008 = vld [vmem:[%s7 + $0x14] sm:$0xf]
      %v1009 = vld [vmem:[%s7 + $0x18] sm:$0xf]
      %v1010 = vld [vmem:[%s7 + $0x1c] sm:$0xf]
      %v1011 = vld [vmem:[%s7 + $0x20] sm:$0xf]
      %v1012 = vld [vmem:[%s7 + $0x24] sm:$0xf]
      %v1013 = vld [vmem:[%s7 + $0x28] sm:$0xf]
      %v1014 = vld [vmem:[%s7 + $0x2c] sm:$0xf]
      %v1015 = vld [vmem:[%s7 + $0x30] sm:$0xf]
      %v1016 = vld [vmem:[%s7 + $0x34] sm:$0xf]
      %v1017 = vld [vmem:[%s7 + $0x38] sm:$0xf]
      %v1018 = vld [vmem:[%s7 + $0x3c] sm:$0xf]
      %v1019 = vpack.c.bf16 %v943, %v939
      %v1020 = vpack.c.bf16 %v949, %v949
      %v1021 = vpack.c.bf16 %v945, %v941
      %v1022 = vpack.c.bf16 %v951, %v951
      %v1023 = vpack.c.bf16 %v993, %v990
      %v1024 = vpack.c.bf16 %v998, %v998
      %vm1025 = vcmask 523264
      %v1027 = vsel %vm1025, %v1019, 0
      %v1030 = vsel %vm1025, %v1020, 0
      %v1033 = vsel %vm1025, %v1021, 0
      %v1036 = vsel %vm1025, %v1022, 0
      %1038 = vmatprep.subr.bf16.mxu0 0
      %1039 = vmatpush1.bf16.xpose.msra.mxu0 %v1033
      %1040 = vmatprep.subr.bf16.mxu0 0
      %1041 = vmatpush1.bf16.xpose.msra.mxu0 %v1036
      %1042 = vmatprep.subr.bf16.mxu0 0
      %1043 = vmatpush1.bf16.xpose.msra.mxu0 0
      %1044 = vmatprep.subr.bf16.mxu0 0
      %1045 = vmatpush1.bf16.xpose.msra.mxu0 0
      %1046 = vmatprep.subr.bf16.mxu0 0
      %1047 = vmatpush1.bf16.xpose.msra.mxu0 0
      %1048 = vmatprep.subr.bf16.mxu0 0
      %1049 = vmatpush1.bf16.xpose.msra.mxu0 0
      %1050 = vmatprep.subr.bf16.mxu0 0
      %1051 = vmatpush1.bf16.xpose.msra.mxu0 0
      %1052 = vmatprep.subr.bf16.mxu0 0
      %1053 = vmatpush1.bf16.xpose.msra.mxu0 0
      %1054 = vmatprep.subr.bf16.mxu0 0
      %1055 = vmatpush1.bf16.xpose.msra.mxu0 0
      %1056 = vmatprep.subr.bf16.mxu0 0
      %1057 = vmatpush1.bf16.xpose.msra.mxu0 0
      %1058 = vmatprep.subr.bf16.mxu0 0
      %1059 = vmatpush1.bf16.xpose.msra.mxu0 0
      %1060 = vmatprep.subr.bf16.mxu0 0
      %1061 = vmatpush1.bf16.xpose.msra.mxu0 0
      %1062 = vmatprep.subr.bf16.mxu0 0
      %1063 = vmatpush1.bf16.xpose.msra.mxu0 0
      %1064 = vmatprep.subr.bf16.mxu0 0
      %1065 = vmatpush1.bf16.xpose.msra.mxu0 0
      %1066 = vmatprep.subr.bf16.mxu0 0
      %1067 = vmatpush1.bf16.xpose.msra.mxu0 0
      %1068 = vmatprep.subr.bf16.mxu0 0
      %1069 = vmatpush1.bf16.xpose.msra.mxu0 0
      %1070 = vmatprep.mubr.bf16.mxu0 0
      %1071 = vmatmul.mubr.bf16.gmra.mrb[0].mxu0 %v1027
      %v1072 = vpop.f32.mrb[0].mxu0
      %v1073 = vadd.f32 0.0, %v1072
      %v1074 = vpop.f32.mrb[0].mxu0
      %v1075 = vpop.f32.mrb[0].mxu0
      %v1076 = vadd.f32 0.0, %v1075
      %v1077 = vpop.f32.mrb[0].mxu0
      %1078 = vmatprep.mubr.bf16.mxu0 0
      %1079 = vmatmul.mubr.bf16.gmra.mrb[0].mxu0 %v1030
      %v1080 = vpop.f32.mrb[0].mxu0
      %v1081 = vadd.f32 0.0, %v1080
      %v1082 = vpop.f32.mrb[0].mxu0
      %v1083 = vpop.f32.mrb[0].mxu0
      %v1084 = vpop.f32.mrb[0].mxu0
      %1085 = vdwg.mxu0
      %v1086 = vmul.f32 %v1073, 0.125
      %v1087 = vmul.f32 %v1076, 0.125
      %v1088 = vmul.f32 %v1081, 0.125
      %vm1089 = vcmask 138240
      %v1090 = vsel %vm1089, %v1086, -inf
      %1091 = vmax.xlane.f32.xlu0 %v1090
      %v1092 = vpop.xlane.xlu0 %1091
      %v1093 = vsel %vm1089, %v1087, -inf
      %1094 = vmax.xlane.f32.xlu0 %v1093
      %v1095 = vpop.xlane.xlu0 %1094
      %vm1096 = vcmask 131072
      %v1097 = vsel %vm1096, %v1088, -inf
      %1098 = vmax.xlane.f32.xlu0 %v1097
      %v1099 = vpop.xlane.xlu0 %1098
      %v1100 = vsub.f32 %v1086, %v1092
      %v1101 = vsub.f32 %v1087, %v1095
      %v1102 = vsub.f32 %v1088, %v1099
      %v1103 = vmul.f32 %v1100, 1.442695
      %v1104 = vpow.pop %v1103
      %v1105 = vmul.f32 %v1101, 1.442695
      %v1106 = vpow.pop %v1105
      %v1107 = vmul.f32 %v1102, 1.442695
      %v1108 = vpow.pop %v1107
      %v1109 = vsel %vm1089, %v1104, 0.0
      %1110 = vadd.xlane.f32.xlu0 %v1109
      %v1111 = vpop.xlane.xlu0 %1110
      %v1112 = vsel %vm1089, %v1106, 0.0
      %1113 = vadd.xlane.f32.xlu0 %v1112
      %v1114 = vpop.xlane.xlu0 %1113
      %v1115 = vsel %vm1096, %v1108, 0.0
      %1116 = vadd.xlane.f32.xlu0 %v1115
      %v1117 = vpop.xlane.xlu0 %1116
      %v1118 = vrcp.pop %v1111
      %v1119 = vrcp.pop %v1114
      %v1120 = vrcp.pop %v1117
      %v1121 = vmul.f32 %v1104, %v1118
      %v1122 = vmul.f32 %v1106, %v1119
      %v1123 = vmul.f32 %v1108, %v1120
      %v1124 = vpack.c.bf16 %v1122, %v1121
      %v1125 = vpack.c.bf16 %v1123, %v1123
      %v1127 = vsel %vm1089, %v1124, 0
      %v1130 = vsel %vm1089, %v1125, 0
      %v1132 = vsel 0, 4294967295, 65535
      %v1133 = vsel %vm674, %v1132, 0
      %v1135 = vand.u32 %v1024, %v1133
      %1137 = vmatprep.subr.bf16.mxu0 0
      %1138 = vmatpush1.bf16.msra.mxu0 %v1023
      %1139 = vmatprep.subr.bf16.mxu0 0
      %1140 = vmatpush1.bf16.msra.mxu0 %v1135
      %1141 = vmatprep.subr.bf16.mxu0 0
      %1142 = vmatpush1.bf16.msra.mxu0 0
      %1143 = vmatprep.subr.bf16.mxu0 0
      %1144 = vmatpush1.bf16.msra.mxu0 0
      %1145 = vmatprep.subr.bf16.mxu0 0
      %1146 = vmatpush1.bf16.msra.mxu0 0
      %1147 = vmatprep.subr.bf16.mxu0 0
      %1148 = vmatpush1.bf16.msra.mxu0 0
      %1149 = vmatprep.subr.bf16.mxu0 0
      %1150 = vmatpush1.bf16.msra.mxu0 0
      %1151 = vmatprep.subr.bf16.mxu0 0
      %1152 = vmatpush1.bf16.msra.mxu0 0
      %1153 = vmatprep.subr.bf16.mxu0 0
      %1154 = vmatpush1.bf16.msra.mxu0 0
      %1155 = vmatprep.subr.bf16.mxu0 0
      %1156 = vmatpush1.bf16.msra.mxu0 0
      %1157 = vmatprep.subr.bf16.mxu0 0
      %1158 = vmatpush1.bf16.msra.mxu0 0
      %1159 = vmatprep.subr.bf16.mxu0 0
      %1160 = vmatpush1.bf16.msra.mxu0 0
      %1161 = vmatprep.subr.bf16.mxu0 0
      %1162 = vmatpush1.bf16.msra.mxu0 0
      %1163 = vmatprep.subr.bf16.mxu0 0
      %1164 = vmatpush1.bf16.msra.mxu0 0
      %1165 = vmatprep.subr.bf16.mxu0 0
      %1166 = vmatpush1.bf16.msra.mxu0 0
      %1167 = vmatprep.subr.bf16.mxu0 0
      %1168 = vmatpush1.bf16.msra.mxu0 0
      %1169 = vmatprep.mubr.bf16.mxu0 0
      %1170 = vmatmul.mubr.bf16.gmra.mrb[0].mxu0 %v1127
      %v1171 = vpop.f32.mrb[0].mxu0
      %v1172 = vadd.f32 0.0, %v1171
      %v1173 = vpop.f32.mrb[0].mxu0
      %v1174 = vpop.f32.mrb[0].mxu0
      %v1175 = vadd.f32 0.0, %v1174
      %v1176 = vpop.f32.mrb[0].mxu0
      %1177 = vmatprep.mubr.bf16.mxu0 0
      %1178 = vmatmul.mubr.bf16.gmra.mrb[0].mxu0 %v1130
      %v1179 = vpop.f32.mrb[0].mxu0
      %v1180 = vadd.f32 0.0, %v1179
      %v1181 = vpop.f32.mrb[0].mxu0
      %v1182 = vpop.f32.mrb[0].mxu0
      %v1183 = vpop.f32.mrb[0].mxu0
      %1184 = vdwg.mxu0
      %v1185 = vpack.c.bf16 %v1175, %v1172
      %v1186 = vpack.c.bf16 %v1180, %v1180
      %1189 = vrot.lane.b32.xlu0 %v1019, 64
      %v1190 = vpop.permute.xlu0 %1189
      %1191 = vrot.lane.b32.xlu0 %v1020, 64
      %v1192 = vpop.permute.xlu0 %1191
      %1195 = vrot.lane.b32.xlu0 %v1021, 64
      %v1196 = vpop.permute.xlu0 %1195
      %1197 = vrot.lane.b32.xlu0 %v1022, 64
      %v1198 = vpop.permute.xlu0 %1197
      %v1200 = vsel %vm1025, %v1190, 0
      %v1203 = vsel %vm1025, %v1192, 0
      %v1206 = vsel %vm1025, %v1196, 0
      %v1209 = vsel %vm1025, %v1198, 0
      %1211 = vmatprep.subr.bf16.mxu0 0
      %1212 = vmatpush1.bf16.xpose.msra.mxu0 %v1206
      %1213 = vmatprep.subr.bf16.mxu0 0
      %1214 = vmatpush1.bf16.xpose.msra.mxu0 %v1209
      %1215 = vmatprep.subr.bf16.mxu0 0
      %1216 = vmatpush1.bf16.xpose.msra.mxu0 0
      %1217 = vmatprep.subr.bf16.mxu0 0
      %1218 = vmatpush1.bf16.xpose.msra.mxu0 0
      %1219 = vmatprep.subr.bf16.mxu0 0
      %1220 = vmatpush1.bf16.xpose.msra.mxu0 0
      %1221 = vmatprep.subr.bf16.mxu0 0
      %1222 = vmatpush1.bf16.xpose.msra.mxu0 0
      %1223 = vmatprep.subr.bf16.mxu0 0
      %1224 = vmatpush1.bf16.xpose.msra.mxu0 0
      %1225 = vmatprep.subr.bf16.mxu0 0
      %1226 = vmatpush1.bf16.xpose.msra.mxu0 0
      %1227 = vmatprep.subr.bf16.mxu0 0
      %1228 = vmatpush1.bf16.xpose.msra.mxu0 0
      %1229 = vmatprep.subr.bf16.mxu0 0
      %1230 = vmatpush1.bf16.xpose.msra.mxu0 0
      %1231 = vmatprep.subr.bf16.mxu0 0
      %1232 = vmatpush1.bf16.xpose.msra.mxu0 0
      %1233 = vmatprep.subr.bf16.mxu0 0
      %1234 = vmatpush1.bf16.xpose.msra.mxu0 0
      %1235 = vmatprep.subr.bf16.mxu0 0
      %1236 = vmatpush1.bf16.xpose.msra.mxu0 0
      %1237 = vmatprep.subr.bf16.mxu0 0
      %1238 = vmatpush1.bf16.xpose.msra.mxu0 0
      %1239 = vmatprep.subr.bf16.mxu0 0
      %1240 = vmatpush1.bf16.xpose.msra.mxu0 0
      %1241 = vmatprep.subr.bf16.mxu0 0
      %1242 = vmatpush1.bf16.xpose.msra.mxu0 0
      %1243 = vmatprep.mubr.bf16.mxu0 0
      %1244 = vmatmul.mubr.bf16.gmra.mrb[0].mxu0 %v1200
      %v1245 = vpop.f32.mrb[0].mxu0
      %v1246 = vadd.f32 0.0, %v1245
      %v1247 = vpop.f32.mrb[0].mxu0
      %v1248 = vpop.f32.mrb[0].mxu0
      %v1249 = vadd.f32 0.0, %v1248
      %v1250 = vpop.f32.mrb[0].mxu0
      %1251 = vmatprep.mubr.bf16.mxu0 0
      %1252 = vmatmul.mubr.bf16.gmra.mrb[0].mxu0 %v1203
      %v1253 = vpop.f32.mrb[0].mxu0
      %v1254 = vadd.f32 0.0, %v1253
      %v1255 = vpop.f32.mrb[0].mxu0
      %v1256 = vpop.f32.mrb[0].mxu0
      %v1257 = vpop.f32.mrb[0].mxu0
      %1258 = vdwg.mxu0
      %v1259 = vmul.f32 %v1246, 0.125
      %v1260 = vmul.f32 %v1249, 0.125
      %v1261 = vmul.f32 %v1254, 0.125
      %v1262 = vsel %vm1089, %v1259, -inf
      %1263 = vmax.xlane.f32.xlu0 %v1262
      %v1264 = vpop.xlane.xlu0 %1263
      %v1265 = vsel %vm1089, %v1260, -inf
      %1266 = vmax.xlane.f32.xlu0 %v1265
      %v1267 = vpop.xlane.xlu0 %1266
      %v1268 = vsel %vm1096, %v1261, -inf
      %1269 = vmax.xlane.f32.xlu0 %v1268
      %v1270 = vpop.xlane.xlu0 %1269
      %v1271 = vsub.f32 %v1259, %v1264
      %v1272 = vsub.f32 %v1260, %v1267
      %v1273 = vsub.f32 %v1261, %v1270
      %v1274 = vmul.f32 %v1271, 1.442695
      %v1275 = vpow.pop %v1274
      %v1276 = vmul.f32 %v1272, 1.442695
      %v1277 = vpow.pop %v1276
      %v1278 = vmul.f32 %v1273, 1.442695
      %v1279 = vpow.pop %v1278
      %v1280 = vsel %vm1089, %v1275, 0.0
      %1281 = vadd.xlane.f32.xlu0 %v1280
      %v1282 = vpop.xlane.xlu0 %1281
      %v1283 = vsel %vm1089, %v1277, 0.0
      %1284 = vadd.xlane.f32.xlu0 %v1283
      %v1285 = vpop.xlane.xlu0 %1284
      %v1286 = vsel %vm1096, %v1279, 0.0
      %1287 = vadd.xlane.f32.xlu0 %v1286
      %v1288 = vpop.xlane.xlu0 %1287
      %v1289 = vrcp.pop %v1282
      %v1290 = vrcp.pop %v1285
      %v1291 = vrcp.pop %v1288
      %v1292 = vmul.f32 %v1275, %v1289
      %v1293 = vmul.f32 %v1277, %v1290
      %v1294 = vmul.f32 %v1279, %v1291
      %v1295 = vpack.c.bf16 %v1293, %v1292
      %v1296 = vpack.c.bf16 %v1294, %v1294
      %1299 = vrot.lane.b32.xlu0 %v1023, 64
      %v1300 = vpop.permute.xlu0 %1299
      %1301 = vrot.lane.b32.xlu0 %v1024, 64
      %v1302 = vpop.permute.xlu0 %1301
      %v1305 = vsel %vm1089, %v1295, 0
      %v1308 = vsel %vm1089, %v1296, 0
      %v1311 = vand.u32 %v1302, %v1133
      %1313 = vmatprep.subr.bf16.mxu0 0
      %1314 = vmatpush1.bf16.msra.mxu0 %v1300
      %1315 = vmatprep.subr.bf16.mxu0 0
      %1316 = vmatpush1.bf16.msra.mxu0 %v1311
      %1317 = vmatprep.subr.bf16.mxu0 0
      %1318 = vmatpush1.bf16.msra.mxu0 0
      %1319 = vmatprep.subr.bf16.mxu0 0
      %1320 = vmatpush1.bf16.msra.mxu0 0
      %1321 = vmatprep.subr.bf16.mxu0 0
      %1322 = vmatpush1.bf16.msra.mxu0 0
      %1323 = vmatprep.subr.bf16.mxu0 0
      %1324 = vmatpush1.bf16.msra.mxu0 0
      %1325 = vmatprep.subr.bf16.mxu0 0
      %1326 = vmatpush1.bf16.msra.mxu0 0
      %1327 = vmatprep.subr.bf16.mxu0 0
      %1328 = vmatpush1.bf16.msra.mxu0 0
      %1329 = vmatprep.subr.bf16.mxu0 0
      %1330 = vmatpush1.bf16.msra.mxu0 0
      %1331 = vmatprep.subr.bf16.mxu0 0
      %1332 = vmatpush1.bf16.msra.mxu0 0
      %1333 = vmatprep.subr.bf16.mxu0 0
      %1334 = vmatpush1.bf16.msra.mxu0 0
      %1335 = vmatprep.subr.bf16.mxu0 0
      %1336 = vmatpush1.bf16.msra.mxu0 0
      %1337 = vmatprep.subr.bf16.mxu0 0
      %1338 = vmatpush1.bf16.msra.mxu0 0
      %1339 = vmatprep.subr.bf16.mxu0 0
      %1340 = vmatpush1.bf16.msra.mxu0 0
      %1341 = vmatprep.subr.bf16.mxu0 0
      %1342 = vmatpush1.bf16.msra.mxu0 0
      %1343 = vmatprep.subr.bf16.mxu0 0
      %1344 = vmatpush1.bf16.msra.mxu0 0
      %1345 = vmatprep.mubr.bf16.mxu0 0
      %1346 = vmatmul.mubr.bf16.gmra.mrb[0].mxu0 %v1305
      %v1347 = vpop.f32.mrb[0].mxu0
      %v1348 = vadd.f32 0.0, %v1347
      %v1349 = vpop.f32.mrb[0].mxu0
      %v1350 = vpop.f32.mrb[0].mxu0
      %v1351 = vadd.f32 0.0, %v1350
      %v1352 = vpop.f32.mrb[0].mxu0
      %1353 = vmatprep.mubr.bf16.mxu0 0
      %1354 = vmatmul.mubr.bf16.gmra.mrb[0].mxu0 %v1308
      %v1355 = vpop.f32.mrb[0].mxu0
      %v1356 = vadd.f32 0.0, %v1355
      %v1357 = vpop.f32.mrb[0].mxu0
      %v1358 = vpop.f32.mrb[0].mxu0
      %v1359 = vpop.f32.mrb[0].mxu0
      %1360 = vdwg.mxu0
      %v1361 = vpack.c.bf16 %v1351, %v1348
      %v1362 = vpack.c.bf16 %v1356, %v1356
      %v1371 = vunpack.c.l.b16 %v1011
      %v1372 = vunpack.c.l.b16 %v1012
      %v1373 = vunpack.c.l.b16 %v1013
      %v1374 = vunpack.c.l.b16 %v1014
      %v1375 = vunpack.c.l.b16 %v1015
      %v1376 = vunpack.c.l.b16 %v1016
      %v1377 = vunpack.c.l.b16 %v1017
      %v1378 = vunpack.c.l.b16 %v1018
      %v1379 = vpack.c.b16 %v1372, %v1371
      %v1380 = vpack.c.b16 %v1374, %v1373
      %v1381 = vpack.c.b16 %v1376, %v1375
      %v1382 = vpack.c.b16 %v1378, %v1377
      %v1388 = vsel %vm1025, %v1361, 0
      %v1391 = vsel %vm1025, %v1362, 0
      %1393 = vmatprep.subr.bf16.mxu0 0
      %1394 = vmatpush1.bf16.msra.mxu0 %v1379
      %1395 = vmatprep.subr.bf16.mxu0 0
      %1396 = vmatpush1.bf16.msra.mxu0 %v1380
      %1397 = vmatprep.subr.bf16.mxu0 0
      %1398 = vmatpush1.bf16.msra.mxu0 %v1381
      %1399 = vmatprep.subr.bf16.mxu0 0
      %1400 = vmatpush1.bf16.msra.mxu0 %v1382
      %1401 = vmatprep.subr.bf16.mxu0 0
      %1402 = vmatpush1.bf16.msra.mxu0 0
      %1403 = vmatprep.subr.bf16.mxu0 0
      %1404 = vmatpush1.bf16.msra.mxu0 0
      %1405 = vmatprep.subr.bf16.mxu0 0
      %1406 = vmatpush1.bf16.msra.mxu0 0
      %1407 = vmatprep.subr.bf16.mxu0 0
      %1408 = vmatpush1.bf16.msra.mxu0 0
      %1409 = vmatprep.subr.bf16.mxu0 0
      %1410 = vmatpush1.bf16.msra.mxu0 0
      %1411 = vmatprep.subr.bf16.mxu0 0
      %1412 = vmatpush1.bf16.msra.mxu0 0
      %1413 = vmatprep.subr.bf16.mxu0 0
      %1414 = vmatpush1.bf16.msra.mxu0 0
      %1415 = vmatprep.subr.bf16.mxu0 0
      %1416 = vmatpush1.bf16.msra.mxu0 0
      %1417 = vmatprep.subr.bf16.mxu0 0
      %1418 = vmatpush1.bf16.msra.mxu0 0
      %1419 = vmatprep.subr.bf16.mxu0 0
      %1420 = vmatpush1.bf16.msra.mxu0 0
      %1421 = vmatprep.subr.bf16.mxu0 0
      %1422 = vmatpush1.bf16.msra.mxu0 0
      %1423 = vmatprep.subr.bf16.mxu0 0
      %1424 = vmatpush1.bf16.msra.mxu0 0
      %1425 = vmatprep.mubr.bf16.mxu0 0
      %1426 = vmatmul.mubr.bf16.gmra.mrb[0].mxu0 %v1388
      %v1427 = vpop.f32.mrb[0].mxu0
      %v1428 = vadd.f32 0.0, %v1427
      %v1429 = vpop.f32.mrb[0].mxu0
      %v1430 = vpop.f32.mrb[0].mxu0
      %v1431 = vadd.f32 0.0, %v1430
      %v1432 = vpop.f32.mrb[0].mxu0
      %1433 = vmatprep.mubr.bf16.mxu0 0
      %1434 = vmatmul.mubr.bf16.gmra.mrb[0].mxu0 %v1391
      %v1435 = vpop.f32.mrb[0].mxu0
      %v1436 = vadd.f32 0.0, %v1435
      %v1437 = vpop.f32.mrb[0].mxu0
      %v1438 = vpop.f32.mrb[0].mxu0
      %v1439 = vpop.f32.mrb[0].mxu0
      %1440 = vdwg.mxu0
      %v1449 = vunpack.c.l.b16 %v1003
      %v1450 = vunpack.c.l.b16 %v1004
      %v1451 = vunpack.c.l.b16 %v1005
      %v1452 = vunpack.c.l.b16 %v1006
      %v1453 = vunpack.c.l.b16 %v1007
      %v1454 = vunpack.c.l.b16 %v1008
      %v1455 = vunpack.c.l.b16 %v1009
      %v1456 = vunpack.c.l.b16 %v1010
      %v1457 = vpack.c.b16 %v1450, %v1449
      %v1458 = vpack.c.b16 %v1452, %v1451
      %v1459 = vpack.c.b16 %v1454, %v1453
      %v1460 = vpack.c.b16 %v1456, %v1455
      %v1466 = vsel %vm1025, %v1185, 0
      %v1469 = vsel %vm1025, %v1186, 0
      %1471 = vmatprep.subr.bf16.mxu0 0
      %1472 = vmatpush1.bf16.msra.mxu0 %v1457
      %1473 = vmatprep.subr.bf16.mxu0 0
      %1474 = vmatpush1.bf16.msra.mxu0 %v1458
      %1475 = vmatprep.subr.bf16.mxu0 0
      %1476 = vmatpush1.bf16.msra.mxu0 %v1459
      %1477 = vmatprep.subr.bf16.mxu0 0
      %1478 = vmatpush1.bf16.msra.mxu0 %v1460
      %1479 = vmatprep.subr.bf16.mxu0 0
      %1480 = vmatpush1.bf16.msra.mxu0 0
      %1481 = vmatprep.subr.bf16.mxu0 0
      %1482 = vmatpush1.bf16.msra.mxu0 0
      %1483 = vmatprep.subr.bf16.mxu0 0
      %1484 = vmatpush1.bf16.msra.mxu0 0
      %1485 = vmatprep.subr.bf16.mxu0 0
      %1486 = vmatpush1.bf16.msra.mxu0 0
      %1487 = vmatprep.subr.bf16.mxu0 0
      %1488 = vmatpush1.bf16.msra.mxu0 0
      %1489 = vmatprep.subr.bf16.mxu0 0
      %1490 = vmatpush1.bf16.msra.mxu0 0
      %1491 = vmatprep.subr.bf16.mxu0 0
      %1492 = vmatpush1.bf16.msra.mxu0 0
      %1493 = vmatprep.subr.bf16.mxu0 0
      %1494 = vmatpush1.bf16.msra.mxu0 0
      %1495 = vmatprep.subr.bf16.mxu0 0
      %1496 = vmatpush1.bf16.msra.mxu0 0
      %1497 = vmatprep.subr.bf16.mxu0 0
      %1498 = vmatpush1.bf16.msra.mxu0 0
      %1499 = vmatprep.subr.bf16.mxu0 0
      %1500 = vmatpush1.bf16.msra.mxu0 0
      %1501 = vmatprep.subr.bf16.mxu0 0
      %1502 = vmatpush1.bf16.msra.mxu0 0
      %1503 = vmatprep.mubr.bf16.mxu0 0
      %1504 = vmatmul.mubr.bf16.gmra.mrb[0].mxu0 %v1466
      %v1505 = vpop.f32.mrb[0].mxu0
      %v1506 = vadd.f32 %v1428, %v1505
      %v1507 = vpop.f32.mrb[0].mxu0
      %v1508 = vpop.f32.mrb[0].mxu0
      %v1509 = vadd.f32 %v1431, %v1508
      %v1510 = vpop.f32.mrb[0].mxu0
      %1511 = vmatprep.mubr.bf16.mxu0 0
      %1512 = vmatmul.mubr.bf16.gmra.mrb[0].mxu0 %v1469
      %v1513 = vpop.f32.mrb[0].mxu0
      %v1514 = vadd.f32 %v1436, %v1513
      %v1515 = vpop.f32.mrb[0].mxu0
      %v1516 = vpop.f32.mrb[0].mxu0
      %v1517 = vpop.f32.mrb[0].mxu0
      %1518 = vdwg.mxu0
      %v1519 = vadd.f32 %v655, %v1506
      %v1520 = vadd.f32 %v658, %v1509
      %v1521 = vadd.f32 %v663, %v1514
      %v1522 = vld [vmem:[%s8] sm:$0x1]
      %v1524 = vlaneseq
      %v1525 = vshrl.u32 %v1524, 7
      %v1526 = vsub.s32 0, %v1525
      %v1527 = vrot.slane %v1522, %v1526
      %v1529 = vadd.f32 %v1519, %v1527
      %v1530 = vadd.f32 %v1520, %v1527
      %v1531 = vadd.f32 %v1521, %v1527
      %v1532 = vld [vmem:[%s9] sm:$0x1]
      %v1533 = vld [vmem:[%s10] sm:$0x1]
      %1534 = vadd.xlane.f32.xlu0 %v1529
      %v1535 = vpop.xlane.xlu0 %1534
      %1536 = vadd.xlane.f32.xlu0 %v1530
      %v1537 = vpop.xlane.xlu0 %1536
      %v1538 = vsel %vm674, %v1531, 0.0
      %1539 = vadd.xlane.f32.xlu0 %v1538
      %v1540 = vpop.xlane.xlu0 %1539
      %v1541 = vmul.f32 %v1535, %v678
      %v1542 = vmul.f32 %v1537, %v678
      %v1543 = vmul.f32 %v1540, %v678
      %v1544 = vsub.f32 %v1529, %v1541
      %v1545 = vsub.f32 %v1530, %v1542
      %v1546 = vsub.f32 %v1531, %v1543
      %v1547 = vmul.f32 %v1544, %v1544
      %v1548 = vmul.f32 %v1545, %v1545
      %v1549 = vmul.f32 %v1546, %v1546
      %1550 = vadd.xlane.f32.xlu0 %v1547
      %v1551 = vpop.xlane.xlu0 %1550
      %1552 = vadd.xlane.f32.xlu0 %v1548
      %v1553 = vpop.xlane.xlu0 %1552
      %v1554 = vsel %vm674, %v1549, 0.0
      %1555 = vadd.xlane.f32.xlu0 %v1554
      %v1556 = vpop.xlane.xlu0 %1555
      %v1557 = vmul.f32 %v1551, %v678
      %v1558 = vmul.f32 %v1553, %v678
      %v1559 = vmul.f32 %v1556, %v678
      %v1560 = vadd.f32 %v1557, 1e-06
      %v1561 = vadd.f32 %v1558, 1e-06
      %v1562 = vadd.f32 %v1559, 1e-06
      %v1563 = vrsqrt.pop %v1560
      %v1564 = vrsqrt.pop %v1561
      %v1565 = vrsqrt.pop %v1562
      %v1566 = vmul.f32 %v1544, %v1563
      %v1567 = vmul.f32 %v1545, %v1564
      %v1568 = vmul.f32 %v1546, %v1565
      %v1570 = vlaneseq
      %v1571 = vshrl.u32 %v1570, 7
      %v1572 = vsub.s32 0, %v1571
      %v1573 = vrot.slane %v1532, %v1572
      %v1575 = vmul.f32 %v1566, %v1573
      %v1576 = vmul.f32 %v1567, %v1573
      %v1577 = vmul.f32 %v1568, %v1573
      %v1579 = vlaneseq
      %v1580 = vshrl.u32 %v1579, 7
      %v1581 = vsub.s32 0, %v1580
      %v1582 = vrot.slane %v1533, %v1581
      %v1584 = vadd.f32 %v1575, %v1582
      %v1585 = vadd.f32 %v1576, %v1582
      %v1586 = vadd.f32 %v1577, %v1582
      %v1587 = vld [vmem:[%s11] sm:$0xff]
      %v1588 = vld [vmem:[%s11 + $0x8] sm:$0xff]
      %v1589 = vld [vmem:[%s11 + $0x10] sm:$0xff]
      %v1590 = vld [vmem:[%s11 + $0x18] sm:$0xff]
      %v1591 = vld [vmem:[%s11 + $0x20] sm:$0xff]
      %v1592 = vld [vmem:[%s11 + $0x28] sm:$0xff]
      %v1593 = vld [vmem:[%s11 + $0x30] sm:$0xff]
      %v1594 = vld [vmem:[%s11 + $0x38] sm:$0xff]
      %v1595 = vld [vmem:[%s11 + $0x40] sm:$0xff]
      %v1596 = vld [vmem:[%s11 + $0x48] sm:$0xff]
      %v1597 = vld [vmem:[%s11 + $0x50] sm:$0xff]
      %v1598 = vld [vmem:[%s11 + $0x58] sm:$0xff]
      %v1599 = vld [vmem:[%s11 + $0x60] sm:$0xff]
      %v1600 = vld [vmem:[%s11 + $0x68] sm:$0xff]
      %v1601 = vld [vmem:[%s11 + $0x70] sm:$0xff]
      %v1602 = vld [vmem:[%s11 + $0x78] sm:$0xff]
      %v1603 = vld [vmem:[%s11 + $0x80] sm:$0xff]
      %v1604 = vld [vmem:[%s11 + $0x88] sm:$0xff]
      %v1605 = vld [vmem:[%s11 + $0x90] sm:$0xff]
      %v1606 = vld [vmem:[%s11 + $0x98] sm:$0xff]
      %v1607 = vld [vmem:[%s11 + $0xa0] sm:$0xff]
      %v1608 = vld [vmem:[%s11 + $0xa8] sm:$0xff]
      %v1609 = vld [vmem:[%s11 + $0xb0] sm:$0xff]
      %v1610 = vld [vmem:[%s11 + $0xb8] sm:$0xff]
      %v1611 = vld [vmem:[%s11 + $0xc0] sm:$0xff]
      %v1612 = vld [vmem:[%s11 + $0xc8] sm:$0xff]
      %v1613 = vld [vmem:[%s11 + $0xd0] sm:$0xff]
      %v1614 = vld [vmem:[%s11 + $0xd8] sm:$0xff]
      %v1615 = vld [vmem:[%s11 + $0xe0] sm:$0xff]
      %v1616 = vld [vmem:[%s11 + $0xe8] sm:$0xff]
      %v1617 = vld [vmem:[%s11 + $0xf0] sm:$0xff]
      %v1618 = vld [vmem:[%s11 + $0xf8] sm:$0xff]
      %v1619 = vld [vmem:[%s12] sm:$0xf]
      %v1620 = vpack.c.bf16 %v1585, %v1584
      %v1621 = vpack.c.bf16 %v1586, %v1586
      %v1623 = vlaneseq
      %v1624 = vshrl.u32 %v1623, 7
      %v1625 = vsub.s32 0, %v1624
      %v1626 = vrot.slane %v1619, %v1625
      %v1627 = vlaneseq
      %v1628 = vshrl.u32 %v1627, 7
      %v1629 = vsub.s32 1, %v1628
      %v1630 = vrot.slane %v1619, %v1629
      %v1631 = vlaneseq
      %v1632 = vshrl.u32 %v1631, 7
      %v1633 = vsub.s32 2, %v1632
      %v1634 = vrot.slane %v1619, %v1633
      %v1635 = vlaneseq
      %v1636 = vshrl.u32 %v1635, 7
      %v1637 = vsub.s32 3, %v1636
      %v1638 = vrot.slane %v1619, %v1637
      %v1675 = vunpack.c.l.b16 %v1587
      %v1676 = vunpack.c.h.b16 %v1587
      %v1677 = vunpack.c.l.b16 %v1588
      %v1678 = vunpack.c.h.b16 %v1588
      %v1679 = vunpack.c.l.b16 %v1589
      %v1680 = vunpack.c.h.b16 %v1589
      %v1681 = vunpack.c.l.b16 %v1590
      %v1682 = vunpack.c.h.b16 %v1590
      %v1683 = vunpack.c.l.b16 %v1591
      %v1684 = vunpack.c.h.b16 %v1591
      %v1685 = vunpack.c.l.b16 %v1592
      %v1686 = vunpack.c.h.b16 %v1592
      %v1687 = vunpack.c.l.b16 %v1593
      %v1688 = vunpack.c.h.b16 %v1593
      %v1689 = vunpack.c.l.b16 %v1594
      %v1690 = vunpack.c.h.b16 %v1594
      %v1691 = vunpack.c.l.b16 %v1595
      %v1692 = vunpack.c.h.b16 %v1595
      %v1693 = vunpack.c.l.b16 %v1596
      %v1694 = vunpack.c.h.b16 %v1596
      %v1695 = vunpack.c.l.b16 %v1597
      %v1696 = vunpack.c.h.b16 %v1597
      %v1697 = vunpack.c.l.b16 %v1598
      %v1698 = vunpack.c.h.b16 %v1598
      %v1699 = vunpack.c.l.b16 %v1599
      %v1700 = vunpack.c.h.b16 %v1599
      %v1701 = vunpack.c.l.b16 %v1600
      %v1702 = vunpack.c.h.b16 %v1600
      %v1703 = vunpack.c.l.b16 %v1601
      %v1704 = vunpack.c.h.b16 %v1601
      %v1705 = vunpack.c.l.b16 %v1602
      %v1706 = vunpack.c.h.b16 %v1602
      %v1707 = vunpack.c.l.b16 %v1603
      %v1708 = vunpack.c.h.b16 %v1603
      %v1709 = vunpack.c.l.b16 %v1604
      %v1710 = vunpack.c.h.b16 %v1604
      %v1711 = vunpack.c.l.b16 %v1605
      %v1712 = vunpack.c.h.b16 %v1605
      %v1713 = vunpack.c.l.b16 %v1606
      %v1714 = vunpack.c.h.b16 %v1606
      %v1715 = vunpack.c.l.b16 %v1607
      %v1716 = vunpack.c.h.b16 %v1607
      %v1717 = vunpack.c.l.b16 %v1608
      %v1718 = vunpack.c.h.b16 %v1608
      %v1719 = vunpack.c.l.b16 %v1609
      %v1720 = vunpack.c.h.b16 %v1609
      %v1721 = vunpack.c.l.b16 %v1610
      %v1722 = vunpack.c.h.b16 %v1610
      %v1723 = vunpack.c.l.b16 %v1611
      %v1724 = vunpack.c.h.b16 %v1611
      %v1725 = vunpack.c.l.b16 %v1612
      %v1726 = vunpack.c.h.b16 %v1612
      %v1727 = vunpack.c.l.b16 %v1613
      %v1728 = vunpack.c.h.b16 %v1613
      %v1729 = vunpack.c.l.b16 %v1614
      %v1730 = vunpack.c.h.b16 %v1614
      %v1731 = vunpack.c.l.b16 %v1615
      %v1732 = vunpack.c.h.b16 %v1615
      %v1733 = vunpack.c.l.b16 %v1616
      %v1734 = vunpack.c.h.b16 %v1616
      %v1735 = vunpack.c.l.b16 %v1617
      %v1736 = vunpack.c.h.b16 %v1617
      %v1737 = vunpack.c.l.b16 %v1618
      %v1738 = vunpack.c.h.b16 %v1618
      %v1739 = vpack.c.b16 %v1679, %v1675
      %v1740 = vpack.c.b16 %v1680, %v1676
      %v1741 = vpack.c.b16 %v1681, %v1677
      %v1742 = vpack.c.b16 %v1682, %v1678
      %v1743 = vpack.c.b16 %v1687, %v1683
      %v1744 = vpack.c.b16 %v1688, %v1684
      %v1745 = vpack.c.b16 %v1689, %v1685
      %v1746 = vpack.c.b16 %v1690, %v1686
      %v1747 = vpack.c.b16 %v1695, %v1691
      %v1748 = vpack.c.b16 %v1696, %v1692
      %v1749 = vpack.c.b16 %v1697, %v1693
      %v1750 = vpack.c.b16 %v1698, %v1694
      %v1751 = vpack.c.b16 %v1703, %v1699
      %v1752 = vpack.c.b16 %v1704, %v1700
      %v1753 = vpack.c.b16 %v1705, %v1701
      %v1754 = vpack.c.b16 %v1706, %v1702
      %v1755 = vpack.c.b16 %v1711, %v1707
      %v1756 = vpack.c.b16 %v1712, %v1708
      %v1757 = vpack.c.b16 %v1713, %v1709
      %v1758 = vpack.c.b16 %v1714, %v1710
      %v1759 = vpack.c.b16 %v1719, %v1715
      %v1760 = vpack.c.b16 %v1720, %v1716
      %v1761 = vpack.c.b16 %v1721, %v1717
      %v1762 = vpack.c.b16 %v1722, %v1718
      %v1763 = vpack.c.b16 %v1727, %v1723
      %v1764 = vpack.c.b16 %v1728, %v1724
      %v1765 = vpack.c.b16 %v1729, %v1725
      %v1766 = vpack.c.b16 %v1730, %v1726
      %v1767 = vpack.c.b16 %v1735, %v1731
      %v1768 = vpack.c.b16 %v1736, %v1732
      %v1769 = vpack.c.b16 %v1737, %v1733
      %v1770 = vpack.c.b16 %v1738, %v1734
      %1803 = vmatprep.subr.bf16.mxu0 %v1740
      %1804 = vmatpush1.bf16.msra.mxu0 %v1739
      %1805 = vmatprep.subr.bf16.mxu0 %v1744
      %1806 = vmatpush1.bf16.msra.mxu0 %v1743
      %1807 = vmatprep.subr.bf16.mxu0 %v1748
      %1808 = vmatpush1.bf16.msra.mxu0 %v1747
      %1809 = vmatprep.subr.bf16.mxu0 %v1752
      %1810 = vmatpush1.bf16.msra.mxu0 %v1751
      %1811 = vmatprep.subr.bf16.mxu0 %v1756
      %1812 = vmatpush1.bf16.msra.mxu0 %v1755
      %1813 = vmatprep.subr.bf16.mxu0 %v1760
      %1814 = vmatpush1.bf16.msra.mxu0 %v1759
      %1815 = vmatprep.subr.bf16.mxu0 %v1764
      %1816 = vmatpush1.bf16.msra.mxu0 %v1763
      %1817 = vmatprep.subr.bf16.mxu0 %v1768
      %1818 = vmatpush1.bf16.msra.mxu0 %v1767
      %1819 = vmatprep.subr.bf16.mxu0 0
      %1820 = vmatpush1.bf16.msra.mxu0 0
      %1821 = vmatprep.subr.bf16.mxu0 0
      %1822 = vmatpush1.bf16.msra.mxu0 0
      %1823 = vmatprep.subr.bf16.mxu0 0
      %1824 = vmatpush1.bf16.msra.mxu0 0
      %1825 = vmatprep.subr.bf16.mxu0 0
      %1826 = vmatpush1.bf16.msra.mxu0 0
      %1827 = vmatprep.subr.bf16.mxu0 0
      %1828 = vmatpush1.bf16.msra.mxu0 0
      %1829 = vmatprep.subr.bf16.mxu0 0
      %1830 = vmatpush1.bf16.msra.mxu0 0
      %1831 = vmatprep.subr.bf16.mxu0 0
      %1832 = vmatpush1.bf16.msra.mxu0 0
      %1833 = vmatprep.subr.bf16.mxu0 0
      %1834 = vmatpush1.bf16.msra.mxu0 0
      %1835 = vmatprep.mubr.bf16.mxu0 0
      %1836 = vmatmul.mubr.bf16.gmra.mrb[0].mxu0 %v1620
      %v1837 = vpop.f32.mrb[0].mxu0
      %v1838 = vadd.f32 %v1626, %v1837
      %v1839 = vpop.f32.mrb[0].mxu0
      %v1840 = vadd.f32 %v1630, %v1839
      %v1841 = vpop.f32.mrb[0].mxu0
      %v1842 = vadd.f32 %v1626, %v1841
      %v1843 = vpop.f32.mrb[0].mxu0
      %v1844 = vadd.f32 %v1630, %v1843
      %1845 = vmatprep.mubr.bf16.mxu0 0
      %1846 = vmatmul.mubr.bf16.gmra.mrb[0].mxu0 %v1621
      %v1847 = vpop.f32.mrb[0].mxu0
      %v1848 = vadd.f32 %v1626, %v1847
      %v1849 = vpop.f32.mrb[0].mxu0
      %v1850 = vadd.f32 %v1630, %v1849
      %v1851 = vpop.f32.mrb[0].mxu0
      %v1852 = vpop.f32.mrb[0].mxu0
      %1853 = vdwg.mxu0
      %1854 = vmatprep.subr.bf16.mxu0 %v1742
      %1855 = vmatpush1.bf16.msra.mxu0 %v1741
      %1856 = vmatprep.subr.bf16.mxu0 %v1746
      %1857 = vmatpush1.bf16.msra.mxu0 %v1745
      %1858 = vmatprep.subr.bf16.mxu0 %v1750
      %1859 = vmatpush1.bf16.msra.mxu0 %v1749
      %1860 = vmatprep.subr.bf16.mxu0 %v1754
      %1861 = vmatpush1.bf16.msra.mxu0 %v1753
      %1862 = vmatprep.subr.bf16.mxu0 %v1758
      %1863 = vmatpush1.bf16.msra.mxu0 %v1757
      %1864 = vmatprep.subr.bf16.mxu0 %v1762
      %1865 = vmatpush1.bf16.msra.mxu0 %v1761
      %1866 = vmatprep.subr.bf16.mxu0 %v1766
      %1867 = vmatpush1.bf16.msra.mxu0 %v1765
      %1868 = vmatprep.subr.bf16.mxu0 %v1770
      %1869 = vmatpush1.bf16.msra.mxu0 %v1769
      %1870 = vmatprep.subr.bf16.mxu0 0
      %1871 = vmatpush1.bf16.msra.mxu0 0
      %1872 = vmatprep.subr.bf16.mxu0 0
      %1873 = vmatpush1.bf16.msra.mxu0 0
      %1874 = vmatprep.subr.bf16.mxu0 0
      %1875 = vmatpush1.bf16.msra.mxu0 0
      %1876 = vmatprep.subr.bf16.mxu0 0
      %1877 = vmatpush1.bf16.msra.mxu0 0
      %1878 = vmatprep.subr.bf16.mxu0 0
      %1879 = vmatpush1.bf16.msra.mxu0 0
      %1880 = vmatprep.subr.bf16.mxu0 0
      %1881 = vmatpush1.bf16.msra.mxu0 0
      %1882 = vmatprep.subr.bf16.mxu0 0
      %1883 = vmatpush1.bf16.msra.mxu0 0
      %1884 = vmatprep.subr.bf16.mxu0 0
      %1885 = vmatpush1.bf16.msra.mxu0 0
      %1886 = vmatprep.mubr.bf16.mxu0 0
      %1887 = vmatmul.mubr.bf16.gmra.mrb[0].mxu0 %v1620
      %v1888 = vpop.f32.mrb[0].mxu0
      %v1889 = vadd.f32 %v1634, %v1888
      %v1890 = vpop.f32.mrb[0].mxu0
      %v1891 = vadd.f32 %v1638, %v1890
      %v1892 = vpop.f32.mrb[0].mxu0
      %v1893 = vadd.f32 %v1634, %v1892
      %v1894 = vpop.f32.mrb[0].mxu0
      %v1895 = vadd.f32 %v1638, %v1894
      %1896 = vmatprep.mubr.bf16.mxu0 0
      %1897 = vmatmul.mubr.bf16.gmra.mrb[0].mxu0 %v1621
      %v1898 = vpop.f32.mrb[0].mxu0
      %v1899 = vadd.f32 %v1634, %v1898
      %v1900 = vpop.f32.mrb[0].mxu0
      %v1901 = vadd.f32 %v1638, %v1900
      %v1902 = vpop.f32.mrb[0].mxu0
      %v1903 = vpop.f32.mrb[0].mxu0
      %1904 = vdwg.mxu0
      %v1905 = vmul.f32 %v1838, %v1838
      %v1906 = vmul.f32 %v1840, %v1840
      %v1907 = vmul.f32 %v1889, %v1889
      %v1908 = vmul.f32 %v1891, %v1891
      %v1909 = vmul.f32 %v1842, %v1842
      %v1910 = vmul.f32 %v1844, %v1844
      %v1911 = vmul.f32 %v1893, %v1893
      %v1912 = vmul.f32 %v1895, %v1895
      %v1913 = vmul.f32 %v1848, %v1848
      %v1914 = vmul.f32 %v1850, %v1850
      %v1915 = vmul.f32 %v1899, %v1899
      %v1916 = vmul.f32 %v1901, %v1901
      %v1917 = vmul.f32 %v1838, %v1905
      %v1918 = vmul.f32 %v1840, %v1906
      %v1919 = vmul.f32 %v1889, %v1907
      %v1920 = vmul.f32 %v1891, %v1908
      %v1921 = vmul.f32 %v1842, %v1909
      %v1922 = vmul.f32 %v1844, %v1910
      %v1923 = vmul.f32 %v1893, %v1911
      %v1924 = vmul.f32 %v1895, %v1912
      %v1925 = vmul.f32 %v1848, %v1913
      %v1926 = vmul.f32 %v1850, %v1914
      %v1927 = vmul.f32 %v1899, %v1915
      %v1928 = vmul.f32 %v1901, %v1916
      %v1929 = vmul.f32 %v1917, 0.044715
      %v1930 = vmul.f32 %v1918, 0.044715
      %v1931 = vmul.f32 %v1919, 0.044715
      %v1932 = vmul.f32 %v1920, 0.044715
      %v1933 = vmul.f32 %v1921, 0.044715
      %v1934 = vmul.f32 %v1922, 0.044715
      %v1935 = vmul.f32 %v1923, 0.044715
      %v1936 = vmul.f32 %v1924, 0.044715
      %v1937 = vmul.f32 %v1925, 0.044715
      %v1938 = vmul.f32 %v1926, 0.044715
      %v1939 = vmul.f32 %v1927, 0.044715
      %v1940 = vmul.f32 %v1928, 0.044715
      %v1941 = vadd.f32 %v1838, %v1929
      %v1942 = vadd.f32 %v1840, %v1930
      %v1943 = vadd.f32 %v1889, %v1931
      %v1944 = vadd.f32 %v1891, %v1932
      %v1945 = vadd.f32 %v1842, %v1933
      %v1946 = vadd.f32 %v1844, %v1934
      %v1947 = vadd.f32 %v1893, %v1935
      %v1948 = vadd.f32 %v1895, %v1936
      %v1949 = vadd.f32 %v1848, %v1937
      %v1950 = vadd.f32 %v1850, %v1938
      %v1951 = vadd.f32 %v1899, %v1939
      %v1952 = vadd.f32 %v1901, %v1940
      %v1953 = vmul.f32 %v1941, 0.7978846
      %v1954 = vmul.f32 %v1942, 0.7978846
      %v1955 = vmul.f32 %v1943, 0.7978846
      %v1956 = vmul.f32 %v1944, 0.7978846
      %v1957 = vmul.f32 %v1945, 0.7978846
      %v1958 = vmul.f32 %v1946, 0.7978846
      %v1959 = vmul.f32 %v1947, 0.7978846
      %v1960 = vmul.f32 %v1948, 0.7978846
      %v1961 = vmul.f32 %v1949, 0.7978846
      %v1962 = vmul.f32 %v1950, 0.7978846
      %v1963 = vmul.f32 %v1951, 0.7978846
      %v1964 = vmul.f32 %v1952, 0.7978846
      %v1965 = vtanh.pop %v1953
      %v1966 = vtanh.pop %v1954
      %v1967 = vtanh.pop %v1955
      %v1968 = vtanh.pop %v1956
      %v1969 = vtanh.pop %v1957
      %v1970 = vtanh.pop %v1958
      %v1971 = vtanh.pop %v1959
      %v1972 = vtanh.pop %v1960
      %v1973 = vtanh.pop %v1961
      %v1974 = vtanh.pop %v1962
      %v1975 = vtanh.pop %v1963
      %v1976 = vtanh.pop %v1964
      %v1977 = vadd.f32 %v1965, 1.0
      %v1978 = vadd.f32 %v1966, 1.0
      %v1979 = vadd.f32 %v1967, 1.0
      %v1980 = vadd.f32 %v1968, 1.0
      %v1981 = vadd.f32 %v1969, 1.0
      %v1982 = vadd.f32 %v1970, 1.0
      %v1983 = vadd.f32 %v1971, 1.0
      %v1984 = vadd.f32 %v1972, 1.0
      %v1985 = vadd.f32 %v1973, 1.0
      %v1986 = vadd.f32 %v1974, 1.0
      %v1987 = vadd.f32 %v1975, 1.0
      %v1988 = vadd.f32 %v1976, 1.0
      %v1989 = vmul.f32 %v1977, 0.5
      %v1990 = vmul.f32 %v1978, 0.5
      %v1991 = vmul.f32 %v1979, 0.5
      %v1992 = vmul.f32 %v1980, 0.5
      %v1993 = vmul.f32 %v1981, 0.5
      %v1994 = vmul.f32 %v1982, 0.5
      %v1995 = vmul.f32 %v1983, 0.5
      %v1996 = vmul.f32 %v1984, 0.5
      %v1997 = vmul.f32 %v1985, 0.5
      %v1998 = vmul.f32 %v1986, 0.5
      %v1999 = vmul.f32 %v1987, 0.5
      %v2000 = vmul.f32 %v1988, 0.5
      %v2001 = vmul.f32 %v1838, %v1989
      %v2002 = vmul.f32 %v1840, %v1990
      %v2003 = vmul.f32 %v1889, %v1991
      %v2004 = vmul.f32 %v1891, %v1992
      %v2005 = vmul.f32 %v1842, %v1993
      %v2006 = vmul.f32 %v1844, %v1994
      %v2007 = vmul.f32 %v1893, %v1995
      %v2008 = vmul.f32 %v1895, %v1996
      %v2009 = vmul.f32 %v1848, %v1997
      %v2010 = vmul.f32 %v1850, %v1998
      %v2011 = vmul.f32 %v1899, %v1999
      %v2012 = vmul.f32 %v1901, %v2000
      %v2013 = vld [vmem:[%s13] sm:$0xf]
      %v2014 = vld [vmem:[%s13 + $0x4] sm:$0xf]
      %v2015 = vld [vmem:[%s13 + $0x8] sm:$0xf]
      %v2016 = vld [vmem:[%s13 + $0xc] sm:$0xf]
      %v2017 = vld [vmem:[%s13 + $0x10] sm:$0xf]
      %v2018 = vld [vmem:[%s13 + $0x14] sm:$0xf]
      %v2019 = vld [vmem:[%s13 + $0x18] sm:$0xf]
      %v2020 = vld [vmem:[%s13 + $0x1c] sm:$0xf]
      %v2021 = vld [vmem:[%s13 + $0x20] sm:$0xf]
      %v2022 = vld [vmem:[%s13 + $0x24] sm:$0xf]
      %v2023 = vld [vmem:[%s13 + $0x28] sm:$0xf]
      %v2024 = vld [vmem:[%s13 + $0x2c] sm:$0xf]
      %v2025 = vld [vmem:[%s13 + $0x30] sm:$0xf]
      %v2026 = vld [vmem:[%s13 + $0x34] sm:$0xf]
      %v2027 = vld [vmem:[%s13 + $0x38] sm:$0xf]
      %v2028 = vld [vmem:[%s13 + $0x3c] sm:$0xf]
      %v2029 = vld [vmem:[%s13 + $0x40] sm:$0xf]
      %v2030 = vld [vmem:[%s13 + $0x44] sm:$0xf]
      %v2031 = vld [vmem:[%s13 + $0x48] sm:$0xf]
      %v2032 = vld [vmem:[%s13 + $0x4c] sm:$0xf]
      %v2033 = vld [vmem:[%s13 + $0x50] sm:$0xf]
      %v2034 = vld [vmem:[%s13 + $0x54] sm:$0xf]
      %v2035 = vld [vmem:[%s13 + $0x58] sm:$0xf]
      %v2036 = vld [vmem:[%s13 + $0x5c] sm:$0xf]
      %v2037 = vld [vmem:[%s13 + $0x60] sm:$0xf]
      %v2038 = vld [vmem:[%s13 + $0x64] sm:$0xf]
      %v2039 = vld [vmem:[%s13 + $0x68] sm:$0xf]
      %v2040 = vld [vmem:[%s13 + $0x6c] sm:$0xf]
      %v2041 = vld [vmem:[%s13 + $0x70] sm:$0xf]
      %v2042 = vld [vmem:[%s13 + $0x74] sm:$0xf]
      %v2043 = vld [vmem:[%s13 + $0x78] sm:$0xf]
      %v2044 = vld [vmem:[%s13 + $0x7c] sm:$0xf]
      %v2045 = vld [vmem:[%s13 + $0x80] sm:$0xf]
      %v2046 = vld [vmem:[%s13 + $0x84] sm:$0xf]
      %v2047 = vld [vmem:[%s13 + $0x88] sm:$0xf]
      %v2048 = vld [vmem:[%s13 + $0x8c] sm:$0xf]
      %v2049 = vld [vmem:[%s13 + $0x90] sm:$0xf]
      %v2050 = vld [vmem:[%s13 + $0x94] sm:$0xf]
      %v2051 = vld [vmem:[%s13 + $0x98] sm:$0xf]
      %v2052 = vld [vmem:[%s13 + $0x9c] sm:$0xf]
      %v2053 = vld [vmem:[%s13 + $0xa0] sm:$0xf]
      %v2054 = vld [vmem:[%s13 + $0xa4] sm:$0xf]
      %v2055 = vld [vmem:[%s13 + $0xa8] sm:$0xf]
      %v2056 = vld [vmem:[%s13 + $0xac] sm:$0xf]
      %v2057 = vld [vmem:[%s13 + $0xb0] sm:$0xf]
      %v2058 = vld [vmem:[%s13 + $0xb4] sm:$0xf]
      %v2059 = vld [vmem:[%s13 + $0xb8] sm:$0xf]
      %v2060 = vld [vmem:[%s13 + $0xbc] sm:$0xf]
      %v2061 = vld [vmem:[%s13 + $0xc0] sm:$0xf]
      %v2062 = vld [vmem:[%s13 + $0xc4] sm:$0xf]
      %v2063 = vld [vmem:[%s13 + $0xc8] sm:$0xf]
      %v2064 = vld [vmem:[%s13 + $0xcc] sm:$0xf]
      %v2065 = vld [vmem:[%s13 + $0xd0] sm:$0xf]
      %v2066 = vld [vmem:[%s13 + $0xd4] sm:$0xf]
      %v2067 = vld [vmem:[%s13 + $0xd8] sm:$0xf]
      %v2068 = vld [vmem:[%s13 + $0xdc] sm:$0xf]
      %v2069 = vld [vmem:[%s13 + $0xe0] sm:$0xf]
      %v2070 = vld [vmem:[%s13 + $0xe4] sm:$0xf]
      %v2071 = vld [vmem:[%s13 + $0xe8] sm:$0xf]
      %v2072 = vld [vmem:[%s13 + $0xec] sm:$0xf]
      %v2073 = vld [vmem:[%s13 + $0xf0] sm:$0xf]
      %v2074 = vld [vmem:[%s13 + $0xf4] sm:$0xf]
      %v2075 = vld [vmem:[%s13 + $0xf8] sm:$0xf]
      %v2076 = vld [vmem:[%s13 + $0xfc] sm:$0xf]
      %v2077 = vld [vmem:[%s14] sm:$0x1]
      %v2078 = vpack.c.bf16 %v2005, %v2001
      %v2079 = vpack.c.bf16 %v2006, %v2002
      %v2080 = vpack.c.bf16 %v2007, %v2003
      %v2081 = vpack.c.bf16 %v2008, %v2004
      %v2082 = vpack.c.bf16 %v2009, %v2009
      %v2083 = vpack.c.bf16 %v2010, %v2010
      %v2084 = vpack.c.bf16 %v2011, %v2011
      %v2085 = vpack.c.bf16 %v2012, %v2012
      %v2087 = vlaneseq
      %v2088 = vshrl.u32 %v2087, 7
      %v2089 = vsub.s32 0, %v2088
      %v2090 = vrot.slane %v2077, %v2089
      %v2156 = vunpack.c.l.b16 %v2013
      %v2157 = vunpack.c.l.b16 %v2014
      %v2158 = vunpack.c.l.b16 %v2015
      %v2159 = vunpack.c.l.b16 %v2016
      %v2160 = vunpack.c.l.b16 %v2017
      %v2161 = vunpack.c.l.b16 %v2018
      %v2162 = vunpack.c.l.b16 %v2019
      %v2163 = vunpack.c.l.b16 %v2020
      %v2164 = vunpack.c.l.b16 %v2021
      %v2165 = vunpack.c.l.b16 %v2022
      %v2166 = vunpack.c.l.b16 %v2023
      %v2167 = vunpack.c.l.b16 %v2024
      %v2168 = vunpack.c.l.b16 %v2025
      %v2169 = vunpack.c.l.b16 %v2026
      %v2170 = vunpack.c.l.b16 %v2027
      %v2171 = vunpack.c.l.b16 %v2028
      %v2172 = vunpack.c.l.b16 %v2029
      %v2173 = vunpack.c.l.b16 %v2030
      %v2174 = vunpack.c.l.b16 %v2031
      %v2175 = vunpack.c.l.b16 %v2032
      %v2176 = vunpack.c.l.b16 %v2033
      %v2177 = vunpack.c.l.b16 %v2034
      %v2178 = vunpack.c.l.b16 %v2035
      %v2179 = vunpack.c.l.b16 %v2036
      %v2180 = vunpack.c.l.b16 %v2037
      %v2181 = vunpack.c.l.b16 %v2038
      %v2182 = vunpack.c.l.b16 %v2039
      %v2183 = vunpack.c.l.b16 %v2040
      %v2184 = vunpack.c.l.b16 %v2041
      %v2185 = vunpack.c.l.b16 %v2042
      %v2186 = vunpack.c.l.b16 %v2043
      %v2187 = vunpack.c.l.b16 %v2044
      %v2188 = vunpack.c.l.b16 %v2045
      %v2189 = vunpack.c.l.b16 %v2046
      %v2190 = vunpack.c.l.b16 %v2047
      %v2191 = vunpack.c.l.b16 %v2048
      %v2192 = vunpack.c.l.b16 %v2049
      %v2193 = vunpack.c.l.b16 %v2050
      %v2194 = vunpack.c.l.b16 %v2051
      %v2195 = vunpack.c.l.b16 %v2052
      %v2196 = vunpack.c.l.b16 %v2053
      %v2197 = vunpack.c.l.b16 %v2054
      %v2198 = vunpack.c.l.b16 %v2055
      %v2199 = vunpack.c.l.b16 %v2056
      %v2200 = vunpack.c.l.b16 %v2057
      %v2201 = vunpack.c.l.b16 %v2058
      %v2202 = vunpack.c.l.b16 %v2059
      %v2203 = vunpack.c.l.b16 %v2060
      %v2204 = vunpack.c.l.b16 %v2061
      %v2205 = vunpack.c.l.b16 %v2062
      %v2206 = vunpack.c.l.b16 %v2063
      %v2207 = vunpack.c.l.b16 %v2064
      %v2208 = vunpack.c.l.b16 %v2065
      %v2209 = vunpack.c.l.b16 %v2066
      %v2210 = vunpack.c.l.b16 %v2067
      %v2211 = vunpack.c.l.b16 %v2068
      %v2212 = vunpack.c.l.b16 %v2069
      %v2213 = vunpack.c.l.b16 %v2070
      %v2214 = vunpack.c.l.b16 %v2071
      %v2215 = vunpack.c.l.b16 %v2072
      %v2216 = vunpack.c.l.b16 %v2073
      %v2217 = vunpack.c.l.b16 %v2074
      %v2218 = vunpack.c.l.b16 %v2075
      %v2219 = vunpack.c.l.b16 %v2076
      %v2220 = vpack.c.b16 %v2157, %v2156
      %v2221 = vpack.c.b16 %v2159, %v2158
      %v2222 = vpack.c.b16 %v2161, %v2160
      %v2223 = vpack.c.b16 %v2163, %v2162
      %v2224 = vpack.c.b16 %v2165, %v2164
      %v2225 = vpack.c.b16 %v2167, %v2166
      %v2226 = vpack.c.b16 %v2169, %v2168
      %v2227 = vpack.c.b16 %v2171, %v2170
      %v2228 = vpack.c.b16 %v2173, %v2172
      %v2229 = vpack.c.b16 %v2175, %v2174
      %v2230 = vpack.c.b16 %v2177, %v2176
      %v2231 = vpack.c.b16 %v2179, %v2178
      %v2232 = vpack.c.b16 %v2181, %v2180
      %v2233 = vpack.c.b16 %v2183, %v2182
      %v2234 = vpack.c.b16 %v2185, %v2184
      %v2235 = vpack.c.b16 %v2187, %v2186
      %v2236 = vpack.c.b16 %v2189, %v2188
      %v2237 = vpack.c.b16 %v2191, %v2190
      %v2238 = vpack.c.b16 %v2193, %v2192
      %v2239 = vpack.c.b16 %v2195, %v2194
      %v2240 = vpack.c.b16 %v2197, %v2196
      %v2241 = vpack.c.b16 %v2199, %v2198
      %v2242 = vpack.c.b16 %v2201, %v2200
      %v2243 = vpack.c.b16 %v2203, %v2202
      %v2244 = vpack.c.b16 %v2205, %v2204
      %v2245 = vpack.c.b16 %v2207, %v2206
      %v2246 = vpack.c.b16 %v2209, %v2208
      %v2247 = vpack.c.b16 %v2211, %v2210
      %v2248 = vpack.c.b16 %v2213, %v2212
      %v2249 = vpack.c.b16 %v2215, %v2214
      %v2250 = vpack.c.b16 %v2217, %v2216
      %v2251 = vpack.c.b16 %v2219, %v2218
      %2284 = vmatprep.subr.bf16.mxu0 0
      %2285 = vmatpush1.bf16.msra.mxu0 %v2220
      %2286 = vmatprep.subr.bf16.mxu0 0
      %2287 = vmatpush1.bf16.msra.mxu0 %v2221
      %2288 = vmatprep.subr.bf16.mxu0 0
      %2289 = vmatpush1.bf16.msra.mxu0 %v2222
      %2290 = vmatprep.subr.bf16.mxu0 0
      %2291 = vmatpush1.bf16.msra.mxu0 %v2223
      %2292 = vmatprep.subr.bf16.mxu0 0
      %2293 = vmatpush1.bf16.msra.mxu0 %v2224
      %2294 = vmatprep.subr.bf16.mxu0 0
      %2295 = vmatpush1.bf16.msra.mxu0 %v2225
      %2296 = vmatprep.subr.bf16.mxu0 0
      %2297 = vmatpush1.bf16.msra.mxu0 %v2226
      %2298 = vmatprep.subr.bf16.mxu0 0
      %2299 = vmatpush1.bf16.msra.mxu0 %v2227
      %2300 = vmatprep.subr.bf16.mxu0 0
      %2301 = vmatpush1.bf16.msra.mxu0 %v2228
      %2302 = vmatprep.subr.bf16.mxu0 0
      %2303 = vmatpush1.bf16.msra.mxu0 %v2229
      %2304 = vmatprep.subr.bf16.mxu0 0
      %2305 = vmatpush1.bf16.msra.mxu0 %v2230
      %2306 = vmatprep.subr.bf16.mxu0 0
      %2307 = vmatpush1.bf16.msra.mxu0 %v2231
      %2308 = vmatprep.subr.bf16.mxu0 0
      %2309 = vmatpush1.bf16.msra.mxu0 %v2232
      %2310 = vmatprep.subr.bf16.mxu0 0
      %2311 = vmatpush1.bf16.msra.mxu0 %v2233
      %2312 = vmatprep.subr.bf16.mxu0 0
      %2313 = vmatpush1.bf16.msra.mxu0 %v2234
      %2314 = vmatprep.subr.bf16.mxu0 0
      %2315 = vmatpush1.bf16.msra.mxu0 %v2235
      %2316 = vmatprep.mubr.bf16.mxu0 %v2079
      %2317 = vmatmul.mubr.bf16.gmra.mrb[0].mxu0 %v2078
      %v2318 = vpop.f32.mrb[0].mxu0
      %v2319 = vadd.f32 %v2090, %v2318
      %v2320 = vpop.f32.mrb[0].mxu0
      %v2321 = vpop.f32.mrb[0].mxu0
      %v2322 = vadd.f32 %v2090, %v2321
      %v2323 = vpop.f32.mrb[0].mxu0
      %2324 = vmatprep.mubr.bf16.mxu0 %v2083
      %2325 = vmatmul.mubr.bf16.gmra.mrb[0].mxu0 %v2082
      %v2326 = vpop.f32.mrb[0].mxu0
      %v2327 = vadd.f32 %v2090, %v2326
      %v2328 = vpop.f32.mrb[0].mxu0
      %v2329 = vpop.f32.mrb[0].mxu0
      %v2330 = vpop.f32.mrb[0].mxu0
      %2331 = vdwg.mxu0
      %2332 = vmatprep.subr.bf16.mxu0 0
      %2333 = vmatpush1.bf16.msra.mxu0 %v2236
      %2334 = vmatprep.subr.bf16.mxu0 0
      %2335 = vmatpush1.bf16.msra.mxu0 %v2237
      %2336 = vmatprep.subr.bf16.mxu0 0
      %2337 = vmatpush1.bf16.msra.mxu0 %v2238
      %2338 = vmatprep.subr.bf16.mxu0 0
      %2339 = vmatpush1.bf16.msra.mxu0 %v2239
      %2340 = vmatprep.subr.bf16.mxu0 0
      %2341 = vmatpush1.bf16.msra.mxu0 %v2240
      %2342 = vmatprep.subr.bf16.mxu0 0
      %2343 = vmatpush1.bf16.msra.mxu0 %v2241
      %2344 = vmatprep.subr.bf16.mxu0 0
      %2345 = vmatpush1.bf16.msra.mxu0 %v2242
      %2346 = vmatprep.subr.bf16.mxu0 0
      %2347 = vmatpush1.bf16.msra.mxu0 %v2243
      %2348 = vmatprep.subr.bf16.mxu0 0
      %2349 = vmatpush1.bf16.msra.mxu0 %v2244
      %2350 = vmatprep.subr.bf16.mxu0 0
      %2351 = vmatpush1.bf16.msra.mxu0 %v2245
      %2352 = vmatprep.subr.bf16.mxu0 0
      %2353 = vmatpush1.bf16.msra.mxu0 %v2246
      %2354 = vmatprep.subr.bf16.mxu0 0
      %2355 = vmatpush1.bf16.msra.mxu0 %v2247
      %2356 = vmatprep.subr.bf16.mxu0 0
      %2357 = vmatpush1.bf16.msra.mxu0 %v2248
      %2358 = vmatprep.subr.bf16.mxu0 0
      %2359 = vmatpush1.bf16.msra.mxu0 %v2249
      %2360 = vmatprep.subr.bf16.mxu0 0
      %2361 = vmatpush1.bf16.msra.mxu0 %v2250
      %2362 = vmatprep.subr.bf16.mxu0 0
      %2363 = vmatpush1.bf16.msra.mxu0 %v2251
      %2364 = vmatprep.mubr.bf16.mxu0 %v2081
      %2365 = vmatmul.mubr.bf16.gmra.mrb[0].mxu0 %v2080
      %v2366 = vpop.f32.mrb[0].mxu0
      %v2367 = vadd.f32 %v2319, %v2366
      %v2368 = vpop.f32.mrb[0].mxu0
      %v2369 = vpop.f32.mrb[0].mxu0
      %v2370 = vadd.f32 %v2322, %v2369
      %v2371 = vpop.f32.mrb[0].mxu0
      %2372 = vmatprep.mubr.bf16.mxu0 %v2085
      %2373 = vmatmul.mubr.bf16.gmra.mrb[0].mxu0 %v2084
      %v2374 = vpop.f32.mrb[0].mxu0
      %v2375 = vadd.f32 %v2327, %v2374
      %v2376 = vpop.f32.mrb[0].mxu0
      %v2377 = vpop.f32.mrb[0].mxu0
      %v2378 = vpop.f32.mrb[0].mxu0
      %2379 = vdwg.mxu0
      %v2380 = vadd.f32 %v1529, %v2367
      %v2381 = vadd.f32 %v1530, %v2370
      %v2382 = vadd.f32 %v1531, %v2375
      %s2383 = scalar_lea.vmem %s3, 1
      %v2384 = vld [vmem:[%s2383] sm:$0x1]
      %s2385 = scalar_lea.vmem %s4, 1
      %v2386 = vld [vmem:[%s2385] sm:$0x1]
      %2387 = vadd.xlane.f32.xlu0 %v2380
      %v2388 = vpop.xlane.xlu0 %2387
      %2389 = vadd.xlane.f32.xlu0 %v2381
      %v2390 = vpop.xlane.xlu0 %2389
      %v2391 = vsel %vm674, %v2382, 0.0
      %2392 = vadd.xlane.f32.xlu0 %v2391
      %v2393 = vpop.xlane.xlu0 %2392
      %v2394 = vmul.f32 %v2388, %v678
      %v2395 = vmul.f32 %v2390, %v678
      %v2396 = vmul.f32 %v2393, %v678
      %v2397 = vsub.f32 %v2380, %v2394
      %v2398 = vsub.f32 %v2381, %v2395
      %v2399 = vsub.f32 %v2382, %v2396
      %v2400 = vmul.f32 %v2397, %v2397
      %v2401 = vmul.f32 %v2398, %v2398
      %v2402 = vmul.f32 %v2399, %v2399
      %2403 = vadd.xlane.f32.xlu0 %v2400
      %v2404 = vpop.xlane.xlu0 %2403
      %2405 = vadd.xlane.f32.xlu0 %v2401
      %v2406 = vpop.xlane.xlu0 %2405
      %v2407 = vsel %vm674, %v2402, 0.0
      %2408 = vadd.xlane.f32.xlu0 %v2407
      %v2409 = vpop.xlane.xlu0 %2408
      %v2410 = vmul.f32 %v2404, %v678
      %v2411 = vmul.f32 %v2406, %v678
      %v2412 = vmul.f32 %v2409, %v678
      %v2413 = vadd.f32 %v2410, 1e-06
      %v2414 = vadd.f32 %v2411, 1e-06
      %v2415 = vadd.f32 %v2412, 1e-06
      %v2416 = vrsqrt.pop %v2413
      %v2417 = vrsqrt.pop %v2414
      %v2418 = vrsqrt.pop %v2415
      %v2419 = vmul.f32 %v2397, %v2416
      %v2420 = vmul.f32 %v2398, %v2417
      %v2421 = vmul.f32 %v2399, %v2418
      %v2423 = vlaneseq
      %v2424 = vshrl.u32 %v2423, 7
      %v2425 = vsub.s32 0, %v2424
      %v2426 = vrot.slane %v2384, %v2425
      %v2428 = vmul.f32 %v2419, %v2426
      %v2429 = vmul.f32 %v2420, %v2426
      %v2430 = vmul.f32 %v2421, %v2426
      %v2432 = vlaneseq
      %v2433 = vshrl.u32 %v2432, 7
      %v2434 = vsub.s32 0, %v2433
      %v2435 = vrot.slane %v2386, %v2434
      %v2437 = vadd.f32 %v2428, %v2435
      %v2438 = vadd.f32 %v2429, %v2435
      %v2439 = vadd.f32 %v2430, %v2435
      %s2440 = scalar_lea.vmem %s5, 192
      %v2441 = vld [vmem:[%s2440] sm:$0xff]
      %v2442 = vld [vmem:[%s2440 + $0x8] sm:$0xf]
      %v2443 = vld [vmem:[%s2440 + $0xc] sm:$0xff]
      %v2444 = vld [vmem:[%s2440 + $0x14] sm:$0xf]
      %v2445 = vld [vmem:[%s2440 + $0x18] sm:$0xff]
      %v2446 = vld [vmem:[%s2440 + $0x20] sm:$0xf]
      %v2447 = vld [vmem:[%s2440 + $0x24] sm:$0xff]
      %v2448 = vld [vmem:[%s2440 + $0x2c] sm:$0xf]
      %v2449 = vld [vmem:[%s2440 + $0x30] sm:$0xff]
      %v2450 = vld [vmem:[%s2440 + $0x38] sm:$0xf]
      %v2451 = vld [vmem:[%s2440 + $0x3c] sm:$0xff]
      %v2452 = vld [vmem:[%s2440 + $0x44] sm:$0xf]
      %v2453 = vld [vmem:[%s2440 + $0x48] sm:$0xff]
      %v2454 = vld [vmem:[%s2440 + $0x50] sm:$0xf]
      %v2455 = vld [vmem:[%s2440 + $0x54] sm:$0xff]
      %v2456 = vld [vmem:[%s2440 + $0x5c] sm:$0xf]
      %v2457 = vld [vmem:[%s2440 + $0x60] sm:$0xff]
      %v2458 = vld [vmem:[%s2440 + $0x68] sm:$0xf]
      %v2459 = vld [vmem:[%s2440 + $0x6c] sm:$0xff]
      %v2460 = vld [vmem:[%s2440 + $0x74] sm:$0xf]
      %v2461 = vld [vmem:[%s2440 + $0x78] sm:$0xff]
      %v2462 = vld [vmem:[%s2440 + $0x80] sm:$0xf]
      %v2463 = vld [vmem:[%s2440 + $0x84] sm:$0xff]
      %v2464 = vld [vmem:[%s2440 + $0x8c] sm:$0xf]
      %v2465 = vld [vmem:[%s2440 + $0x90] sm:$0xff]
      %v2466 = vld [vmem:[%s2440 + $0x98] sm:$0xf]
      %v2467 = vld [vmem:[%s2440 + $0x9c] sm:$0xff]
      %v2468 = vld [vmem:[%s2440 + $0xa4] sm:$0xf]
      %v2469 = vld [vmem:[%s2440 + $0xa8] sm:$0xff]
      %v2470 = vld [vmem:[%s2440 + $0xb0] sm:$0xf]
      %v2471 = vld [vmem:[%s2440 + $0xb4] sm:$0xff]
      %v2472 = vld [vmem:[%s2440 + $0xbc] sm:$0xf]
      %s2473 = scalar_lea.vmem %s6, 3
      %v2474 = vld [vmem:[%s2473] sm:$0x7]
      %v2475 = vpack.c.bf16 %v2438, %v2437
      %v2476 = vpack.c.bf16 %v2439, %v2439
      %v2478 = vlaneseq
      %v2479 = vshrl.u32 %v2478, 7
      %v2480 = vsub.s32 0, %v2479
      %v2481 = vrot.slane %v2474, %v2480
      %v2482 = vlaneseq
      %v2483 = vshrl.u32 %v2482, 7
      %v2484 = vsub.s32 1, %v2483
      %v2485 = vrot.slane %v2474, %v2484
      %v2486 = vlaneseq
      %v2487 = vshrl.u32 %v2486, 7
      %v2488 = vsub.s32 2, %v2487
      %v2489 = vrot.slane %v2474, %v2488
      %v2525 = vunpack.c.l.b16 %v2441
      %v2526 = vunpack.c.h.b16 %v2441
      %v2527 = vunpack.c.l.b16 %v2442
      %v2528 = vunpack.c.l.b16 %v2443
      %v2529 = vunpack.c.h.b16 %v2443
      %v2530 = vunpack.c.l.b16 %v2444
      %v2531 = vunpack.c.l.b16 %v2445
      %v2532 = vunpack.c.h.b16 %v2445
      %v2533 = vunpack.c.l.b16 %v2446
      %v2534 = vunpack.c.l.b16 %v2447
      %v2535 = vunpack.c.h.b16 %v2447
      %v2536 = vunpack.c.l.b16 %v2448
      %v2537 = vunpack.c.l.b16 %v2449
      %v2538 = vunpack.c.h.b16 %v2449
      %v2539 = vunpack.c.l.b16 %v2450
      %v2540 = vunpack.c.l.b16 %v2451
      %v2541 = vunpack.c.h.b16 %v2451
      %v2542 = vunpack.c.l.b16 %v2452
      %v2543 = vunpack.c.l.b16 %v2453
      %v2544 = vunpack.c.h.b16 %v2453
      %v2545 = vunpack.c.l.b16 %v2454
      %v2546 = vunpack.c.l.b16 %v2455
      %v2547 = vunpack.c.h.b16 %v2455
      %v2548 = vunpack.c.l.b16 %v2456
      %v2549 = vunpack.c.l.b16 %v2457
      %v2550 = vunpack.c.h.b16 %v2457
      %v2551 = vunpack.c.l.b16 %v2458
      %v2552 = vunpack.c.l.b16 %v2459
      %v2553 = vunpack.c.h.b16 %v2459
      %v2554 = vunpack.c.l.b16 %v2460
      %v2555 = vunpack.c.l.b16 %v2461
      %v2556 = vunpack.c.h.b16 %v2461
      %v2557 = vunpack.c.l.b16 %v2462
      %v2558 = vunpack.c.l.b16 %v2463
      %v2559 = vunpack.c.h.b16 %v2463
      %v2560 = vunpack.c.l.b16 %v2464
      %v2561 = vunpack.c.l.b16 %v2465
      %v2562 = vunpack.c.h.b16 %v2465
      %v2563 = vunpack.c.l.b16 %v2466
      %v2564 = vunpack.c.l.b16 %v2467
      %v2565 = vunpack.c.h.b16 %v2467
      %v2566 = vunpack.c.l.b16 %v2468
      %v2567 = vunpack.c.l.b16 %v2469
      %v2568 = vunpack.c.h.b16 %v2469
      %v2569 = vunpack.c.l.b16 %v2470
      %v2570 = vunpack.c.l.b16 %v2471
      %v2571 = vunpack.c.h.b16 %v2471
      %v2572 = vunpack.c.l.b16 %v2472
      %v2573 = vpack.c.b16 %v2528, %v2525
      %v2574 = vpack.c.b16 %v2529, %v2526
      %v2575 = vpack.c.b16 %v2530, %v2527
      %v2576 = vpack.c.b16 %v2534, %v2531
      %v2577 = vpack.c.b16 %v2535, %v2532
      %v2578 = vpack.c.b16 %v2536, %v2533
      %v2579 = vpack.c.b16 %v2540, %v2537
      %v2580 = vpack.c.b16 %v2541, %v2538
      %v2581 = vpack.c.b16 %v2542, %v2539
      %v2582 = vpack.c.b16 %v2546, %v2543
      %v2583 = vpack.c.b16 %v2547, %v2544
      %v2584 = vpack.c.b16 %v2548, %v2545
      %v2585 = vpack.c.b16 %v2552, %v2549
      %v2586 = vpack.c.b16 %v2553, %v2550
      %v2587 = vpack.c.b16 %v2554, %v2551
      %v2588 = vpack.c.b16 %v2558, %v2555
      %v2589 = vpack.c.b16 %v2559, %v2556
      %v2590 = vpack.c.b16 %v2560, %v2557
      %v2591 = vpack.c.b16 %v2564, %v2561
      %v2592 = vpack.c.b16 %v2565, %v2562
      %v2593 = vpack.c.b16 %v2566, %v2563
      %v2594 = vpack.c.b16 %v2570, %v2567
      %v2595 = vpack.c.b16 %v2571, %v2568
      %v2596 = vpack.c.b16 %v2572, %v2569
      %2621 = vmatprep.subr.bf16.mxu0 %v2574
      %2622 = vmatpush1.bf16.msra.mxu0 %v2573
      %2623 = vmatprep.subr.bf16.mxu0 %v2577
      %2624 = vmatpush1.bf16.msra.mxu0 %v2576
      %2625 = vmatprep.subr.bf16.mxu0 %v2580
      %2626 = vmatpush1.bf16.msra.mxu0 %v2579
      %2627 = vmatprep.subr.bf16.mxu0 %v2583
      %2628 = vmatpush1.bf16.msra.mxu0 %v2582
      %2629 = vmatprep.subr.bf16.mxu0 %v2586
      %2630 = vmatpush1.bf16.msra.mxu0 %v2585
      %2631 = vmatprep.subr.bf16.mxu0 %v2589
      %2632 = vmatpush1.bf16.msra.mxu0 %v2588
      %2633 = vmatprep.subr.bf16.mxu0 %v2592
      %2634 = vmatpush1.bf16.msra.mxu0 %v2591
      %2635 = vmatprep.subr.bf16.mxu0 %v2595
      %2636 = vmatpush1.bf16.msra.mxu0 %v2594
      %2637 = vmatprep.subr.bf16.mxu0 0
      %2638 = vmatpush1.bf16.msra.mxu0 0
      %2639 = vmatprep.subr.bf16.mxu0 0
      %2640 = vmatpush1.bf16.msra.mxu0 0
      %2641 = vmatprep.subr.bf16.mxu0 0
      %2642 = vmatpush1.bf16.msra.mxu0 0
      %2643 = vmatprep.subr.bf16.mxu0 0
      %2644 = vmatpush1.bf16.msra.mxu0 0
      %2645 = vmatprep.subr.bf16.mxu0 0
      %2646 = vmatpush1.bf16.msra.mxu0 0
      %2647 = vmatprep.subr.bf16.mxu0 0
      %2648 = vmatpush1.bf16.msra.mxu0 0
      %2649 = vmatprep.subr.bf16.mxu0 0
      %2650 = vmatpush1.bf16.msra.mxu0 0
      %2651 = vmatprep.subr.bf16.mxu0 0
      %2652 = vmatpush1.bf16.msra.mxu0 0
      %2653 = vmatprep.mubr.bf16.mxu0 0
      %2654 = vmatmul.mubr.bf16.gmra.mrb[0].mxu0 %v2475
      %v2655 = vpop.f32.mrb[0].mxu0
      %v2656 = vadd.f32 %v2481, %v2655
      %v2657 = vpop.f32.mrb[0].mxu0
      %v2658 = vadd.f32 %v2485, %v2657
      %v2659 = vpop.f32.mrb[0].mxu0
      %v2660 = vadd.f32 %v2481, %v2659
      %v2661 = vpop.f32.mrb[0].mxu0
      %v2662 = vadd.f32 %v2485, %v2661
      %2663 = vmatprep.mubr.bf16.mxu0 0
      %2664 = vmatmul.mubr.bf16.gmra.mrb[0].mxu0 %v2476
      %v2665 = vpop.f32.mrb[0].mxu0
      %v2666 = vadd.f32 %v2481, %v2665
      %v2667 = vpop.f32.mrb[0].mxu0
      %v2668 = vadd.f32 %v2485, %v2667
      %v2669 = vpop.f32.mrb[0].mxu0
      %v2670 = vpop.f32.mrb[0].mxu0
      %2671 = vdwg.mxu0
      %2672 = vmatprep.subr.bf16.mxu0 0
      %2673 = vmatpush1.bf16.msra.mxu0 %v2575
      %2674 = vmatprep.subr.bf16.mxu0 0
      %2675 = vmatpush1.bf16.msra.mxu0 %v2578
      %2676 = vmatprep.subr.bf16.mxu0 0
      %2677 = vmatpush1.bf16.msra.mxu0 %v2581
      %2678 = vmatprep.subr.bf16.mxu0 0
      %2679 = vmatpush1.bf16.msra.mxu0 %v2584
      %2680 = vmatprep.subr.bf16.mxu0 0
      %2681 = vmatpush1.bf16.msra.mxu0 %v2587
      %2682 = vmatprep.subr.bf16.mxu0 0
      %2683 = vmatpush1.bf16.msra.mxu0 %v2590
      %2684 = vmatprep.subr.bf16.mxu0 0
      %2685 = vmatpush1.bf16.msra.mxu0 %v2593
      %2686 = vmatprep.subr.bf16.mxu0 0
      %2687 = vmatpush1.bf16.msra.mxu0 %v2596
      %2688 = vmatprep.subr.bf16.mxu0 0
      %2689 = vmatpush1.bf16.msra.mxu0 0
      %2690 = vmatprep.subr.bf16.mxu0 0
      %2691 = vmatpush1.bf16.msra.mxu0 0
      %2692 = vmatprep.subr.bf16.mxu0 0
      %2693 = vmatpush1.bf16.msra.mxu0 0
      %2694 = vmatprep.subr.bf16.mxu0 0
      %2695 = vmatpush1.bf16.msra.mxu0 0
      %2696 = vmatprep.subr.bf16.mxu0 0
      %2697 = vmatpush1.bf16.msra.mxu0 0
      %2698 = vmatprep.subr.bf16.mxu0 0
      %2699 = vmatpush1.bf16.msra.mxu0 0
      %2700 = vmatprep.subr.bf16.mxu0 0
      %2701 = vmatpush1.bf16.msra.mxu0 0
      %2702 = vmatprep.subr.bf16.mxu0 0
      %2703 = vmatpush1.bf16.msra.mxu0 0
      %2704 = vmatprep.mubr.bf16.mxu0 0
      %2705 = vmatmul.mubr.bf16.gmra.mrb[0].mxu0 %v2475
      %v2706 = vpop.f32.mrb[0].mxu0
      %v2707 = vadd.f32 %v2489, %v2706
      %v2708 = vpop.f32.mrb[0].mxu0
      %v2709 = vpop.f32.mrb[0].mxu0
      %v2710 = vadd.f32 %v2489, %v2709
      %v2711 = vpop.f32.mrb[0].mxu0
      %2712 = vmatprep.mubr.bf16.mxu0 0
      %2713 = vmatmul.mubr.bf16.gmra.mrb[0].mxu0 %v2476
      %v2714 = vpop.f32.mrb[0].mxu0
      %v2715 = vadd.f32 %v2489, %v2714
      %v2716 = vpop.f32.mrb[0].mxu0
      %v2717 = vpop.f32.mrb[0].mxu0
      %v2718 = vpop.f32.mrb[0].mxu0
      %2719 = vdwg.mxu0
      %s2720 = scalar_lea.vmem %s7, 64
      %v2721 = vld [vmem:[%s2720] sm:$0xf]
      %v2722 = vld [vmem:[%s2720 + $0x4] sm:$0xf]
      %v2723 = vld [vmem:[%s2720 + $0x8] sm:$0xf]
      %v2724 = vld [vmem:[%s2720 + $0xc] sm:$0xf]
      %v2725 = vld [vmem:[%s2720 + $0x10] sm:$0xf]
      %v2726 = vld [vmem:[%s2720 + $0x14] sm:$0xf]
      %v2727 = vld [vmem:[%s2720 + $0x18] sm:$0xf]
      %v2728 = vld [vmem:[%s2720 + $0x1c] sm:$0xf]
      %v2729 = vld [vmem:[%s2720 + $0x20] sm:$0xf]
      %v2730 = vld [vmem:[%s2720 + $0x24] sm:$0xf]
      %v2731 = vld [vmem:[%s2720 + $0x28] sm:$0xf]
      %v2732 = vld [vmem:[%s2720 + $0x2c] sm:$0xf]
      %v2733 = vld [vmem:[%s2720 + $0x30] sm:$0xf]
      %v2734 = vld [vmem:[%s2720 + $0x34] sm:$0xf]
      %v2735 = vld [vmem:[%s2720 + $0x38] sm:$0xf]
      %v2736 = vld [vmem:[%s2720 + $0x3c] sm:$0xf]
      %v2737 = vpack.c.bf16 %v2660, %v2656
      %v2738 = vpack.c.bf16 %v2666, %v2666
      %v2739 = vpack.c.bf16 %v2662, %v2658
      %v2740 = vpack.c.bf16 %v2668, %v2668
      %v2741 = vpack.c.bf16 %v2710, %v2707
      %v2742 = vpack.c.bf16 %v2715, %v2715
      %v2744 = vsel %vm1025, %v2737, 0
      %v2747 = vsel %vm1025, %v2738, 0
      %v2750 = vsel %vm1025, %v2739, 0
      %v2753 = vsel %vm1025, %v2740, 0
      %2755 = vmatprep.subr.bf16.mxu0 0
      %2756 = vmatpush1.bf16.xpose.msra.mxu0 %v2750
      %2757 = vmatprep.subr.bf16.mxu0 0
      %2758 = vmatpush1.bf16.xpose.msra.mxu0 %v2753
      %2759 = vmatprep.subr.bf16.mxu0 0
      %2760 = vmatpush1.bf16.xpose.msra.mxu0 0
      %2761 = vmatprep.subr.bf16.mxu0 0
      %2762 = vmatpush1.bf16.xpose.msra.mxu0 0
      %2763 = vmatprep.subr.bf16.mxu0 0
      %2764 = vmatpush1.bf16.xpose.msra.mxu0 0
      %2765 = vmatprep.subr.bf16.mxu0 0
      %2766 = vmatpush1.bf16.xpose.msra.mxu0 0
      %2767 = vmatprep.subr.bf16.mxu0 0
      %2768 = vmatpush1.bf16.xpose.msra.mxu0 0
      %2769 = vmatprep.subr.bf16.mxu0 0
      %2770 = vmatpush1.bf16.xpose.msra.mxu0 0
      %2771 = vmatprep.subr.bf16.mxu0 0
      %2772 = vmatpush1.bf16.xpose.msra.mxu0 0
      %2773 = vmatprep.subr.bf16.mxu0 0
      %2774 = vmatpush1.bf16.xpose.msra.mxu0 0
      %2775 = vmatprep.subr.bf16.mxu0 0
      %2776 = vmatpush1.bf16.xpose.msra.mxu0 0
      %2777 = vmatprep.subr.bf16.mxu0 0
      %2778 = vmatpush1.bf16.xpose.msra.mxu0 0
      %2779 = vmatprep.subr.bf16.mxu0 0
      %2780 = vmatpush1.bf16.xpose.msra.mxu0 0
      %2781 = vmatprep.subr.bf16.mxu0 0
      %2782 = vmatpush1.bf16.xpose.msra.mxu0 0
      %2783 = vmatprep.subr.bf16.mxu0 0
      %2784 = vmatpush1.bf16.xpose.msra.mxu0 0
      %2785 = vmatprep.subr.bf16.mxu0 0
      %2786 = vmatpush1.bf16.xpose.msra.mxu0 0
      %2787 = vmatprep.mubr.bf16.mxu0 0
      %2788 = vmatmul.mubr.bf16.gmra.mrb[0].mxu0 %v2744
      %v2789 = vpop.f32.mrb[0].mxu0
      %v2790 = vadd.f32 0.0, %v2789
      %v2791 = vpop.f32.mrb[0].mxu0
      %v2792 = vpop.f32.mrb[0].mxu0
      %v2793 = vadd.f32 0.0, %v2792
      %v2794 = vpop.f32.mrb[0].mxu0
      %2795 = vmatprep.mubr.bf16.mxu0 0
      %2796 = vmatmul.mubr.bf16.gmra.mrb[0].mxu0 %v2747
      %v2797 = vpop.f32.mrb[0].mxu0
      %v2798 = vadd.f32 0.0, %v2797
      %v2799 = vpop.f32.mrb[0].mxu0
      %v2800 = vpop.f32.mrb[0].mxu0
      %v2801 = vpop.f32.mrb[0].mxu0
      %2802 = vdwg.mxu0
      %v2803 = vmul.f32 %v2790, 0.125
      %v2804 = vmul.f32 %v2793, 0.125
      %v2805 = vmul.f32 %v2798, 0.125
      %v2806 = vsel %vm1089, %v2803, -inf
      %2807 = vmax.xlane.f32.xlu0 %v2806
      %v2808 = vpop.xlane.xlu0 %2807
      %v2809 = vsel %vm1089, %v2804, -inf
      %2810 = vmax.xlane.f32.xlu0 %v2809
      %v2811 = vpop.xlane.xlu0 %2810
      %v2812 = vsel %vm1096, %v2805, -inf
      %2813 = vmax.xlane.f32.xlu0 %v2812
      %v2814 = vpop.xlane.xlu0 %2813
      %v2815 = vsub.f32 %v2803, %v2808
      %v2816 = vsub.f32 %v2804, %v2811
      %v2817 = vsub.f32 %v2805, %v2814
      %v2818 = vmul.f32 %v2815, 1.442695
      %v2819 = vpow.pop %v2818
      %v2820 = vmul.f32 %v2816, 1.442695
      %v2821 = vpow.pop %v2820
      %v2822 = vmul.f32 %v2817, 1.442695
      %v2823 = vpow.pop %v2822
      %v2824 = vsel %vm1089, %v2819, 0.0
      %2825 = vadd.xlane.f32.xlu0 %v2824
      %v2826 = vpop.xlane.xlu0 %2825
      %v2827 = vsel %vm1089, %v2821, 0.0
      %2828 = vadd.xlane.f32.xlu0 %v2827
      %v2829 = vpop.xlane.xlu0 %2828
      %v2830 = vsel %vm1096, %v2823, 0.0
      %2831 = vadd.xlane.f32.xlu0 %v2830
      %v2832 = vpop.xlane.xlu0 %2831
      %v2833 = vrcp.pop %v2826
      %v2834 = vrcp.pop %v2829
      %v2835 = vrcp.pop %v2832
      %v2836 = vmul.f32 %v2819, %v2833
      %v2837 = vmul.f32 %v2821, %v2834
      %v2838 = vmul.f32 %v2823, %v2835
      %v2839 = vpack.c.bf16 %v2837, %v2836
      %v2840 = vpack.c.bf16 %v2838, %v2838
      %v2842 = vsel %vm1089, %v2839, 0
      %v2845 = vsel %vm1089, %v2840, 0
      %v2848 = vand.u32 %v2742, %v1133
      %2850 = vmatprep.subr.bf16.mxu0 0
      %2851 = vmatpush1.bf16.msra.mxu0 %v2741
      %2852 = vmatprep.subr.bf16.mxu0 0
      %2853 = vmatpush1.bf16.msra.mxu0 %v2848
      %2854 = vmatprep.subr.bf16.mxu0 0
      %2855 = vmatpush1.bf16.msra.mxu0 0
      %2856 = vmatprep.subr.bf16.mxu0 0
      %2857 = vmatpush1.bf16.msra.mxu0 0
      %2858 = vmatprep.subr.bf16.mxu0 0
      %2859 = vmatpush1.bf16.msra.mxu0 0
      %2860 = vmatprep.subr.bf16.mxu0 0
      %2861 = vmatpush1.bf16.msra.mxu0 0
      %2862 = vmatprep.subr.bf16.mxu0 0
      %2863 = vmatpush1.bf16.msra.mxu0 0
      %2864 = vmatprep.subr.bf16.mxu0 0
      %2865 = vmatpush1.bf16.msra.mxu0 0
      %2866 = vmatprep.subr.bf16.mxu0 0
      %2867 = vmatpush1.bf16.msra.mxu0 0
      %2868 = vmatprep.subr.bf16.mxu0 0
      %2869 = vmatpush1.bf16.msra.mxu0 0
      %2870 = vmatprep.subr.bf16.mxu0 0
      %2871 = vmatpush1.bf16.msra.mxu0 0
      %2872 = vmatprep.subr.bf16.mxu0 0
      %2873 = vmatpush1.bf16.msra.mxu0 0
      %2874 = vmatprep.subr.bf16.mxu0 0
      %2875 = vmatpush1.bf16.msra.mxu0 0
      %2876 = vmatprep.subr.bf16.mxu0 0
      %2877 = vmatpush1.bf16.msra.mxu0 0
      %2878 = vmatprep.subr.bf16.mxu0 0
      %2879 = vmatpush1.bf16.msra.mxu0 0
      %2880 = vmatprep.subr.bf16.mxu0 0
      %2881 = vmatpush1.bf16.msra.mxu0 0
      %2882 = vmatprep.mubr.bf16.mxu0 0
      %2883 = vmatmul.mubr.bf16.gmra.mrb[0].mxu0 %v2842
      %v2884 = vpop.f32.mrb[0].mxu0
      %v2885 = vadd.f32 0.0, %v2884
      %v2886 = vpop.f32.mrb[0].mxu0
      %v2887 = vpop.f32.mrb[0].mxu0
      %v2888 = vadd.f32 0.0, %v2887
      %v2889 = vpop.f32.mrb[0].mxu0
      %2890 = vmatprep.mubr.bf16.mxu0 0
      %2891 = vmatmul.mubr.bf16.gmra.mrb[0].mxu0 %v2845
      %v2892 = vpop.f32.mrb[0].mxu0
      %v2893 = vadd.f32 0.0, %v2892
      %v2894 = vpop.f32.mrb[0].mxu0
      %v2895 = vpop.f32.mrb[0].mxu0
      %v2896 = vpop.f32.mrb[0].mxu0
      %2897 = vdwg.mxu0
      %v2898 = vpack.c.bf16 %v2888, %v2885
      %v2899 = vpack.c.bf16 %v2893, %v2893
      %2902 = vrot.lane.b32.xlu0 %v2737, 64
      %v2903 = vpop.permute.xlu0 %2902
      %2904 = vrot.lane.b32.xlu0 %v2738, 64
      %v2905 = vpop.permute.xlu0 %2904
      %2908 = vrot.lane.b32.xlu0 %v2739, 64
      %v2909 = vpop.permute.xlu0 %2908
      %2910 = vrot.lane.b32.xlu0 %v2740, 64
      %v2911 = vpop.permute.xlu0 %2910
      %v2913 = vsel %vm1025, %v2903, 0
      %v2916 = vsel %vm1025, %v2905, 0
      %v2919 = vsel %vm1025, %v2909, 0
      %v2922 = vsel %vm1025, %v2911, 0
      %2924 = vmatprep.subr.bf16.mxu0 0
      %2925 = vmatpush1.bf16.xpose.msra.mxu0 %v2919
      %2926 = vmatprep.subr.bf16.mxu0 0
      %2927 = vmatpush1.bf16.xpose.msra.mxu0 %v2922
      %2928 = vmatprep.subr.bf16.mxu0 0
      %2929 = vmatpush1.bf16.xpose.msra.mxu0 0
      %2930 = vmatprep.subr.bf16.mxu0 0
      %2931 = vmatpush1.bf16.xpose.msra.mxu0 0
      %2932 = vmatprep.subr.bf16.mxu0 0
      %2933 = vmatpush1.bf16.xpose.msra.mxu0 0
      %2934 = vmatprep.subr.bf16.mxu0 0
      %2935 = vmatpush1.bf16.xpose.msra.mxu0 0
      %2936 = vmatprep.subr.bf16.mxu0 0
      %2937 = vmatpush1.bf16.xpose.msra.mxu0 0
      %2938 = vmatprep.subr.bf16.mxu0 0
      %2939 = vmatpush1.bf16.xpose.msra.mxu0 0
      %2940 = vmatprep.subr.bf16.mxu0 0
      %2941 = vmatpush1.bf16.xpose.msra.mxu0 0
      %2942 = vmatprep.subr.bf16.mxu0 0
      %2943 = vmatpush1.bf16.xpose.msra.mxu0 0
      %2944 = vmatprep.subr.bf16.mxu0 0
      %2945 = vmatpush1.bf16.xpose.msra.mxu0 0
      %2946 = vmatprep.subr.bf16.mxu0 0
      %2947 = vmatpush1.bf16.xpose.msra.mxu0 0
      %2948 = vmatprep.subr.bf16.mxu0 0
      %2949 = vmatpush1.bf16.xpose.msra.mxu0 0
      %2950 = vmatprep.subr.bf16.mxu0 0
      %2951 = vmatpush1.bf16.xpose.msra.mxu0 0
      %2952 = vmatprep.subr.bf16.mxu0 0
      %2953 = vmatpush1.bf16.xpose.msra.mxu0 0
      %2954 = vmatprep.subr.bf16.mxu0 0
      %2955 = vmatpush1.bf16.xpose.msra.mxu0 0
      %2956 = vmatprep.mubr.bf16.mxu0 0
      %2957 = vmatmul.mubr.bf16.gmra.mrb[0].mxu0 %v2913
      %v2958 = vpop.f32.mrb[0].mxu0
      %v2959 = vadd.f32 0.0, %v2958
      %v2960 = vpop.f32.mrb[0].mxu0
      %v2961 = vpop.f32.mrb[0].mxu0
      %v2962 = vadd.f32 0.0, %v2961
      %v2963 = vpop.f32.mrb[0].mxu0
      %2964 = vmatprep.mubr.bf16.mxu0 0
      %2965 = vmatmul.mubr.bf16.gmra.mrb[0].mxu0 %v2916
      %v2966 = vpop.f32.mrb[0].mxu0
      %v2967 = vadd.f32 0.0, %v2966
      %v2968 = vpop.f32.mrb[0].mxu0
      %v2969 = vpop.f32.mrb[0].mxu0
      %v2970 = vpop.f32.mrb[0].mxu0
      %2971 = vdwg.mxu0
      %v2972 = vmul.f32 %v2959, 0.125
      %v2973 = vmul.f32 %v2962, 0.125
      %v2974 = vmul.f32 %v2967, 0.125
      %v2975 = vsel %vm1089, %v2972, -inf
      %2976 = vmax.xlane.f32.xlu0 %v2975
      %v2977 = vpop.xlane.xlu0 %2976
      %v2978 = vsel %vm1089, %v2973, -inf
      %2979 = vmax.xlane.f32.xlu0 %v2978
      %v2980 = vpop.xlane.xlu0 %2979
      %v2981 = vsel %vm1096, %v2974, -inf
      %2982 = vmax.xlane.f32.xlu0 %v2981
      %v2983 = vpop.xlane.xlu0 %2982
      %v2984 = vsub.f32 %v2972, %v2977
      %v2985 = vsub.f32 %v2973, %v2980
      %v2986 = vsub.f32 %v2974, %v2983
      %v2987 = vmul.f32 %v2984, 1.442695
      %v2988 = vpow.pop %v2987
      %v2989 = vmul.f32 %v2985, 1.442695
      %v2990 = vpow.pop %v2989
      %v2991 = vmul.f32 %v2986, 1.442695
      %v2992 = vpow.pop %v2991
      %v2993 = vsel %vm1089, %v2988, 0.0
      %2994 = vadd.xlane.f32.xlu0 %v2993
      %v2995 = vpop.xlane.xlu0 %2994
      %v2996 = vsel %vm1089, %v2990, 0.0
      %2997 = vadd.xlane.f32.xlu0 %v2996
      %v2998 = vpop.xlane.xlu0 %2997
      %v2999 = vsel %vm1096, %v2992, 0.0
      %3000 = vadd.xlane.f32.xlu0 %v2999
      %v3001 = vpop.xlane.xlu0 %3000
      %v3002 = vrcp.pop %v2995
      %v3003 = vrcp.pop %v2998
      %v3004 = vrcp.pop %v3001
      %v3005 = vmul.f32 %v2988, %v3002
      %v3006 = vmul.f32 %v2990, %v3003
      %v3007 = vmul.f32 %v2992, %v3004
      %v3008 = vpack.c.bf16 %v3006, %v3005
      %v3009 = vpack.c.bf16 %v3007, %v3007
      %3012 = vrot.lane.b32.xlu0 %v2741, 64
      %v3013 = vpop.permute.xlu0 %3012
      %3014 = vrot.lane.b32.xlu0 %v2742, 64
      %v3015 = vpop.permute.xlu0 %3014
      %v3018 = vsel %vm1089, %v3008, 0
      %v3021 = vsel %vm1089, %v3009, 0
      %v3024 = vand.u32 %v3015, %v1133
      %3026 = vmatprep.subr.bf16.mxu0 0
      %3027 = vmatpush1.bf16.msra.mxu0 %v3013
      %3028 = vmatprep.subr.bf16.mxu0 0
      %3029 = vmatpush1.bf16.msra.mxu0 %v3024
      %3030 = vmatprep.subr.bf16.mxu0 0
      %3031 = vmatpush1.bf16.msra.mxu0 0
      %3032 = vmatprep.subr.bf16.mxu0 0
      %3033 = vmatpush1.bf16.msra.mxu0 0
      %3034 = vmatprep.subr.bf16.mxu0 0
      %3035 = vmatpush1.bf16.msra.mxu0 0
      %3036 = vmatprep.subr.bf16.mxu0 0
      %3037 = vmatpush1.bf16.msra.mxu0 0
      %3038 = vmatprep.subr.bf16.mxu0 0
      %3039 = vmatpush1.bf16.msra.mxu0 0
      %3040 = vmatprep.subr.bf16.mxu0 0
      %3041 = vmatpush1.bf16.msra.mxu0 0
      %3042 = vmatprep.subr.bf16.mxu0 0
      %3043 = vmatpush1.bf16.msra.mxu0 0
      %3044 = vmatprep.subr.bf16.mxu0 0
      %3045 = vmatpush1.bf16.msra.mxu0 0
      %3046 = vmatprep.subr.bf16.mxu0 0
      %3047 = vmatpush1.bf16.msra.mxu0 0
      %3048 = vmatprep.subr.bf16.mxu0 0
      %3049 = vmatpush1.bf16.msra.mxu0 0
      %3050 = vmatprep.subr.bf16.mxu0 0
      %3051 = vmatpush1.bf16.msra.mxu0 0
      %3052 = vmatprep.subr.bf16.mxu0 0
      %3053 = vmatpush1.bf16.msra.mxu0 0
      %3054 = vmatprep.subr.bf16.mxu0 0
      %3055 = vmatpush1.bf16.msra.mxu0 0
      %3056 = vmatprep.subr.bf16.mxu0 0
      %3057 = vmatpush1.bf16.msra.mxu0 0
      %3058 = vmatprep.mubr.bf16.mxu0 0
      %3059 = vmatmul.mubr.bf16.gmra.mrb[0].mxu0 %v3018
      %v3060 = vpop.f32.mrb[0].mxu0
      %v3061 = vadd.f32 0.0, %v3060
      %v3062 = vpop.f32.mrb[0].mxu0
      %v3063 = vpop.f32.mrb[0].mxu0
      %v3064 = vadd.f32 0.0, %v3063
      %v3065 = vpop.f32.mrb[0].mxu0
      %3066 = vmatprep.mubr.bf16.mxu0 0
      %3067 = vmatmul.mubr.bf16.gmra.mrb[0].mxu0 %v3021
      %v3068 = vpop.f32.mrb[0].mxu0
      %v3069 = vadd.f32 0.0, %v3068
      %v3070 = vpop.f32.mrb[0].mxu0
      %v3071 = vpop.f32.mrb[0].mxu0
      %v3072 = vpop.f32.mrb[0].mxu0
      %3073 = vdwg.mxu0
      %v3074 = vpack.c.bf16 %v3064, %v3061
      %v3075 = vpack.c.bf16 %v3069, %v3069
      %v3084 = vunpack.c.l.b16 %v2729
      %v3085 = vunpack.c.l.b16 %v2730
      %v3086 = vunpack.c.l.b16 %v2731
      %v3087 = vunpack.c.l.b16 %v2732
      %v3088 = vunpack.c.l.b16 %v2733
      %v3089 = vunpack.c.l.b16 %v2734
      %v3090 = vunpack.c.l.b16 %v2735
      %v3091 = vunpack.c.l.b16 %v2736
      %v3092 = vpack.c.b16 %v3085, %v3084
      %v3093 = vpack.c.b16 %v3087, %v3086
      %v3094 = vpack.c.b16 %v3089, %v3088
      %v3095 = vpack.c.b16 %v3091, %v3090
      %v3101 = vsel %vm1025, %v3074, 0
      %v3104 = vsel %vm1025, %v3075, 0
      %3106 = vmatprep.subr.bf16.mxu0 0
      %3107 = vmatpush1.bf16.msra.mxu0 %v3092
      %3108 = vmatprep.subr.bf16.mxu0 0
      %3109 = vmatpush1.bf16.msra.mxu0 %v3093
      %3110 = vmatprep.subr.bf16.mxu0 0
      %3111 = vmatpush1.bf16.msra.mxu0 %v3094
      %3112 = vmatprep.subr.bf16.mxu0 0
      %3113 = vmatpush1.bf16.msra.mxu0 %v3095
      %3114 = vmatprep.subr.bf16.mxu0 0
      %3115 = vmatpush1.bf16.msra.mxu0 0
      %3116 = vmatprep.subr.bf16.mxu0 0
      %3117 = vmatpush1.bf16.msra.mxu0 0
      %3118 = vmatprep.subr.bf16.mxu0 0
      %3119 = vmatpush1.bf16.msra.mxu0 0
      %3120 = vmatprep.subr.bf16.mxu0 0
      %3121 = vmatpush1.bf16.msra.mxu0 0
      %3122 = vmatprep.subr.bf16.mxu0 0
      %3123 = vmatpush1.bf16.msra.mxu0 0
      %3124 = vmatprep.subr.bf16.mxu0 0
      %3125 = vmatpush1.bf16.msra.mxu0 0
      %3126 = vmatprep.subr.bf16.mxu0 0
      %3127 = vmatpush1.bf16.msra.mxu0 0
      %3128 = vmatprep.subr.bf16.mxu0 0
      %3129 = vmatpush1.bf16.msra.mxu0 0
      %3130 = vmatprep.subr.bf16.mxu0 0
      %3131 = vmatpush1.bf16.msra.mxu0 0
      %3132 = vmatprep.subr.bf16.mxu0 0
      %3133 = vmatpush1.bf16.msra.mxu0 0
      %3134 = vmatprep.subr.bf16.mxu0 0
      %3135 = vmatpush1.bf16.msra.mxu0 0
      %3136 = vmatprep.subr.bf16.mxu0 0
      %3137 = vmatpush1.bf16.msra.mxu0 0
      %3138 = vmatprep.mubr.bf16.mxu0 0
      %3139 = vmatmul.mubr.bf16.gmra.mrb[0].mxu0 %v3101
      %v3140 = vpop.f32.mrb[0].mxu0
      %v3141 = vadd.f32 0.0, %v3140
      %v3142 = vpop.f32.mrb[0].mxu0
      %v3143 = vpop.f32.mrb[0].mxu0
      %v3144 = vadd.f32 0.0, %v3143
      %v3145 = vpop.f32.mrb[0].mxu0
      %3146 = vmatprep.mubr.bf16.mxu0 0
      %3147 = vmatmul.mubr.bf16.gmra.mrb[0].mxu0 %v3104
      %v3148 = vpop.f32.mrb[0].mxu0
      %v3149 = vadd.f32 0.0, %v3148
      %v3150 = vpop.f32.mrb[0].mxu0
      %v3151 = vpop.f32.mrb[0].mxu0
      %v3152 = vpop.f32.mrb[0].mxu0
      %3153 = vdwg.mxu0
      %v3162 = vunpack.c.l.b16 %v2721
      %v3163 = vunpack.c.l.b16 %v2722
      %v3164 = vunpack.c.l.b16 %v2723
      %v3165 = vunpack.c.l.b16 %v2724
      %v3166 = vunpack.c.l.b16 %v2725
      %v3167 = vunpack.c.l.b16 %v2726
      %v3168 = vunpack.c.l.b16 %v2727
      %v3169 = vunpack.c.l.b16 %v2728
      %v3170 = vpack.c.b16 %v3163, %v3162
      %v3171 = vpack.c.b16 %v3165, %v3164
      %v3172 = vpack.c.b16 %v3167, %v3166
      %v3173 = vpack.c.b16 %v3169, %v3168
      %v3179 = vsel %vm1025, %v2898, 0
      %v3182 = vsel %vm1025, %v2899, 0
      %3184 = vmatprep.subr.bf16.mxu0 0
      %3185 = vmatpush1.bf16.msra.mxu0 %v3170
      %3186 = vmatprep.subr.bf16.mxu0 0
      %3187 = vmatpush1.bf16.msra.mxu0 %v3171
      %3188 = vmatprep.subr.bf16.mxu0 0
      %3189 = vmatpush1.bf16.msra.mxu0 %v3172
      %3190 = vmatprep.subr.bf16.mxu0 0
      %3191 = vmatpush1.bf16.msra.mxu0 %v3173
      %3192 = vmatprep.subr.bf16.mxu0 0
      %3193 = vmatpush1.bf16.msra.mxu0 0
      %3194 = vmatprep.subr.bf16.mxu0 0
      %3195 = vmatpush1.bf16.msra.mxu0 0
      %3196 = vmatprep.subr.bf16.mxu0 0
      %3197 = vmatpush1.bf16.msra.mxu0 0
      %3198 = vmatprep.subr.bf16.mxu0 0
      %3199 = vmatpush1.bf16.msra.mxu0 0
      %3200 = vmatprep.subr.bf16.mxu0 0
      %3201 = vmatpush1.bf16.msra.mxu0 0
      %3202 = vmatprep.subr.bf16.mxu0 0
      %3203 = vmatpush1.bf16.msra.mxu0 0
      %3204 = vmatprep.subr.bf16.mxu0 0
      %3205 = vmatpush1.bf16.msra.mxu0 0
      %3206 = vmatprep.subr.bf16.mxu0 0
      %3207 = vmatpush1.bf16.msra.mxu0 0
      %3208 = vmatprep.subr.bf16.mxu0 0
      %3209 = vmatpush1.bf16.msra.mxu0 0
      %3210 = vmatprep.subr.bf16.mxu0 0
      %3211 = vmatpush1.bf16.msra.mxu0 0
      %3212 = vmatprep.subr.bf16.mxu0 0
      %3213 = vmatpush1.bf16.msra.mxu0 0
      %3214 = vmatprep.subr.bf16.mxu0 0
      %3215 = vmatpush1.bf16.msra.mxu0 0
      %3216 = vmatprep.mubr.bf16.mxu0 0
      %3217 = vmatmul.mubr.bf16.gmra.mrb[0].mxu0 %v3179
      %v3218 = vpop.f32.mrb[0].mxu0
      %v3219 = vadd.f32 %v3141, %v3218
      %v3220 = vpop.f32.mrb[0].mxu0
      %v3221 = vpop.f32.mrb[0].mxu0
      %v3222 = vadd.f32 %v3144, %v3221
      %v3223 = vpop.f32.mrb[0].mxu0
      %3224 = vmatprep.mubr.bf16.mxu0 0
      %3225 = vmatmul.mubr.bf16.gmra.mrb[0].mxu0 %v3182
      %v3226 = vpop.f32.mrb[0].mxu0
      %v3227 = vadd.f32 %v3149, %v3226
      %v3228 = vpop.f32.mrb[0].mxu0
      %v3229 = vpop.f32.mrb[0].mxu0
      %v3230 = vpop.f32.mrb[0].mxu0
      %3231 = vdwg.mxu0
      %v3232 = vadd.f32 %v2380, %v3219
      %v3233 = vadd.f32 %v2381, %v3222
      %v3234 = vadd.f32 %v2382, %v3227
      %s3235 = scalar_lea.vmem %s8, 1
      %v3236 = vld [vmem:[%s3235] sm:$0x1]
      %v3238 = vlaneseq
      %v3239 = vshrl.u32 %v3238, 7
      %v3240 = vsub.s32 0, %v3239
      %v3241 = vrot.slane %v3236, %v3240
      %v3243 = vadd.f32 %v3232, %v3241
      %v3244 = vadd.f32 %v3233, %v3241
      %v3245 = vadd.f32 %v3234, %v3241
      %s3246 = scalar_lea.vmem %s9, 1
      %v3247 = vld [vmem:[%s3246] sm:$0x1]
      %s3248 = scalar_lea.vmem %s10, 1
      %v3249 = vld [vmem:[%s3248] sm:$0x1]
      %3250 = vadd.xlane.f32.xlu0 %v3243
      %v3251 = vpop.xlane.xlu0 %3250
      %3252 = vadd.xlane.f32.xlu0 %v3244
      %v3253 = vpop.xlane.xlu0 %3252
      %v3254 = vsel %vm674, %v3245, 0.0
      %3255 = vadd.xlane.f32.xlu0 %v3254
      %v3256 = vpop.xlane.xlu0 %3255
      %v3257 = vmul.f32 %v3251, %v678
      %v3258 = vmul.f32 %v3253, %v678
      %v3259 = vmul.f32 %v3256, %v678
      %v3260 = vsub.f32 %v3243, %v3257
      %v3261 = vsub.f32 %v3244, %v3258
      %v3262 = vsub.f32 %v3245, %v3259
      %v3263 = vmul.f32 %v3260, %v3260
      %v3264 = vmul.f32 %v3261, %v3261
      %v3265 = vmul.f32 %v3262, %v3262
      %3266 = vadd.xlane.f32.xlu0 %v3263
      %v3267 = vpop.xlane.xlu0 %3266
      %3268 = vadd.xlane.f32.xlu0 %v3264
      %v3269 = vpop.xlane.xlu0 %3268
      %v3270 = vsel %vm674, %v3265, 0.0
      %3271 = vadd.xlane.f32.xlu0 %v3270
      %v3272 = vpop.xlane.xlu0 %3271
      %v3273 = vmul.f32 %v3267, %v678
      %v3274 = vmul.f32 %v3269, %v678
      %v3275 = vmul.f32 %v3272, %v678
      %v3276 = vadd.f32 %v3273, 1e-06
      %v3277 = vadd.f32 %v3274, 1e-06
      %v3278 = vadd.f32 %v3275, 1e-06
      %v3279 = vrsqrt.pop %v3276
      %v3280 = vrsqrt.pop %v3277
      %v3281 = vrsqrt.pop %v3278
      %v3282 = vmul.f32 %v3260, %v3279
      %v3283 = vmul.f32 %v3261, %v3280
      %v3284 = vmul.f32 %v3262, %v3281
      %v3286 = vlaneseq
      %v3287 = vshrl.u32 %v3286, 7
      %v3288 = vsub.s32 0, %v3287
      %v3289 = vrot.slane %v3247, %v3288
      %v3291 = vmul.f32 %v3282, %v3289
      %v3292 = vmul.f32 %v3283, %v3289
      %v3293 = vmul.f32 %v3284, %v3289
      %v3295 = vlaneseq
      %v3296 = vshrl.u32 %v3295, 7
      %v3297 = vsub.s32 0, %v3296
      %v3298 = vrot.slane %v3249, %v3297
      %v3300 = vadd.f32 %v3291, %v3298
      %v3301 = vadd.f32 %v3292, %v3298
      %v3302 = vadd.f32 %v3293, %v3298
      %s3303 = scalar_lea.vmem %s11, 256
      %v3304 = vld [vmem:[%s3303] sm:$0xff]
      %v3305 = vld [vmem:[%s3303 + $0x8] sm:$0xff]
      %v3306 = vld [vmem:[%s3303 + $0x10] sm:$0xff]
      %v3307 = vld [vmem:[%s3303 + $0x18] sm:$0xff]
      %v3308 = vld [vmem:[%s3303 + $0x20] sm:$0xff]
      %v3309 = vld [vmem:[%s3303 + $0x28] sm:$0xff]
      %v3310 = vld [vmem:[%s3303 + $0x30] sm:$0xff]
      %v3311 = vld [vmem:[%s3303 + $0x38] sm:$0xff]
      %v3312 = vld [vmem:[%s3303 + $0x40] sm:$0xff]
      %v3313 = vld [vmem:[%s3303 + $0x48] sm:$0xff]
      %v3314 = vld [vmem:[%s3303 + $0x50] sm:$0xff]
      %v3315 = vld [vmem:[%s3303 + $0x58] sm:$0xff]
      %v3316 = vld [vmem:[%s3303 + $0x60] sm:$0xff]
      %v3317 = vld [vmem:[%s3303 + $0x68] sm:$0xff]
      %v3318 = vld [vmem:[%s3303 + $0x70] sm:$0xff]
      %v3319 = vld [vmem:[%s3303 + $0x78] sm:$0xff]
      %v3320 = vld [vmem:[%s3303 + $0x80] sm:$0xff]
      %v3321 = vld [vmem:[%s3303 + $0x88] sm:$0xff]
      %v3322 = vld [vmem:[%s3303 + $0x90] sm:$0xff]
      %v3323 = vld [vmem:[%s3303 + $0x98] sm:$0xff]
      %v3324 = vld [vmem:[%s3303 + $0xa0] sm:$0xff]
      %v3325 = vld [vmem:[%s3303 + $0xa8] sm:$0xff]
      %v3326 = vld [vmem:[%s3303 + $0xb0] sm:$0xff]
      %v3327 = vld [vmem:[%s3303 + $0xb8] sm:$0xff]
      %v3328 = vld [vmem:[%s3303 + $0xc0] sm:$0xff]
      %v3329 = vld [vmem:[%s3303 + $0xc8] sm:$0xff]
      %v3330 = vld [vmem:[%s3303 + $0xd0] sm:$0xff]
      %v3331 = vld [vmem:[%s3303 + $0xd8] sm:$0xff]
      %v3332 = vld [vmem:[%s3303 + $0xe0] sm:$0xff]
      %v3333 = vld [vmem:[%s3303 + $0xe8] sm:$0xff]
      %v3334 = vld [vmem:[%s3303 + $0xf0] sm:$0xff]
      %v3335 = vld [vmem:[%s3303 + $0xf8] sm:$0xff]
      %s3336 = scalar_lea.vmem %s12, 4
      %v3337 = vld [vmem:[%s3336] sm:$0xf]
      %v3338 = vpack.c.bf16 %v3301, %v3300
      %v3339 = vpack.c.bf16 %v3302, %v3302
      %v3341 = vlaneseq
      %v3342 = vshrl.u32 %v3341, 7
      %v3343 = vsub.s32 0, %v3342
      %v3344 = vrot.slane %v3337, %v3343
      %v3345 = vlaneseq
      %v3346 = vshrl.u32 %v3345, 7
      %v3347 = vsub.s32 1, %v3346
      %v3348 = vrot.slane %v3337, %v3347
      %v3349 = vlaneseq
      %v3350 = vshrl.u32 %v3349, 7
      %v3351 = vsub.s32 2, %v3350
      %v3352 = vrot.slane %v3337, %v3351
      %v3353 = vlaneseq
      %v3354 = vshrl.u32 %v3353, 7
      %v3355 = vsub.s32 3, %v3354
      %v3356 = vrot.slane %v3337, %v3355
      %v3393 = vunpack.c.l.b16 %v3304
      %v3394 = vunpack.c.h.b16 %v3304
      %v3395 = vunpack.c.l.b16 %v3305
      %v3396 = vunpack.c.h.b16 %v3305
      %v3397 = vunpack.c.l.b16 %v3306
      %v3398 = vunpack.c.h.b16 %v3306
      %v3399 = vunpack.c.l.b16 %v3307
      %v3400 = vunpack.c.h.b16 %v3307
      %v3401 = vunpack.c.l.b16 %v3308
      %v3402 = vunpack.c.h.b16 %v3308
      %v3403 = vunpack.c.l.b16 %v3309
      %v3404 = vunpack.c.h.b16 %v3309
      %v3405 = vunpack.c.l.b16 %v3310
      %v3406 = vunpack.c.h.b16 %v3310
      %v3407 = vunpack.c.l.b16 %v3311
      %v3408 = vunpack.c.h.b16 %v3311
      %v3409 = vunpack.c.l.b16 %v3312
      %v3410 = vunpack.c.h.b16 %v3312
      %v3411 = vunpack.c.l.b16 %v3313
      %v3412 = vunpack.c.h.b16 %v3313
      %v3413 = vunpack.c.l.b16 %v3314
      %v3414 = vunpack.c.h.b16 %v3314
      %v3415 = vunpack.c.l.b16 %v3315
      %v3416 = vunpack.c.h.b16 %v3315
      %v3417 = vunpack.c.l.b16 %v3316
      %v3418 = vunpack.c.h.b16 %v3316
      %v3419 = vunpack.c.l.b16 %v3317
      %v3420 = vunpack.c.h.b16 %v3317
      %v3421 = vunpack.c.l.b16 %v3318
      %v3422 = vunpack.c.h.b16 %v3318
      %v3423 = vunpack.c.l.b16 %v3319
      %v3424 = vunpack.c.h.b16 %v3319
      %v3425 = vunpack.c.l.b16 %v3320
      %v3426 = vunpack.c.h.b16 %v3320
      %v3427 = vunpack.c.l.b16 %v3321
      %v3428 = vunpack.c.h.b16 %v3321
      %v3429 = vunpack.c.l.b16 %v3322
      %v3430 = vunpack.c.h.b16 %v3322
      %v3431 = vunpack.c.l.b16 %v3323
      %v3432 = vunpack.c.h.b16 %v3323
      %v3433 = vunpack.c.l.b16 %v3324
      %v3434 = vunpack.c.h.b16 %v3324
      %v3435 = vunpack.c.l.b16 %v3325
      %v3436 = vunpack.c.h.b16 %v3325
      %v3437 = vunpack.c.l.b16 %v3326
      %v3438 = vunpack.c.h.b16 %v3326
      %v3439 = vunpack.c.l.b16 %v3327
      %v3440 = vunpack.c.h.b16 %v3327
      %v3441 = vunpack.c.l.b16 %v3328
      %v3442 = vunpack.c.h.b16 %v3328
      %v3443 = vunpack.c.l.b16 %v3329
      %v3444 = vunpack.c.h.b16 %v3329
      %v3445 = vunpack.c.l.b16 %v3330
      %v3446 = vunpack.c.h.b16 %v3330
      %v3447 = vunpack.c.l.b16 %v3331
      %v3448 = vunpack.c.h.b16 %v3331
      %v3449 = vunpack.c.l.b16 %v3332
      %v3450 = vunpack.c.h.b16 %v3332
      %v3451 = vunpack.c.l.b16 %v3333
      %v3452 = vunpack.c.h.b16 %v3333
      %v3453 = vunpack.c.l.b16 %v3334
      %v3454 = vunpack.c.h.b16 %v3334
      %v3455 = vunpack.c.l.b16 %v3335
      %v3456 = vunpack.c.h.b16 %v3335
      %v3457 = vpack.c.b16 %v3397, %v3393
      %v3458 = vpack.c.b16 %v3398, %v3394
      %v3459 = vpack.c.b16 %v3399, %v3395
      %v3460 = vpack.c.b16 %v3400, %v3396
      %v3461 = vpack.c.b16 %v3405, %v3401
      %v3462 = vpack.c.b16 %v3406, %v3402
      %v3463 = vpack.c.b16 %v3407, %v3403
      %v3464 = vpack.c.b16 %v3408, %v3404
      %v3465 = vpack.c.b16 %v3413, %v3409
      %v3466 = vpack.c.b16 %v3414, %v3410
      %v3467 = vpack.c.b16 %v3415, %v3411
      %v3468 = vpack.c.b16 %v3416, %v3412
      %v3469 = vpack.c.b16 %v3421, %v3417
      %v3470 = vpack.c.b16 %v3422, %v3418
      %v3471 = vpack.c.b16 %v3423, %v3419
      %v3472 = vpack.c.b16 %v3424, %v3420
      %v3473 = vpack.c.b16 %v3429, %v3425
      %v3474 = vpack.c.b16 %v3430, %v3426
      %v3475 = vpack.c.b16 %v3431, %v3427
      %v3476 = vpack.c.b16 %v3432, %v3428
      %v3477 = vpack.c.b16 %v3437, %v3433
      %v3478 = vpack.c.b16 %v3438, %v3434
      %v3479 = vpack.c.b16 %v3439, %v3435
      %v3480 = vpack.c.b16 %v3440, %v3436
      %v3481 = vpack.c.b16 %v3445, %v3441
      %v3482 = vpack.c.b16 %v3446, %v3442
      %v3483 = vpack.c.b16 %v3447, %v3443
      %v3484 = vpack.c.b16 %v3448, %v3444
      %v3485 = vpack.c.b16 %v3453, %v3449
      %v3486 = vpack.c.b16 %v3454, %v3450
      %v3487 = vpack.c.b16 %v3455, %v3451
      %v3488 = vpack.c.b16 %v3456, %v3452
      %3521 = vmatprep.subr.bf16.mxu0 %v3458
      %3522 = vmatpush1.bf16.msra.mxu0 %v3457
      %3523 = vmatprep.subr.bf16.mxu0 %v3462
      %3524 = vmatpush1.bf16.msra.mxu0 %v3461
      %3525 = vmatprep.subr.bf16.mxu0 %v3466
      %3526 = vmatpush1.bf16.msra.mxu0 %v3465
      %3527 = vmatprep.subr.bf16.mxu0 %v3470
      %3528 = vmatpush1.bf16.msra.mxu0 %v3469
      %3529 = vmatprep.subr.bf16.mxu0 %v3474
      %3530 = vmatpush1.bf16.msra.mxu0 %v3473
      %3531 = vmatprep.subr.bf16.mxu0 %v3478
      %3532 = vmatpush1.bf16.msra.mxu0 %v3477
      %3533 = vmatprep.subr.bf16.mxu0 %v3482
      %3534 = vmatpush1.bf16.msra.mxu0 %v3481
      %3535 = vmatprep.subr.bf16.mxu0 %v3486
      %3536 = vmatpush1.bf16.msra.mxu0 %v3485
      %3537 = vmatprep.subr.bf16.mxu0 0
      %3538 = vmatpush1.bf16.msra.mxu0 0
      %3539 = vmatprep.subr.bf16.mxu0 0
      %3540 = vmatpush1.bf16.msra.mxu0 0
      %3541 = vmatprep.subr.bf16.mxu0 0
      %3542 = vmatpush1.bf16.msra.mxu0 0
      %3543 = vmatprep.subr.bf16.mxu0 0
      %3544 = vmatpush1.bf16.msra.mxu0 0
      %3545 = vmatprep.subr.bf16.mxu0 0
      %3546 = vmatpush1.bf16.msra.mxu0 0
      %3547 = vmatprep.subr.bf16.mxu0 0
      %3548 = vmatpush1.bf16.msra.mxu0 0
      %3549 = vmatprep.subr.bf16.mxu0 0
      %3550 = vmatpush1.bf16.msra.mxu0 0
      %3551 = vmatprep.subr.bf16.mxu0 0
      %3552 = vmatpush1.bf16.msra.mxu0 0
      %3553 = vmatprep.mubr.bf16.mxu0 0
      %3554 = vmatmul.mubr.bf16.gmra.mrb[0].mxu0 %v3338
      %v3555 = vpop.f32.mrb[0].mxu0
      %v3556 = vadd.f32 %v3344, %v3555
      %v3557 = vpop.f32.mrb[0].mxu0
      %v3558 = vadd.f32 %v3348, %v3557
      %v3559 = vpop.f32.mrb[0].mxu0
      %v3560 = vadd.f32 %v3344, %v3559
      %v3561 = vpop.f32.mrb[0].mxu0
      %v3562 = vadd.f32 %v3348, %v3561
      %3563 = vmatprep.mubr.bf16.mxu0 0
      %3564 = vmatmul.mubr.bf16.gmra.mrb[0].mxu0 %v3339
      %v3565 = vpop.f32.mrb[0].mxu0
      %v3566 = vadd.f32 %v3344, %v3565
      %v3567 = vpop.f32.mrb[0].mxu0
      %v3568 = vadd.f32 %v3348, %v3567
      %v3569 = vpop.f32.mrb[0].mxu0
      %v3570 = vpop.f32.mrb[0].mxu0
      %3571 = vdwg.mxu0
      %3572 = vmatprep.subr.bf16.mxu0 %v3460
      %3573 = vmatpush1.bf16.msra.mxu0 %v3459
      %3574 = vmatprep.subr.bf16.mxu0 %v3464
      %3575 = vmatpush1.bf16.msra.mxu0 %v3463
      %3576 = vmatprep.subr.bf16.mxu0 %v3468
      %3577 = vmatpush1.bf16.msra.mxu0 %v3467
      %3578 = vmatprep.subr.bf16.mxu0 %v3472
      %3579 = vmatpush1.bf16.msra.mxu0 %v3471
      %3580 = vmatprep.subr.bf16.mxu0 %v3476
      %3581 = vmatpush1.bf16.msra.mxu0 %v3475
      %3582 = vmatprep.subr.bf16.mxu0 %v3480
      %3583 = vmatpush1.bf16.msra.mxu0 %v3479
      %3584 = vmatprep.subr.bf16.mxu0 %v3484
      %3585 = vmatpush1.bf16.msra.mxu0 %v3483
      %3586 = vmatprep.subr.bf16.mxu0 %v3488
      %3587 = vmatpush1.bf16.msra.mxu0 %v3487
      %3588 = vmatprep.subr.bf16.mxu0 0
      %3589 = vmatpush1.bf16.msra.mxu0 0
      %3590 = vmatprep.subr.bf16.mxu0 0
      %3591 = vmatpush1.bf16.msra.mxu0 0
      %3592 = vmatprep.subr.bf16.mxu0 0
      %3593 = vmatpush1.bf16.msra.mxu0 0
      %3594 = vmatprep.subr.bf16.mxu0 0
      %3595 = vmatpush1.bf16.msra.mxu0 0
      %3596 = vmatprep.subr.bf16.mxu0 0
      %3597 = vmatpush1.bf16.msra.mxu0 0
      %3598 = vmatprep.subr.bf16.mxu0 0
      %3599 = vmatpush1.bf16.msra.mxu0 0
      %3600 = vmatprep.subr.bf16.mxu0 0
      %3601 = vmatpush1.bf16.msra.mxu0 0
      %3602 = vmatprep.subr.bf16.mxu0 0
      %3603 = vmatpush1.bf16.msra.mxu0 0
      %3604 = vmatprep.mubr.bf16.mxu0 0
      %3605 = vmatmul.mubr.bf16.gmra.mrb[0].mxu0 %v3338
      %v3606 = vpop.f32.mrb[0].mxu0
      %v3607 = vadd.f32 %v3352, %v3606
      %v3608 = vpop.f32.mrb[0].mxu0
      %v3609 = vadd.f32 %v3356, %v3608
      %v3610 = vpop.f32.mrb[0].mxu0
      %v3611 = vadd.f32 %v3352, %v3610
      %v3612 = vpop.f32.mrb[0].mxu0
      %v3613 = vadd.f32 %v3356, %v3612
      %3614 = vmatprep.mubr.bf16.mxu0 0
      %3615 = vmatmul.mubr.bf16.gmra.mrb[0].mxu0 %v3339
      %v3616 = vpop.f32.mrb[0].mxu0
      %v3617 = vadd.f32 %v3352, %v3616
      %v3618 = vpop.f32.mrb[0].mxu0
      %v3619 = vadd.f32 %v3356, %v3618
      %v3620 = vpop.f32.mrb[0].mxu0
      %v3621 = vpop.f32.mrb[0].mxu0
      %3622 = vdwg.mxu0
      %v3623 = vmul.f32 %v3556, %v3556
      %v3624 = vmul.f32 %v3558, %v3558
      %v3625 = vmul.f32 %v3607, %v3607
      %v3626 = vmul.f32 %v3609, %v3609
      %v3627 = vmul.f32 %v3560, %v3560
      %v3628 = vmul.f32 %v3562, %v3562
      %v3629 = vmul.f32 %v3611, %v3611
      %v3630 = vmul.f32 %v3613, %v3613
      %v3631 = vmul.f32 %v3566, %v3566
      %v3632 = vmul.f32 %v3568, %v3568
      %v3633 = vmul.f32 %v3617, %v3617
      %v3634 = vmul.f32 %v3619, %v3619
      %v3635 = vmul.f32 %v3556, %v3623
      %v3636 = vmul.f32 %v3558, %v3624
      %v3637 = vmul.f32 %v3607, %v3625
      %v3638 = vmul.f32 %v3609, %v3626
      %v3639 = vmul.f32 %v3560, %v3627
      %v3640 = vmul.f32 %v3562, %v3628
      %v3641 = vmul.f32 %v3611, %v3629
      %v3642 = vmul.f32 %v3613, %v3630
      %v3643 = vmul.f32 %v3566, %v3631
      %v3644 = vmul.f32 %v3568, %v3632
      %v3645 = vmul.f32 %v3617, %v3633
      %v3646 = vmul.f32 %v3619, %v3634
      %v3647 = vmul.f32 %v3635, 0.044715
      %v3648 = vmul.f32 %v3636, 0.044715
      %v3649 = vmul.f32 %v3637, 0.044715
      %v3650 = vmul.f32 %v3638, 0.044715
      %v3651 = vmul.f32 %v3639, 0.044715
      %v3652 = vmul.f32 %v3640, 0.044715
      %v3653 = vmul.f32 %v3641, 0.044715
      %v3654 = vmul.f32 %v3642, 0.044715
      %v3655 = vmul.f32 %v3643, 0.044715
      %v3656 = vmul.f32 %v3644, 0.044715
      %v3657 = vmul.f32 %v3645, 0.044715
      %v3658 = vmul.f32 %v3646, 0.044715
      %v3659 = vadd.f32 %v3556, %v3647
      %v3660 = vadd.f32 %v3558, %v3648
      %v3661 = vadd.f32 %v3607, %v3649
      %v3662 = vadd.f32 %v3609, %v3650
      %v3663 = vadd.f32 %v3560, %v3651
      %v3664 = vadd.f32 %v3562, %v3652
      %v3665 = vadd.f32 %v3611, %v3653
      %v3666 = vadd.f32 %v3613, %v3654
      %v3667 = vadd.f32 %v3566, %v3655
      %v3668 = vadd.f32 %v3568, %v3656
      %v3669 = vadd.f32 %v3617, %v3657
      %v3670 = vadd.f32 %v3619, %v3658
      %v3671 = vmul.f32 %v3659, 0.7978846
      %v3672 = vmul.f32 %v3660, 0.7978846
      %v3673 = vmul.f32 %v3661, 0.7978846
      %v3674 = vmul.f32 %v3662, 0.7978846
      %v3675 = vmul.f32 %v3663, 0.7978846
      %v3676 = vmul.f32 %v3664, 0.7978846
      %v3677 = vmul.f32 %v3665, 0.7978846
      %v3678 = vmul.f32 %v3666, 0.7978846
      %v3679 = vmul.f32 %v3667, 0.7978846
      %v3680 = vmul.f32 %v3668, 0.7978846
      %v3681 = vmul.f32 %v3669, 0.7978846
      %v3682 = vmul.f32 %v3670, 0.7978846
      %v3683 = vtanh.pop %v3671
      %v3684 = vtanh.pop %v3672
      %v3685 = vtanh.pop %v3673
      %v3686 = vtanh.pop %v3674
      %v3687 = vtanh.pop %v3675
      %v3688 = vtanh.pop %v3676
      %v3689 = vtanh.pop %v3677
      %v3690 = vtanh.pop %v3678
      %v3691 = vtanh.pop %v3679
      %v3692 = vtanh.pop %v3680
      %v3693 = vtanh.pop %v3681
      %v3694 = vtanh.pop %v3682
      %v3695 = vadd.f32 %v3683, 1.0
      %v3696 = vadd.f32 %v3684, 1.0
      %v3697 = vadd.f32 %v3685, 1.0
      %v3698 = vadd.f32 %v3686, 1.0
      %v3699 = vadd.f32 %v3687, 1.0
      %v3700 = vadd.f32 %v3688, 1.0
      %v3701 = vadd.f32 %v3689, 1.0
      %v3702 = vadd.f32 %v3690, 1.0
      %v3703 = vadd.f32 %v3691, 1.0
      %v3704 = vadd.f32 %v3692, 1.0
      %v3705 = vadd.f32 %v3693, 1.0
      %v3706 = vadd.f32 %v3694, 1.0
      %v3707 = vmul.f32 %v3695, 0.5
      %v3708 = vmul.f32 %v3696, 0.5
      %v3709 = vmul.f32 %v3697, 0.5
      %v3710 = vmul.f32 %v3698, 0.5
      %v3711 = vmul.f32 %v3699, 0.5
      %v3712 = vmul.f32 %v3700, 0.5
      %v3713 = vmul.f32 %v3701, 0.5
      %v3714 = vmul.f32 %v3702, 0.5
      %v3715 = vmul.f32 %v3703, 0.5
      %v3716 = vmul.f32 %v3704, 0.5
      %v3717 = vmul.f32 %v3705, 0.5
      %v3718 = vmul.f32 %v3706, 0.5
      %v3719 = vmul.f32 %v3556, %v3707
      %v3720 = vmul.f32 %v3558, %v3708
      %v3721 = vmul.f32 %v3607, %v3709
      %v3722 = vmul.f32 %v3609, %v3710
      %v3723 = vmul.f32 %v3560, %v3711
      %v3724 = vmul.f32 %v3562, %v3712
      %v3725 = vmul.f32 %v3611, %v3713
      %v3726 = vmul.f32 %v3613, %v3714
      %v3727 = vmul.f32 %v3566, %v3715
      %v3728 = vmul.f32 %v3568, %v3716
      %v3729 = vmul.f32 %v3617, %v3717
      %v3730 = vmul.f32 %v3619, %v3718
      %s3731 = scalar_lea.vmem %s13, 256
      %v3732 = vld [vmem:[%s3731] sm:$0xf]
      %v3733 = vld [vmem:[%s3731 + $0x4] sm:$0xf]
      %v3734 = vld [vmem:[%s3731 + $0x8] sm:$0xf]
      %v3735 = vld [vmem:[%s3731 + $0xc] sm:$0xf]
      %v3736 = vld [vmem:[%s3731 + $0x10] sm:$0xf]
      %v3737 = vld [vmem:[%s3731 + $0x14] sm:$0xf]
      %v3738 = vld [vmem:[%s3731 + $0x18] sm:$0xf]
      %v3739 = vld [vmem:[%s3731 + $0x1c] sm:$0xf]
      %v3740 = vld [vmem:[%s3731 + $0x20] sm:$0xf]
      %v3741 = vld [vmem:[%s3731 + $0x24] sm:$0xf]
      %v3742 = vld [vmem:[%s3731 + $0x28] sm:$0xf]
      %v3743 = vld [vmem:[%s3731 + $0x2c] sm:$0xf]
      %v3744 = vld [vmem:[%s3731 + $0x30] sm:$0xf]
      %v3745 = vld [vmem:[%s3731 + $0x34] sm:$0xf]
      %v3746 = vld [vmem:[%s3731 + $0x38] sm:$0xf]
      %v3747 = vld [vmem:[%s3731 + $0x3c] sm:$0xf]
      %v3748 = vld [vmem:[%s3731 + $0x40] sm:$0xf]
      %v3749 = vld [vmem:[%s3731 + $0x44] sm:$0xf]
      %v3750 = vld [vmem:[%s3731 + $0x48] sm:$0xf]
      %v3751 = vld [vmem:[%s3731 + $0x4c] sm:$0xf]
      %v3752 = vld [vmem:[%s3731 + $0x50] sm:$0xf]
      %v3753 = vld [vmem:[%s3731 + $0x54] sm:$0xf]
      %v3754 = vld [vmem:[%s3731 + $0x58] sm:$0xf]
      %v3755 = vld [vmem:[%s3731 + $0x5c] sm:$0xf]
      %v3756 = vld [vmem:[%s3731 + $0x60] sm:$0xf]
      %v3757 = vld [vmem:[%s3731 + $0x64] sm:$0xf]
      %v3758 = vld [vmem:[%s3731 + $0x68] sm:$0xf]
      %v3759 = vld [vmem:[%s3731 + $0x6c] sm:$0xf]
      %v3760 = vld [vmem:[%s3731 + $0x70] sm:$0xf]
      %v3761 = vld [vmem:[%s3731 + $0x74] sm:$0xf]
      %v3762 = vld [vmem:[%s3731 + $0x78] sm:$0xf]
      %v3763 = vld [vmem:[%s3731 + $0x7c] sm:$0xf]
      %v3764 = vld [vmem:[%s3731 + $0x80] sm:$0xf]
      %v3765 = vld [vmem:[%s3731 + $0x84] sm:$0xf]
      %v3766 = vld [vmem:[%s3731 + $0x88] sm:$0xf]
      %v3767 = vld [vmem:[%s3731 + $0x8c] sm:$0xf]
      %v3768 = vld [vmem:[%s3731 + $0x90] sm:$0xf]
      %v3769 = vld [vmem:[%s3731 + $0x94] sm:$0xf]
      %v3770 = vld [vmem:[%s3731 + $0x98] sm:$0xf]
      %v3771 = vld [vmem:[%s3731 + $0x9c] sm:$0xf]
      %v3772 = vld [vmem:[%s3731 + $0xa0] sm:$0xf]
      %v3773 = vld [vmem:[%s3731 + $0xa4] sm:$0xf]
      %v3774 = vld [vmem:[%s3731 + $0xa8] sm:$0xf]
      %v3775 = vld [vmem:[%s3731 + $0xac] sm:$0xf]
      %v3776 = vld [vmem:[%s3731 + $0xb0] sm:$0xf]
      %v3777 = vld [vmem:[%s3731 + $0xb4] sm:$0xf]
      %v3778 = vld [vmem:[%s3731 + $0xb8] sm:$0xf]
      %v3779 = vld [vmem:[%s3731 + $0xbc] sm:$0xf]
      %v3780 = vld [vmem:[%s3731 + $0xc0] sm:$0xf]
      %v3781 = vld [vmem:[%s3731 + $0xc4] sm:$0xf]
      %v3782 = vld [vmem:[%s3731 + $0xc8] sm:$0xf]
      %v3783 = vld [vmem:[%s3731 + $0xcc] sm:$0xf]
      %v3784 = vld [vmem:[%s3731 + $0xd0] sm:$0xf]
      %v3785 = vld [vmem:[%s3731 + $0xd4] sm:$0xf]
      %v3786 = vld [vmem:[%s3731 + $0xd8] sm:$0xf]
      %v3787 = vld [vmem:[%s3731 + $0xdc] sm:$0xf]
      %v3788 = vld [vmem:[%s3731 + $0xe0] sm:$0xf]
      %v3789 = vld [vmem:[%s3731 + $0xe4] sm:$0xf]
      %v3790 = vld [vmem:[%s3731 + $0xe8] sm:$0xf]
      %v3791 = vld [vmem:[%s3731 + $0xec] sm:$0xf]
      %v3792 = vld [vmem:[%s3731 + $0xf0] sm:$0xf]
      %v3793 = vld [vmem:[%s3731 + $0xf4] sm:$0xf]
      %v3794 = vld [vmem:[%s3731 + $0xf8] sm:$0xf]
      %v3795 = vld [vmem:[%s3731 + $0xfc] sm:$0xf]
      %s3796 = scalar_lea.vmem %s14, 1
      %v3797 = vld [vmem:[%s3796] sm:$0x1]
      %v3798 = vpack.c.bf16 %v3723, %v3719
      %v3799 = vpack.c.bf16 %v3724, %v3720
      %v3800 = vpack.c.bf16 %v3725, %v3721
      %v3801 = vpack.c.bf16 %v3726, %v3722
      %v3802 = vpack.c.bf16 %v3727, %v3727
      %v3803 = vpack.c.bf16 %v3728, %v3728
      %v3804 = vpack.c.bf16 %v3729, %v3729
      %v3805 = vpack.c.bf16 %v3730, %v3730
      %v3807 = vlaneseq
      %v3808 = vshrl.u32 %v3807, 7
      %v3809 = vsub.s32 0, %v3808
      %v3810 = vrot.slane %v3797, %v3809
      %v3876 = vunpack.c.l.b16 %v3732
      %v3877 = vunpack.c.l.b16 %v3733
      %v3878 = vunpack.c.l.b16 %v3734
      %v3879 = vunpack.c.l.b16 %v3735
      %v3880 = vunpack.c.l.b16 %v3736
      %v3881 = vunpack.c.l.b16 %v3737
      %v3882 = vunpack.c.l.b16 %v3738
      %v3883 = vunpack.c.l.b16 %v3739
      %v3884 = vunpack.c.l.b16 %v3740
      %v3885 = vunpack.c.l.b16 %v3741
      %v3886 = vunpack.c.l.b16 %v3742
      %v3887 = vunpack.c.l.b16 %v3743
      %v3888 = vunpack.c.l.b16 %v3744
      %v3889 = vunpack.c.l.b16 %v3745
      %v3890 = vunpack.c.l.b16 %v3746
      %v3891 = vunpack.c.l.b16 %v3747
      %v3892 = vunpack.c.l.b16 %v3748
      %v3893 = vunpack.c.l.b16 %v3749
      %v3894 = vunpack.c.l.b16 %v3750
      %v3895 = vunpack.c.l.b16 %v3751
      %v3896 = vunpack.c.l.b16 %v3752
      %v3897 = vunpack.c.l.b16 %v3753
      %v3898 = vunpack.c.l.b16 %v3754
      %v3899 = vunpack.c.l.b16 %v3755
      %v3900 = vunpack.c.l.b16 %v3756
      %v3901 = vunpack.c.l.b16 %v3757
      %v3902 = vunpack.c.l.b16 %v3758
      %v3903 = vunpack.c.l.b16 %v3759
      %v3904 = vunpack.c.l.b16 %v3760
      %v3905 = vunpack.c.l.b16 %v3761
      %v3906 = vunpack.c.l.b16 %v3762
      %v3907 = vunpack.c.l.b16 %v3763
      %v3908 = vunpack.c.l.b16 %v3764
      %v3909 = vunpack.c.l.b16 %v3765
      %v3910 = vunpack.c.l.b16 %v3766
      %v3911 = vunpack.c.l.b16 %v3767
      %v3912 = vunpack.c.l.b16 %v3768
      %v3913 = vunpack.c.l.b16 %v3769
      %v3914 = vunpack.c.l.b16 %v3770
      %v3915 = vunpack.c.l.b16 %v3771
      %v3916 = vunpack.c.l.b16 %v3772
      %v3917 = vunpack.c.l.b16 %v3773
      %v3918 = vunpack.c.l.b16 %v3774
      %v3919 = vunpack.c.l.b16 %v3775
      %v3920 = vunpack.c.l.b16 %v3776
      %v3921 = vunpack.c.l.b16 %v3777
      %v3922 = vunpack.c.l.b16 %v3778
      %v3923 = vunpack.c.l.b16 %v3779
      %v3924 = vunpack.c.l.b16 %v3780
      %v3925 = vunpack.c.l.b16 %v3781
      %v3926 = vunpack.c.l.b16 %v3782
      %v3927 = vunpack.c.l.b16 %v3783
      %v3928 = vunpack.c.l.b16 %v3784
      %v3929 = vunpack.c.l.b16 %v3785
      %v3930 = vunpack.c.l.b16 %v3786
      %v3931 = vunpack.c.l.b16 %v3787
      %v3932 = vunpack.c.l.b16 %v3788
      %v3933 = vunpack.c.l.b16 %v3789
      %v3934 = vunpack.c.l.b16 %v3790
      %v3935 = vunpack.c.l.b16 %v3791
      %v3936 = vunpack.c.l.b16 %v3792
      %v3937 = vunpack.c.l.b16 %v3793
      %v3938 = vunpack.c.l.b16 %v3794
      %v3939 = vunpack.c.l.b16 %v3795
      %v3940 = vpack.c.b16 %v3877, %v3876
      %v3941 = vpack.c.b16 %v3879, %v3878
      %v3942 = vpack.c.b16 %v3881, %v3880
      %v3943 = vpack.c.b16 %v3883, %v3882
      %v3944 = vpack.c.b16 %v3885, %v3884
      %v3945 = vpack.c.b16 %v3887, %v3886
      %v3946 = vpack.c.b16 %v3889, %v3888
      %v3947 = vpack.c.b16 %v3891, %v3890
      %v3948 = vpack.c.b16 %v3893, %v3892
      %v3949 = vpack.c.b16 %v3895, %v3894
      %v3950 = vpack.c.b16 %v3897, %v3896
      %v3951 = vpack.c.b16 %v3899, %v3898
      %v3952 = vpack.c.b16 %v3901, %v3900
      %v3953 = vpack.c.b16 %v3903, %v3902
      %v3954 = vpack.c.b16 %v3905, %v3904
      %v3955 = vpack.c.b16 %v3907, %v3906
      %v3956 = vpack.c.b16 %v3909, %v3908
      %v3957 = vpack.c.b16 %v3911, %v3910
      %v3958 = vpack.c.b16 %v3913, %v3912
      %v3959 = vpack.c.b16 %v3915, %v3914
      %v3960 = vpack.c.b16 %v3917, %v3916
      %v3961 = vpack.c.b16 %v3919, %v3918
      %v3962 = vpack.c.b16 %v3921, %v3920
      %v3963 = vpack.c.b16 %v3923, %v3922
      %v3964 = vpack.c.b16 %v3925, %v3924
      %v3965 = vpack.c.b16 %v3927, %v3926
      %v3966 = vpack.c.b16 %v3929, %v3928
      %v3967 = vpack.c.b16 %v3931, %v3930
      %v3968 = vpack.c.b16 %v3933, %v3932
      %v3969 = vpack.c.b16 %v3935, %v3934
      %v3970 = vpack.c.b16 %v3937, %v3936
      %v3971 = vpack.c.b16 %v3939, %v3938
      %4004 = vmatprep.subr.bf16.mxu0 0
      %4005 = vmatpush1.bf16.msra.mxu0 %v3940
      %4006 = vmatprep.subr.bf16.mxu0 0
      %4007 = vmatpush1.bf16.msra.mxu0 %v3941
      %4008 = vmatprep.subr.bf16.mxu0 0
      %4009 = vmatpush1.bf16.msra.mxu0 %v3942
      %4010 = vmatprep.subr.bf16.mxu0 0
      %4011 = vmatpush1.bf16.msra.mxu0 %v3943
      %4012 = vmatprep.subr.bf16.mxu0 0
      %4013 = vmatpush1.bf16.msra.mxu0 %v3944
      %4014 = vmatprep.subr.bf16.mxu0 0
      %4015 = vmatpush1.bf16.msra.mxu0 %v3945
      %4016 = vmatprep.subr.bf16.mxu0 0
      %4017 = vmatpush1.bf16.msra.mxu0 %v3946
      %4018 = vmatprep.subr.bf16.mxu0 0
      %4019 = vmatpush1.bf16.msra.mxu0 %v3947
      %4020 = vmatprep.subr.bf16.mxu0 0
      %4021 = vmatpush1.bf16.msra.mxu0 %v3948
      %4022 = vmatprep.subr.bf16.mxu0 0
      %4023 = vmatpush1.bf16.msra.mxu0 %v3949
      %4024 = vmatprep.subr.bf16.mxu0 0
      %4025 = vmatpush1.bf16.msra.mxu0 %v3950
      %4026 = vmatprep.subr.bf16.mxu0 0
      %4027 = vmatpush1.bf16.msra.mxu0 %v3951
      %4028 = vmatprep.subr.bf16.mxu0 0
      %4029 = vmatpush1.bf16.msra.mxu0 %v3952
      %4030 = vmatprep.subr.bf16.mxu0 0
      %4031 = vmatpush1.bf16.msra.mxu0 %v3953
      %4032 = vmatprep.subr.bf16.mxu0 0
      %4033 = vmatpush1.bf16.msra.mxu0 %v3954
      %4034 = vmatprep.subr.bf16.mxu0 0
      %4035 = vmatpush1.bf16.msra.mxu0 %v3955
      %4036 = vmatprep.mubr.bf16.mxu0 %v3799
      %4037 = vmatmul.mubr.bf16.gmra.mrb[0].mxu0 %v3798
      %v4038 = vpop.f32.mrb[0].mxu0
      %v4039 = vadd.f32 %v3810, %v4038
      %v4040 = vpop.f32.mrb[0].mxu0
      %v4041 = vpop.f32.mrb[0].mxu0
      %v4042 = vadd.f32 %v3810, %v4041
      %v4043 = vpop.f32.mrb[0].mxu0
      %4044 = vmatprep.mubr.bf16.mxu0 %v3803
      %4045 = vmatmul.mubr.bf16.gmra.mrb[0].mxu0 %v3802
      %v4046 = vpop.f32.mrb[0].mxu0
      %v4047 = vadd.f32 %v3810, %v4046
      %v4048 = vpop.f32.mrb[0].mxu0
      %v4049 = vpop.f32.mrb[0].mxu0
      %v4050 = vpop.f32.mrb[0].mxu0
      %4051 = vdwg.mxu0
      %4052 = vmatprep.subr.bf16.mxu0 0
      %4053 = vmatpush1.bf16.msra.mxu0 %v3956
      %4054 = vmatprep.subr.bf16.mxu0 0
      %4055 = vmatpush1.bf16.msra.mxu0 %v3957
      %4056 = vmatprep.subr.bf16.mxu0 0
      %4057 = vmatpush1.bf16.msra.mxu0 %v3958
      %4058 = vmatprep.subr.bf16.mxu0 0
      %4059 = vmatpush1.bf16.msra.mxu0 %v3959
      %4060 = vmatprep.subr.bf16.mxu0 0
      %4061 = vmatpush1.bf16.msra.mxu0 %v3960
      %4062 = vmatprep.subr.bf16.mxu0 0
      %4063 = vmatpush1.bf16.msra.mxu0 %v3961
      %4064 = vmatprep.subr.bf16.mxu0 0
      %4065 = vmatpush1.bf16.msra.mxu0 %v3962
      %4066 = vmatprep.subr.bf16.mxu0 0
      %4067 = vmatpush1.bf16.msra.mxu0 %v3963
      %4068 = vmatprep.subr.bf16.mxu0 0
      %4069 = vmatpush1.bf16.msra.mxu0 %v3964
      %4070 = vmatprep.subr.bf16.mxu0 0
      %4071 = vmatpush1.bf16.msra.mxu0 %v3965
      %4072 = vmatprep.subr.bf16.mxu0 0
      %4073 = vmatpush1.bf16.msra.mxu0 %v3966
      %4074 = vmatprep.subr.bf16.mxu0 0
      %4075 = vmatpush1.bf16.msra.mxu0 %v3967
      %4076 = vmatprep.subr.bf16.mxu0 0
      %4077 = vmatpush1.bf16.msra.mxu0 %v3968
      %4078 = vmatprep.subr.bf16.mxu0 0
      %4079 = vmatpush1.bf16.msra.mxu0 %v3969
      %4080 = vmatprep.subr.bf16.mxu0 0
      %4081 = vmatpush1.bf16.msra.mxu0 %v3970
      %4082 = vmatprep.subr.bf16.mxu0 0
      %4083 = vmatpush1.bf16.msra.mxu0 %v3971
      %4084 = vmatprep.mubr.bf16.mxu0 %v3801
      %4085 = vmatmul.mubr.bf16.gmra.mrb[0].mxu0 %v3800
      %v4086 = vpop.f32.mrb[0].mxu0
      %v4087 = vadd.f32 %v4039, %v4086
      %v4088 = vpop.f32.mrb[0].mxu0
      %v4089 = vpop.f32.mrb[0].mxu0
      %v4090 = vadd.f32 %v4042, %v4089
      %v4091 = vpop.f32.mrb[0].mxu0
      %4092 = vmatprep.mubr.bf16.mxu0 %v3805
      %4093 = vmatmul.mubr.bf16.gmra.mrb[0].mxu0 %v3804
      %v4094 = vpop.f32.mrb[0].mxu0
      %v4095 = vadd.f32 %v4047, %v4094
      %v4096 = vpop.f32.mrb[0].mxu0
      %v4097 = vpop.f32.mrb[0].mxu0
      %v4098 = vpop.f32.mrb[0].mxu0
      %4099 = vdwg.mxu0
      %v4100 = vadd.f32 %v3243, %v4087
      %v4101 = vadd.f32 %v3244, %v4090
      %v4102 = vadd.f32 %v3245, %v4095
      %v4103 = vld [vmem:[%s15] sm:$0x1]
      %v4104 = vld [vmem:[%s16] sm:$0x1]
      %4105 = vadd.xlane.f32.xlu0 %v4100
      %v4106 = vpop.xlane.xlu0 %4105
      %4107 = vadd.xlane.f32.xlu0 %v4101
      %v4108 = vpop.xlane.xlu0 %4107
      %v4109 = vsel %vm674, %v4102, 0.0
      %4110 = vadd.xlane.f32.xlu0 %v4109
      %v4111 = vpop.xlane.xlu0 %4110
      %v4112 = vmul.f32 %v4106, %v678
      %v4113 = vmul.f32 %v4108, %v678
      %v4114 = vmul.f32 %v4111, %v678
      %v4115 = vsub.f32 %v4100, %v4112
      %v4116 = vsub.f32 %v4101, %v4113
      %v4117 = vsub.f32 %v4102, %v4114
      %v4118 = vmul.f32 %v4115, %v4115
      %v4119 = vmul.f32 %v4116, %v4116
      %v4120 = vmul.f32 %v4117, %v4117
      %4121 = vadd.xlane.f32.xlu0 %v4118
      %v4122 = vpop.xlane.xlu0 %4121
      %4123 = vadd.xlane.f32.xlu0 %v4119
      %v4124 = vpop.xlane.xlu0 %4123
      %v4125 = vsel %vm674, %v4120, 0.0
      %4126 = vadd.xlane.f32.xlu0 %v4125
      %v4127 = vpop.xlane.xlu0 %4126
      %v4128 = vmul.f32 %v4122, %v678
      %v4129 = vmul.f32 %v4124, %v678
      %v4130 = vmul.f32 %v4127, %v678
      %v4131 = vadd.f32 %v4128, 1e-06
      %v4132 = vadd.f32 %v4129, 1e-06
      %v4133 = vadd.f32 %v4130, 1e-06
      %v4134 = vrsqrt.pop %v4131
      %v4135 = vrsqrt.pop %v4132
      %v4136 = vrsqrt.pop %v4133
      %v4137 = vmul.f32 %v4115, %v4134
      %v4138 = vmul.f32 %v4116, %v4135
      %v4139 = vmul.f32 %v4117, %v4136
      %v4141 = vlaneseq
      %v4142 = vshrl.u32 %v4141, 7
      %v4143 = vsub.s32 0, %v4142
      %v4144 = vrot.slane %v4103, %v4143
      %v4146 = vmul.f32 %v4137, %v4144
      %v4147 = vmul.f32 %v4138, %v4144
      %v4148 = vmul.f32 %v4139, %v4144
      %v4150 = vlaneseq
      %v4151 = vshrl.u32 %v4150, 7
      %v4152 = vsub.s32 0, %v4151
      %v4153 = vrot.slane %v4104, %v4152
      %v4155 = vadd.f32 %v4146, %v4153
      %v4156 = vadd.f32 %v4147, %v4153
      %v4157 = vadd.f32 %v4148, %v4153
      %vm4161 = vcmask 1046528
      %v4162 = vrot.slane %v4155, 1
      %v4163 = vrot.slane %v4156, 1
      %v4164 = vsel %vm4161, %v4162, %v4163
      %v4165 = vrot.slane %v4157, 1
      %v4166 = vsel %vm4161, %v4163, %v4165
      %v4169 = vadd.f32 %v4164, %v4166
      %v4170 = vrot.slane %v4169, 4
      %v4171 = vadd.f32 %v4169, %v4170
      %v4172 = vrot.slane %v4171, 2
      %v4173 = vadd.f32 %v4171, %v4172
      %v4174 = vrot.slane %v4173, 1
      %v4175 = vadd.f32 %v4173, %v4174
      %v4176 = vrcp.pop 16.0
      %v4177 = vmul.f32 %v4175, %v4176
      %v4178 = vlaneseq
      %vm4179 = vcmp.ge.s32.totalorder %v4178, 0
      %vm4180 = vcmp.lt.s32.totalorder %v4178, 128
      %vm4181 = vmand %vm4179, %vm4180
      %4182 = vst.msk [vmem:[%s546] sm:$0x1] %vm4181, %v4155
      %4183 = vst.msk [vmem:[%s546 + $0x1] sm:$0x1] %vm4181, %v4177
      %p4184 = scmp.lt.s32.totalorder %s28, 1
      %s4185 = scalar_select %p4184, %s28, 1
      %s4186 = smul.addr %s4185, 2
      %s4187 = scalar_lea.vmem %s17, %s4186
      // Predicated region
      $region89: #{forward.1} parent=87 // pred_check
        %p4188 = pneg %p408
      $region90: #{forward.1} parent=87 // pred_check_branch
        %4190 = sbr.rel (%p4188) target = $region92
      $region91: #{forward.1} parent=87 // pred_region
        _
      $region92: #{forward.1} parent=87 // pred_fallthru
        _
    $region88: #{forward.1} parent=5 // pred_fallthru
      _
    %p4191 = scmp.le.s32.totalorder 2, %s23
    // Predicated region
    $region93: #{forward.1} parent=5 // pred_check
      %p4192 = pneg %p4191
    $region94: #{forward.1} parent=5 // pred_check_branch
      %4194 = sbr.rel (%p4192) target = $region96
    $region95: #{forward.1} parent=5 // pred_region
      %s4195 = ssub.s32 %s23, 2
      // Predicated region
      $region97: #{forward.1} parent=95 // pred_check
        %p4196 = pneg %p414
      $region98: #{forward.1} parent=95 // pred_check_branch
        %4198 = sbr.rel (%p4196) target = $region100
      $region99: #{forward.1} parent=95 // pred_region
        %p4199 = scmp.lt.s32.totalorder %s29, 1
        %s4200 = scalar_select %p4199, %s29, 1
        %s4201 = smul.addr %s4200, 2
        %s4202 = scalar_lea.vmem %s17, %s4201
      $region100: #{forward.1} parent=95 // pred_fallthru
        _
    $region96: #{forward.1} parent=5 // pred_fallthru
      _
  $region6: #{forward.1} parent=0 // loop_footer
    %s27 = sadd.s32 1, %s23
  $region7: #{forward.1} parent=0 // loop_footer_branch
    %22 = sbr.rel target = $region3
  $region8: #{forward.1} parent=0 // loop_exit
    _

</llo_original>
